<compile_context>
chip_gen: v7x
topology: tpu7x:2x2x1
jax: 0.10.0
libtpu: 0.0.40
codegen_flags: <defaults>
</compile_context>

<pallas_src>
import jax
import jax.numpy as jnp
from jax import lax
from jax.experimental import pallas as pl
from jax.experimental.pallas import tpu as pltpu

INPUT_DIM = 32   # small stand-in for 512
HIDDEN_DIM = 32  # small stand-in for 256
NUM_LAYERS = 2
BATCH = 2
SEQ = 8


def _make_rnn_encoder_kernel(T, BT, H):
    """Bakes static sizes: T timesteps, BT batch rows per tile, H hidden."""
    UNROLL = next(u for u in (4, 2, 1) if T % u == 0)
    f32 = jnp.float32

    def gates(gi, gh, h, bhh_n):
        # PyTorch gate order (r, z, n).  gi already contains b_ih (all gates)
        # plus the r/z parts of b_hh; only the n-gate b_hh is applied here
        # (it sits inside the r * (...) term).
        r = jax.nn.sigmoid(gi[:, 0:H] + gh[:, 0:H])
        z = jax.nn.sigmoid(gi[:, H:2 * H] + gh[:, H:2 * H])
        n = jnp.tanh(gi[:, 2 * H:3 * H] + r * (gh[:, 2 * H:3 * H] + bhh_n))
        return (1.0 - z) * n + z * h

    def kernel(x_ref,                      # (T*BT, D) time-major batch tile
               wih0, bih0,                 # (D, 6H), (1, 6H)   fwd|bwd concat
               whh0f, bhh0f_n,             # (H, 3H), (1, H)
               whh0b, bhh0b_n,
               wih1f_f, wih1f_b, bih1f,    # (H,3H), (H,3H), (1,3H)
               whh1f, bhh1f_n,
               wih1b_f, wih1b_b, bih1b, bhh1b_n,   # layer-1 bwd: W_hh unused (h==0)
               wfc_f, wfc_b, bfc,          # (H,H), (H,H), (1,H)
               o_ref,                      # (BT, H)
               gi0f_ref, gi0b_ref,         # (T*BT, 3H) scratch
               out0f_ref, out0b_ref,       # (T*BT, H)  scratch
               gi1_ref):                   # (T*BT, 3H) scratch

        # ---- Layer 0 input projection: ONE (T*BT, D) @ (D, 6H) MXU GEMM for
        #      both directions, split once into per-direction scratch refs so
        #      the serial loops read full-width, tile-aligned row blocks.
        gi0 = jnp.dot(x_ref[...], wih0[...], preferred_element_type=f32) + bih0[...]
        gi0f_ref[...] = gi0[:, 0:3 * H]
        gi0b_ref[...] = gi0[:, 3 * H:6 * H]
        # TODO(synk): at production T, time-chunk this GEMM into a
        # double-buffered scratch instead of materialising all T steps.

        # Hoist recurrent weights and n-gate bias broadcasts once (JAX does
        # not CSE broadcast_in_dim inside loops).
        whh0f_v = whh0f[...]
        whh0b_v = whh0b[...]
        whh1f_v = whh1f[...]
        bhh0f_nb = jnp.broadcast_to(bhh0f_n[...], (BT, H))
        bhh0b_nb = jnp.broadcast_to(bhh0b_n[...], (BT, H))
        bhh1f_nb = jnp.broadcast_to(bhh1f_n[...], (BT, H))
        bhh1b_nb = jnp.broadcast_to(bhh1b_n[...], (BT, H))

        def rows(t):
            # Row block of timestep t; BT is a multiple of 8 -> tile aligned.
            return pl.ds(pl.multiple_of(t * BT, BT), BT)

        # ---- Layer 0: fwd and bwd recurrences interleaved in one time loop.
        #      Only the small (BT,H)@(H,3H) recurrent matmul is serial.
        def l0_step(t, carry):
            hf, hb = carry
            tb = T - 1 - t
            ghf = jnp.dot(hf, whh0f_v, preferred_element_type=f32)
            ghb = jnp.dot(hb, whh0b_v, preferred_element_type=f32)
            hf = gates(gi0f_ref[rows(t), :], ghf, hf, bhh0f_nb)
            hb = gates(gi0b_ref[rows(tb), :], ghb, hb, bhh0b_nb)
            out0f_ref[rows(t), :] = hf
            out0b_ref[rows(tb), :] = hb
            return hf, hb

        def l0_block(k, carry):
            for u in range(UNROLL):          # static unroll: LLO visibility
                carry = l0_step(k * UNROLL + u, carry)
            return carry

        zeros = jnp.zeros((BT, H), f32)
        lax.fori_loop(0, T // UNROLL, l0_block, (zeros, zeros))

        # ---- Layer 1 forward input projection: hoisted over the whole stored
        #      layer-0 output, split per direction (no concat needed).
        gi1_ref[...] = (
            jnp.dot(out0f_ref[...], wih1f_f[...], preferred_element_type=f32)
            + jnp.dot(out0b_ref[...], wih1f_b[...], preferred_element_type=f32)
            + bih1f[...])

        def l1_step(t, h1):
            gh = jnp.dot(h1, whh1f_v, preferred_element_type=f32)
            return gates(gi1_ref[rows(t), :], gh, h1, bhh1f_nb)

        def l1_block(k, h1):
            for u in range(UNROLL):
                h1 = l1_step(k * UNROLL + u, h1)
            return h1

        h1f = lax.fori_loop(0, T // UNROLL, l1_block, zeros)

        # ---- Layer 1 backward: only its step at t = T-1 reaches
        #      gru_output[:, -1, :]; that step starts from a zero state, so
        #      gh == b_hh, the z*h term vanishes and W_hh1b is never needed.
        lastf = out0f_ref[(T - 1) * BT:T * BT, :]
        lastb = out0b_ref[(T - 1) * BT:T * BT, :]
        gib = (jnp.dot(lastf, wih1b_f[...], preferred_element_type=f32)
               + jnp.dot(lastb, wih1b_b[...], preferred_element_type=f32)
               + bih1b[...])
        r = jax.nn.sigmoid(gib[:, 0:H])
        z = jax.nn.sigmoid(gib[:, H:2 * H])
        n = jnp.tanh(gib[:, 2 * H:3 * H] + r * bhh1b_nb)
        h1b = (1.0 - z) * n

        # ---- Final Linear on concat(h1f, h1b): split-matmul form avoids the
        #      lane-narrow concatenate.
        o_ref[...] = (jnp.dot(h1f, wfc_f[...], preferred_element_type=f32)
                      + jnp.dot(h1b, wfc_b[...], preferred_element_type=f32)
                      + bfc[...])

    return kernel


def init_params(key, input_dim=INPUT_DIM, hidden_dim=HIDDEN_DIM):
    """Deterministic synthetic params, PyTorch-shaped: W_ih (3H,in), W_hh (3H,H)."""
    H = hidden_dim
    keys = iter(jax.random.split(key, 64))

    def u(shape):
        return (jax.random.uniform(next(keys), shape, jnp.float32) - 0.5) * 0.2

    params = {}
    for layer in range(NUM_LAYERS):
        in_dim = input_dim if layer == 0 else 2 * H
        for d in ("f", "b"):
            params[f"wih{layer}{d}"] = u((3 * H, in_dim))
            params[f"whh{layer}{d}"] = u((3 * H, H))
            params[f"bih{layer}{d}"] = u((3 * H,))
            params[f"bhh{layer}{d}"] = u((3 * H,))
    params["wfc"] = u((H, 2 * H))
    params["bfc"] = u((H,))
    return params


def rnn_encoder_forward(x, params, *, batch_tile=8):
    """x: (B, T, D) -> (B, H).  batch_tile: rows per grid step, multiple of 8
    (f32 sublanes); use 16-64 at production batch sizes."""
    B, T, D = x.shape
    H = HIDDEN_DIM
    BT = batch_tile
    G = pl.cdiv(B, BT)
    Bp = G * BT

    # Pad batch to the tile size and lay x out as (G, T*BT, D): one batch tile
    # per grid step, time-major and flattened so per-time-step row blocks are
    # contiguous tile-aligned slabs and the hoisted gi projection is one GEMM.
    xp = jnp.pad(x, ((0, Bp - B), (0, 0), (0, 0)))
    x_tiles = xp.reshape(G, BT, T, D).transpose(0, 2, 1, 3).reshape(G, T * BT, D)

    def fold_rz(bih, bhh):
        # Fold r/z parts of b_hh into the hoisted gi bias; the n-gate part
        # stays in-loop (it is multiplied by r).
        return bih + jnp.concatenate([bhh[:2 * H], jnp.zeros((H,), bhh.dtype)])

    def n_bias(bhh):
        return bhh[2 * H:].reshape(1, H)

    # Weights pre-transposed to (in, out) for row-major x @ W on the MXU;
    # biases reshaped to (1, out) for lane broadcast.  Layer-0 fwd/bwd W_ih are
    # concatenated along the output dim -> a single (D, 6H) projection.
    # TODO(synk): on v6e/v7x cast weights + GEMM inputs to bf16 (keep f32
    # accumulation / gate math); f32 here for the tight correctness check.
    wih0 = jnp.concatenate([params["wih0f"].T, params["wih0b"].T], axis=1)
    bih0 = jnp.concatenate([fold_rz(params["bih0f"], params["bhh0f"]),
                            fold_rz(params["bih0b"], params["bhh0b"])]).reshape(1, 6 * H)
    wih1f_t = params["wih1f"].T      # (2H, 3H)
    wih1b_t = params["wih1b"].T
    wfc_t = params["wfc"].T          # (2H, H)

    args = [
        x_tiles,
        wih0, bih0,
        params["whh0f"].T, n_bias(params["bhh0f"]),
        params["whh0b"].T, n_bias(params["bhh0b"]),
        wih1f_t[:H], wih1f_t[H:],
        fold_rz(params["bih1f"], params["bhh1f"]).reshape(1, 3 * H),
        params["whh1f"].T, n_bias(params["bhh1f"]),
        wih1b_t[:H], wih1b_t[H:],
        fold_rz(params["bih1b"], params["bhh1b"]).reshape(1, 3 * H),
        n_bias(params["bhh1b"]),
        wfc_t[:H], wfc_t[H:], params["bfc"].reshape(1, H),
    ]

    # x: one batch tile per grid step (pipelined HBM->VMEM); weights/biases:
    # whole-array VMEM blocks with a constant index map -> resident.
    in_specs = ([pl.BlockSpec((None, T * BT, D), lambda g: (g, 0, 0))]
                + [pl.BlockSpec(a.shape, lambda g: (0, 0)) for a in args[1:]])
    out_specs = pl.BlockSpec((BT, H), lambda g: (g, 0))

    out = pl.pallas_call(
        _make_rnn_encoder_kernel(T, BT, H),
        grid=(G,),
        out_shape=jax.ShapeDtypeStruct((Bp, H), jnp.float32),
        in_specs=in_specs,
        out_specs=out_specs,
        scratch_shapes=[
            pltpu.VMEM((T * BT, 3 * H), jnp.float32),   # hoisted gi, layer-0 fwd
            pltpu.VMEM((T * BT, 3 * H), jnp.float32),   # hoisted gi, layer-0 bwd
            pltpu.VMEM((T * BT, H), jnp.float32),       # layer-0 fwd outputs
            pltpu.VMEM((T * BT, H), jnp.float32),       # layer-0 bwd outputs
            pltpu.VMEM((T * BT, 3 * H), jnp.float32),   # hoisted gi, layer-1 fwd
        ],
        compiler_params=pltpu.CompilerParams(
            dimension_semantics=("parallel",),           # megacore batch split (v7x)
            vmem_limit_bytes=64 * 1024 * 1024),
    )(*args)
    return out[:B]


def ref_forward(x, params):
    """Pure-JAX reference with identical PyTorch GRU semantics (validation)."""
    H = HIDDEN_DIM
    B_, T_, _ = x.shape

    def cell(x_t, h, wih, whh, bih, bhh):
        gi = x_t @ wih.T + bih
        gh = h @ whh.T + bhh
        r = jax.nn.sigmoid(gi[:, :H] + gh[:, :H])
        z = jax.nn.sigmoid(gi[:, H:2 * H] + gh[:, H:2 * H])
        n = jnp.tanh(gi[:, 2 * H:] + r * gh[:, 2 * H:])
        return (1 - z) * n + z * h

    inp = x
    for layer in range(NUM_LAYERS):
        hf = jnp.zeros((B_, H), jnp.float32)
        outs_f = []
        for t in range(T_):
            hf = cell(inp[:, t], hf, params[f"wih{layer}f"], params[f"whh{layer}f"],
                      params[f"bih{layer}f"], params[f"bhh{layer}f"])
            outs_f.append(hf)
        hb = jnp.zeros((B_, H), jnp.float32)
        outs_b = [None] * T_
        for s in range(T_):
            t = T_ - 1 - s
            hb = cell(inp[:, t], hb, params[f"wih{layer}b"], params[f"whh{layer}b"],
                      params[f"bih{layer}b"], params[f"bhh{layer}b"])
            outs_b[t] = hb
        inp = jnp.stack([jnp.concatenate([outs_f[t], outs_b[t]], -1)
                         for t in range(T_)], axis=1)
    last = inp[:, -1, :]
    return last @ params["wfc"].T + params["bfc"]


if __name__ == "__main__":
    key = jax.random.PRNGKey(0)
    kx, kp = jax.random.split(key)
    x = jax.random.normal(kx, (BATCH, SEQ, INPUT_DIM), jnp.float32)
    params = init_params(kp)

    out = jax.block_until_ready(rnn_encoder_forward(x, params))
    assert out.shape == (BATCH, HIDDEN_DIM), out.shape

    ref = jax.block_until_ready(ref_forward(x, params))
    assert jnp.allclose(out, ref, rtol=1e-4, atol=1e-4), \
        f"max abs err {jnp.max(jnp.abs(out - ref))}"

    print("KERNEL_OK")
</pallas_src>

<mosaic_0001>
module attributes {stable_mosaic.version = 11 : i64} {
  func.func @kernel(%arg0: i32, %arg1: memref<1x64x32xf32, #tpu.memory_space<vmem>>, %arg2: memref<32x192xf32, #tpu.memory_space<vmem>>, %arg3: memref<1x192xf32, #tpu.memory_space<vmem>>, %arg4: memref<32x96xf32, #tpu.memory_space<vmem>>, %arg5: memref<1x32xf32, #tpu.memory_space<vmem>>, %arg6: memref<32x96xf32, #tpu.memory_space<vmem>>, %arg7: memref<1x32xf32, #tpu.memory_space<vmem>>, %arg8: memref<32x96xf32, #tpu.memory_space<vmem>>, %arg9: memref<32x96xf32, #tpu.memory_space<vmem>>, %arg10: memref<1x96xf32, #tpu.memory_space<vmem>>, %arg11: memref<32x96xf32, #tpu.memory_space<vmem>>, %arg12: memref<1x32xf32, #tpu.memory_space<vmem>>, %arg13: memref<32x96xf32, #tpu.memory_space<vmem>>, %arg14: memref<32x96xf32, #tpu.memory_space<vmem>>, %arg15: memref<1x96xf32, #tpu.memory_space<vmem>>, %arg16: memref<1x32xf32, #tpu.memory_space<vmem>>, %arg17: memref<32x32xf32, #tpu.memory_space<vmem>>, %arg18: memref<32x32xf32, #tpu.memory_space<vmem>>, %arg19: memref<1x32xf32, #tpu.memory_space<vmem>>, %arg20: memref<8x32xf32, #tpu.memory_space<vmem>>, %arg21: memref<64x96xf32, #tpu.memory_space<vmem>>, %arg22: memref<64x96xf32, #tpu.memory_space<vmem>>, %arg23: memref<64x32xf32, #tpu.memory_space<vmem>>, %arg24: memref<64x32xf32, #tpu.memory_space<vmem>>, %arg25: memref<64x96xf32, #tpu.memory_space<vmem>>) attributes {dimension_semantics = [#tpu.dimension_semantics<parallel>], iteration_bounds = array<i64: 1>, scalar_prefetch = 0 : i64, scratch_operands = 5 : i64, tpu.core_type = #tpu.core_type<tc>, window_params = [{transform_indices = @transform_0, window_bounds = array<i64: 1, 64, 32>}, {pipeline_mode = #tpu.pipeline_mode<synchronous>, transform_indices = @transform_1, window_bounds = array<i64: 32, 192>}, {pipeline_mode = #tpu.pipeline_mode<synchronous>, transform_indices = @transform_2, window_bounds = array<i64: 1, 192>}, {pipeline_mode = #tpu.pipeline_mode<synchronous>, transform_indices = @transform_3, window_bounds = array<i64: 32, 96>}, {pipeline_mode = #tpu.pipeline_mode<synchronous>, transform_indices = @transform_4, window_bounds = array<i64: 1, 32>}, {pipeline_mode = #tpu.pipeline_mode<synchronous>, transform_indices = @transform_5, window_bounds = array<i64: 32, 96>}, {pipeline_mode = #tpu.pipeline_mode<synchronous>, transform_indices = @transform_6, window_bounds = array<i64: 1, 32>}, {pipeline_mode = #tpu.pipeline_mode<synchronous>, transform_indices = @transform_7, window_bounds = array<i64: 32, 96>}, {pipeline_mode = #tpu.pipeline_mode<synchronous>, transform_indices = @transform_8, window_bounds = array<i64: 32, 96>}, {pipeline_mode = #tpu.pipeline_mode<synchronous>, transform_indices = @transform_9, window_bounds = array<i64: 1, 96>}, {pipeline_mode = #tpu.pipeline_mode<synchronous>, transform_indices = @transform_10, window_bounds = array<i64: 32, 96>}, {pipeline_mode = #tpu.pipeline_mode<synchronous>, transform_indices = @transform_11, window_bounds = array<i64: 1, 32>}, {pipeline_mode = #tpu.pipeline_mode<synchronous>, transform_indices = @transform_12, window_bounds = array<i64: 32, 96>}, {pipeline_mode = #tpu.pipeline_mode<synchronous>, transform_indices = @transform_13, window_bounds = array<i64: 32, 96>}, {pipeline_mode = #tpu.pipeline_mode<synchronous>, transform_indices = @transform_14, window_bounds = array<i64: 1, 96>}, {pipeline_mode = #tpu.pipeline_mode<synchronous>, transform_indices = @transform_15, window_bounds = array<i64: 1, 32>}, {pipeline_mode = #tpu.pipeline_mode<synchronous>, transform_indices = @transform_16, window_bounds = array<i64: 32, 32>}, {pipeline_mode = #tpu.pipeline_mode<synchronous>, transform_indices = @transform_17, window_bounds = array<i64: 32, 32>}, {pipeline_mode = #tpu.pipeline_mode<synchronous>, transform_indices = @transform_18, window_bounds = array<i64: 1, 32>}, {transform_indices = @transform_19, window_bounds = array<i64: 8, 32>}]} {
    %c0 = arith.constant 0 : index
    %c0_0 = arith.constant 0 : index
    %c0_1 = arith.constant 0 : index
    %0 = vector.load %arg1[%c0, %c0_0, %c0_1] : memref<1x64x32xf32, #tpu.memory_space<vmem>>, vector<1x64x32xf32>
    %1 = vector.shape_cast %0 : vector<1x64x32xf32> to vector<64x32xf32>
    %c0_2 = arith.constant 0 : index
    %c0_3 = arith.constant 0 : index
    %2 = vector.load %arg2[%c0_2, %c0_3] : memref<32x192xf32, #tpu.memory_space<vmem>>, vector<32x192xf32>
    %cst = arith.constant dense<0.000000e+00> : vector<64x192xf32>
    %3 = tpu.matmul %1, %2, %cst {dimension_numbers = #tpu.dot_dimension_numbers<[1], [0], [0], [1], [0, 0, 1, 1], [], []>} : vector<64x32xf32>, vector<32x192xf32>, vector<64x192xf32> -> vector<64x192xf32>
    %c0_4 = arith.constant 0 : index
    %c0_5 = arith.constant 0 : index
    %4 = vector.load %arg3[%c0_4, %c0_5] : memref<1x192xf32, #tpu.memory_space<vmem>>, vector<1x192xf32>
    %5 = vector.broadcast %4 : vector<1x192xf32> to vector<64x192xf32>
    %6 = arith.addf %3, %5 : vector<64x192xf32>
    %7 = vector.extract_strided_slice %6 {offsets = [0, 0], sizes = [64, 96], strides = [1, 1]} : vector<64x192xf32> to vector<64x96xf32>
    %c0_6 = arith.constant 0 : index
    %c0_7 = arith.constant 0 : index
    %8 = vector.load %arg21[%c0_6, %c0_7] : memref<64x96xf32, #tpu.memory_space<vmem>>, vector<64x96xf32>
    tpu.vector_store %arg21[%c0_6, %c0_7], %7 {strides = array<i32>} : memref<64x96xf32, #tpu.memory_space<vmem>>, vector<64x96xf32>,
    %9 = vector.extract_strided_slice %6 {offsets = [0, 96], sizes = [64, 96], strides = [1, 1]} : vector<64x192xf32> to vector<64x96xf32>
    %c0_8 = arith.constant 0 : index
    %c0_9 = arith.constant 0 : index
    %10 = vector.load %arg22[%c0_8, %c0_9] : memref<64x96xf32, #tpu.memory_space<vmem>>, vector<64x96xf32>
    tpu.vector_store %arg22[%c0_8, %c0_9], %9 {strides = array<i32>} : memref<64x96xf32, #tpu.memory_space<vmem>>, vector<64x96xf32>,
    %c0_10 = arith.constant 0 : index
    %c0_11 = arith.constant 0 : index
    %11 = vector.load %arg4[%c0_10, %c0_11] : memref<32x96xf32, #tpu.memory_space<vmem>>, vector<32x96xf32>
    %c0_12 = arith.constant 0 : index
    %c0_13 = arith.constant 0 : index
    %12 = vector.load %arg6[%c0_12, %c0_13] : memref<32x96xf32, #tpu.memory_space<vmem>>, vector<32x96xf32>
    %c0_14 = arith.constant 0 : index
    %c0_15 = arith.constant 0 : index
    %13 = vector.load %arg11[%c0_14, %c0_15] : memref<32x96xf32, #tpu.memory_space<vmem>>, vector<32x96xf32>
    %c0_16 = arith.constant 0 : index
    %c0_17 = arith.constant 0 : index
    %14 = vector.load %arg5[%c0_16, %c0_17] : memref<1x32xf32, #tpu.memory_space<vmem>>, vector<1x32xf32>
    %15 = vector.shape_cast %14 : vector<1x32xf32> to vector<1x32xf32>
    %16 = vector.broadcast %15 : vector<1x32xf32> to vector<8x32xf32>
    %c0_18 = arith.constant 0 : index
    %c0_19 = arith.constant 0 : index
    %17 = vector.load %arg7[%c0_18, %c0_19] : memref<1x32xf32, #tpu.memory_space<vmem>>, vector<1x32xf32>
    %18 = vector.shape_cast %17 : vector<1x32xf32> to vector<1x32xf32>
    %19 = vector.broadcast %18 : vector<1x32xf32> to vector<8x32xf32>
    %c0_20 = arith.constant 0 : index
    %c0_21 = arith.constant 0 : index
    %20 = vector.load %arg12[%c0_20, %c0_21] : memref<1x32xf32, #tpu.memory_space<vmem>>, vector<1x32xf32>
    %21 = vector.shape_cast %20 : vector<1x32xf32> to vector<1x32xf32>
    %22 = vector.broadcast %21 : vector<1x32xf32> to vector<8x32xf32>
    %c0_22 = arith.constant 0 : index
    %c0_23 = arith.constant 0 : index
    %23 = vector.load %arg16[%c0_22, %c0_23] : memref<1x32xf32, #tpu.memory_space<vmem>>, vector<1x32xf32>
    %24 = vector.shape_cast %23 : vector<1x32xf32> to vector<1x32xf32>
    %25 = vector.broadcast %24 : vector<1x32xf32> to vector<8x32xf32>
    %cst_24 = arith.constant 0.000000e+00 : f32
    %26 = vector.broadcast %cst_24 : f32 to vector<8x32xf32>
    %c0_i32 = arith.constant 0 : i32
    %c2_i32 = arith.constant 2 : i32
    %27 = arith.addi %c0_i32, %c2_i32 : i32
    %c1_i32 = arith.constant 1 : i32
    %28:2 = scf.for %arg26 = %c0_i32 to %27 step %c1_i32 iter_args(%arg27 = %26, %arg28 = %26) -> (vector<8x32xf32>, vector<8x32xf32>)  : i32 {
      %c4_i32 = arith.constant 4 : i32
      %80 = arith.muli %arg26, %c4_i32 : i32
      %c0_i32_68 = arith.constant 0 : i32
      %81 = arith.addi %80, %c0_i32_68 : i32
      %c7_i32 = arith.constant 7 : i32
      %82 = arith.subi %c7_i32, %81 : i32
      %cst_69 = arith.constant dense<0.000000e+00> : vector<8x96xf32>
      %83 = tpu.matmul %arg27, %11, %cst_69 {dimension_numbers = #tpu.dot_dimension_numbers<[1], [0], [0], [1], [0, 0, 1, 1], [], []>} : vector<8x32xf32>, vector<32x96xf32>, vector<8x96xf32> -> vector<8x96xf32>
      %cst_70 = arith.constant dense<0.000000e+00> : vector<8x96xf32>
      %84 = tpu.matmul %arg28, %12, %cst_70 {dimension_numbers = #tpu.dot_dimension_numbers<[1], [0], [0], [1], [0, 0, 1, 1], [], []>} : vector<8x32xf32>, vector<32x96xf32>, vector<8x96xf32> -> vector<8x96xf32>
      %c8_i32 = arith.constant 8 : i32
      %85 = arith.muli %81, %c8_i32 : i32
      %86 = tpu.assume_multiple %85, 8 : i32
      %87 = arith.index_cast %86 : i32 to index
      %c0_71 = arith.constant 0 : index
      %88 = vector.load %arg21[%87, %c0_71] : memref<64x96xf32, #tpu.memory_space<vmem>>, vector<8x96xf32>
      %89 = vector.extract_strided_slice %88 {offsets = [0, 0], sizes = [8, 32], strides = [1, 1]} : vector<8x96xf32> to vector<8x32xf32>
      %90 = vector.extract_strided_slice %83 {offsets = [0, 0], sizes = [8, 32], strides = [1, 1]} : vector<8x96xf32> to vector<8x32xf32>
      %91 = arith.addf %89, %90 : vector<8x32xf32>
      %92 = arith.negf %91 : vector<8x32xf32>
      %93 = math.exp %92 : vector<8x32xf32>
      %cst_72 = arith.constant 1.000000e+00 : f32
      %94 = vector.broadcast %cst_72 : f32 to vector<8x32xf32>
      %95 = arith.addf %94, %93 : vector<8x32xf32>
      %96 = arith.divf %94, %95 : vector<8x32xf32>
      %97 = vector.extract_strided_slice %88 {offsets = [0, 32], sizes = [8, 32], strides = [1, 1]} : vector<8x96xf32> to vector<8x32xf32>
      %98 = vector.extract_strided_slice %83 {offsets = [0, 32], sizes = [8, 32], strides = [1, 1]} : vector<8x96xf32> to vector<8x32xf32>
      %99 = arith.addf %97, %98 : vector<8x32xf32>
      %100 = arith.negf %99 : vector<8x32xf32>
      %101 = math.exp %100 : vector<8x32xf32>
      %cst_73 = arith.constant 1.000000e+00 : f32
      %102 = vector.broadcast %cst_73 : f32 to vector<8x32xf32>
      %103 = arith.addf %102, %101 : vector<8x32xf32>
      %104 = arith.divf %102, %103 : vector<8x32xf32>
      %105 = vector.extract_strided_slice %88 {offsets = [0, 64], sizes = [8, 32], strides = [1, 1]} : vector<8x96xf32> to vector<8x32xf32>
      %106 = vector.extract_strided_slice %83 {offsets = [0, 64], sizes = [8, 32], strides = [1, 1]} : vector<8x96xf32> to vector<8x32xf32>
      %107 = arith.addf %106, %16 : vector<8x32xf32>
      %108 = arith.mulf %96, %107 : vector<8x32xf32>
      %109 = arith.addf %105, %108 : vector<8x32xf32>
      %110 = math.tanh %109 : vector<8x32xf32>
      %cst_74 = arith.constant 1.000000e+00 : f32
      %111 = vector.broadcast %cst_74 : f32 to vector<8x32xf32>
      %112 = arith.subf %111, %104 : vector<8x32xf32>
      %113 = arith.mulf %112, %110 : vector<8x32xf32>
      %114 = arith.mulf %104, %arg27 : vector<8x32xf32>
      %115 = arith.addf %113, %114 : vector<8x32xf32>
      %c8_i32_75 = arith.constant 8 : i32
      %116 = arith.muli %82, %c8_i32_75 : i32
      %117 = tpu.assume_multiple %116, 8 : i32
      %118 = arith.index_cast %117 : i32 to index
      %c0_76 = arith.constant 0 : index
      %119 = vector.load %arg22[%118, %c0_76] : memref<64x96xf32, #tpu.memory_space<vmem>>, vector<8x96xf32>
      %120 = vector.extract_strided_slice %119 {offsets = [0, 0], sizes = [8, 32], strides = [1, 1]} : vector<8x96xf32> to vector<8x32xf32>
      %121 = vector.extract_strided_slice %84 {offsets = [0, 0], sizes = [8, 32], strides = [1, 1]} : vector<8x96xf32> to vector<8x32xf32>
      %122 = arith.addf %120, %121 : vector<8x32xf32>
      %123 = arith.negf %122 : vector<8x32xf32>
      %124 = math.exp %123 : vector<8x32xf32>
      %cst_77 = arith.constant 1.000000e+00 : f32
      %125 = vector.broadcast %cst_77 : f32 to vector<8x32xf32>
      %126 = arith.addf %125, %124 : vector<8x32xf32>
      %127 = arith.divf %125, %126 : vector<8x32xf32>
      %128 = vector.extract_strided_slice %119 {offsets = [0, 32], sizes = [8, 32], strides = [1, 1]} : vector<8x96xf32> to vector<8x32xf32>
      %129 = vector.extract_strided_slice %84 {offsets = [0, 32], sizes = [8, 32], strides = [1, 1]} : vector<8x96xf32> to vector<8x32xf32>
      %130 = arith.addf %128, %129 : vector<8x32xf32>
      %131 = arith.negf %130 : vector<8x32xf32>
      %132 = math.exp %131 : vector<8x32xf32>
      %cst_78 = arith.constant 1.000000e+00 : f32
      %133 = vector.broadcast %cst_78 : f32 to vector<8x32xf32>
      %134 = arith.addf %133, %132 : vector<8x32xf32>
      %135 = arith.divf %133, %134 : vector<8x32xf32>
      %136 = vector.extract_strided_slice %119 {offsets = [0, 64], sizes = [8, 32], strides = [1, 1]} : vector<8x96xf32> to vector<8x32xf32>
      %137 = vector.extract_strided_slice %84 {offsets = [0, 64], sizes = [8, 32], strides = [1, 1]} : vector<8x96xf32> to vector<8x32xf32>
      %138 = arith.addf %137, %19 : vector<8x32xf32>
      %139 = arith.mulf %127, %138 : vector<8x32xf32>
      %140 = arith.addf %136, %139 : vector<8x32xf32>
      %141 = math.tanh %140 : vector<8x32xf32>
      %cst_79 = arith.constant 1.000000e+00 : f32
      %142 = vector.broadcast %cst_79 : f32 to vector<8x32xf32>
      %143 = arith.subf %142, %135 : vector<8x32xf32>
      %144 = arith.mulf %143, %141 : vector<8x32xf32>
      %145 = arith.mulf %135, %arg28 : vector<8x32xf32>
      %146 = arith.addf %144, %145 : vector<8x32xf32>
      %c8_i32_80 = arith.constant 8 : i32
      %147 = arith.muli %81, %c8_i32_80 : i32
      %148 = tpu.assume_multiple %147, 8 : i32
      %149 = arith.index_cast %148 : i32 to index
      %c0_81 = arith.constant 0 : index
      %150 = vector.load %arg23[%149, %c0_81] : memref<64x32xf32, #tpu.memory_space<vmem>>, vector<8x32xf32>
      tpu.vector_store %arg23[%149, %c0_81], %115 {strides = array<i32>} : memref<64x32xf32, #tpu.memory_space<vmem>>, vector<8x32xf32>,
      %c8_i32_82 = arith.constant 8 : i32
      %151 = arith.muli %82, %c8_i32_82 : i32
      %152 = tpu.assume_multiple %151, 8 : i32
      %153 = arith.index_cast %152 : i32 to index
      %c0_83 = arith.constant 0 : index
      %154 = vector.load %arg24[%153, %c0_83] : memref<64x32xf32, #tpu.memory_space<vmem>>, vector<8x32xf32>
      tpu.vector_store %arg24[%153, %c0_83], %146 {strides = array<i32>} : memref<64x32xf32, #tpu.memory_space<vmem>>, vector<8x32xf32>,
      %c4_i32_84 = arith.constant 4 : i32
      %155 = arith.muli %arg26, %c4_i32_84 : i32
      %c1_i32_85 = arith.constant 1 : i32
      %156 = arith.addi %155, %c1_i32_85 : i32
      %c7_i32_86 = arith.constant 7 : i32
      %157 = arith.subi %c7_i32_86, %156 : i32
      %cst_87 = arith.constant dense<0.000000e+00> : vector<8x96xf32>
      %158 = tpu.matmul %115, %11, %cst_87 {dimension_numbers = #tpu.dot_dimension_numbers<[1], [0], [0], [1], [0, 0, 1, 1], [], []>} : vector<8x32xf32>, vector<32x96xf32>, vector<8x96xf32> -> vector<8x96xf32>
      %cst_88 = arith.constant dense<0.000000e+00> : vector<8x96xf32>
      %159 = tpu.matmul %146, %12, %cst_88 {dimension_numbers = #tpu.dot_dimension_numbers<[1], [0], [0], [1], [0, 0, 1, 1], [], []>} : vector<8x32xf32>, vector<32x96xf32>, vector<8x96xf32> -> vector<8x96xf32>
      %c8_i32_89 = arith.constant 8 : i32
      %160 = arith.muli %156, %c8_i32_89 : i32
      %161 = tpu.assume_multiple %160, 8 : i32
      %162 = arith.index_cast %161 : i32 to index
      %c0_90 = arith.constant 0 : index
      %163 = vector.load %arg21[%162, %c0_90] : memref<64x96xf32, #tpu.memory_space<vmem>>, vector<8x96xf32>
      %164 = vector.extract_strided_slice %163 {offsets = [0, 0], sizes = [8, 32], strides = [1, 1]} : vector<8x96xf32> to vector<8x32xf32>
      %165 = vector.extract_strided_slice %158 {offsets = [0, 0], sizes = [8, 32], strides = [1, 1]} : vector<8x96xf32> to vector<8x32xf32>
      %166 = arith.addf %164, %165 : vector<8x32xf32>
      %167 = arith.negf %166 : vector<8x32xf32>
      %168 = math.exp %167 : vector<8x32xf32>
      %cst_91 = arith.constant 1.000000e+00 : f32
      %169 = vector.broadcast %cst_91 : f32 to vector<8x32xf32>
      %170 = arith.addf %169, %168 : vector<8x32xf32>
      %171 = arith.divf %169, %170 : vector<8x32xf32>
      %172 = vector.extract_strided_slice %163 {offsets = [0, 32], sizes = [8, 32], strides = [1, 1]} : vector<8x96xf32> to vector<8x32xf32>
      %173 = vector.extract_strided_slice %158 {offsets = [0, 32], sizes = [8, 32], strides = [1, 1]} : vector<8x96xf32> to vector<8x32xf32>
      %174 = arith.addf %172, %173 : vector<8x32xf32>
      %175 = arith.negf %174 : vector<8x32xf32>
      %176 = math.exp %175 : vector<8x32xf32>
      %cst_92 = arith.constant 1.000000e+00 : f32
      %177 = vector.broadcast %cst_92 : f32 to vector<8x32xf32>
      %178 = arith.addf %177, %176 : vector<8x32xf32>
      %179 = arith.divf %177, %178 : vector<8x32xf32>
      %180 = vector.extract_strided_slice %163 {offsets = [0, 64], sizes = [8, 32], strides = [1, 1]} : vector<8x96xf32> to vector<8x32xf32>
      %181 = vector.extract_strided_slice %158 {offsets = [0, 64], sizes = [8, 32], strides = [1, 1]} : vector<8x96xf32> to vector<8x32xf32>
      %182 = arith.addf %181, %16 : vector<8x32xf32>
      %183 = arith.mulf %171, %182 : vector<8x32xf32>
      %184 = arith.addf %180, %183 : vector<8x32xf32>
      %185 = math.tanh %184 : vector<8x32xf32>
      %cst_93 = arith.constant 1.000000e+00 : f32
      %186 = vector.broadcast %cst_93 : f32 to vector<8x32xf32>
      %187 = arith.subf %186, %179 : vector<8x32xf32>
      %188 = arith.mulf %187, %185 : vector<8x32xf32>
      %189 = arith.mulf %179, %115 : vector<8x32xf32>
      %190 = arith.addf %188, %189 : vector<8x32xf32>
      %c8_i32_94 = arith.constant 8 : i32
      %191 = arith.muli %157, %c8_i32_94 : i32
      %192 = tpu.assume_multiple %191, 8 : i32
      %193 = arith.index_cast %192 : i32 to index
      %c0_95 = arith.constant 0 : index
      %194 = vector.load %arg22[%193, %c0_95] : memref<64x96xf32, #tpu.memory_space<vmem>>, vector<8x96xf32>
      %195 = vector.extract_strided_slice %194 {offsets = [0, 0], sizes = [8, 32], strides = [1, 1]} : vector<8x96xf32> to vector<8x32xf32>
      %196 = vector.extract_strided_slice %159 {offsets = [0, 0], sizes = [8, 32], strides = [1, 1]} : vector<8x96xf32> to vector<8x32xf32>
      %197 = arith.addf %195, %196 : vector<8x32xf32>
      %198 = arith.negf %197 : vector<8x32xf32>
      %199 = math.exp %198 : vector<8x32xf32>
      %cst_96 = arith.constant 1.000000e+00 : f32
      %200 = vector.broadcast %cst_96 : f32 to vector<8x32xf32>
      %201 = arith.addf %200, %199 : vector<8x32xf32>
      %202 = arith.divf %200, %201 : vector<8x32xf32>
      %203 = vector.extract_strided_slice %194 {offsets = [0, 32], sizes = [8, 32], strides = [1, 1]} : vector<8x96xf32> to vector<8x32xf32>
      %204 = vector.extract_strided_slice %159 {offsets = [0, 32], sizes = [8, 32], strides = [1, 1]} : vector<8x96xf32> to vector<8x32xf32>
      %205 = arith.addf %203, %204 : vector<8x32xf32>
      %206 = arith.negf %205 : vector<8x32xf32>
      %207 = math.exp %206 : vector<8x32xf32>
      %cst_97 = arith.constant 1.000000e+00 : f32
      %208 = vector.broadcast %cst_97 : f32 to vector<8x32xf32>
      %209 = arith.addf %208, %207 : vector<8x32xf32>
      %210 = arith.divf %208, %209 : vector<8x32xf32>
      %211 = vector.extract_strided_slice %194 {offsets = [0, 64], sizes = [8, 32], strides = [1, 1]} : vector<8x96xf32> to vector<8x32xf32>
      %212 = vector.extract_strided_slice %159 {offsets = [0, 64], sizes = [8, 32], strides = [1, 1]} : vector<8x96xf32> to vector<8x32xf32>
      %213 = arith.addf %212, %19 : vector<8x32xf32>
      %214 = arith.mulf %202, %213 : vector<8x32xf32>
      %215 = arith.addf %211, %214 : vector<8x32xf32>
      %216 = math.tanh %215 : vector<8x32xf32>
      %cst_98 = arith.constant 1.000000e+00 : f32
      %217 = vector.broadcast %cst_98 : f32 to vector<8x32xf32>
      %218 = arith.subf %217, %210 : vector<8x32xf32>
      %219 = arith.mulf %218, %216 : vector<8x32xf32>
      %220 = arith.mulf %210, %146 : vector<8x32xf32>
      %221 = arith.addf %219, %220 : vector<8x32xf32>
      %c8_i32_99 = arith.constant 8 : i32
      %222 = arith.muli %156, %c8_i32_99 : i32
      %223 = tpu.assume_multiple %222, 8 : i32
      %224 = arith.index_cast %223 : i32 to index
      %c0_100 = arith.constant 0 : index
      %225 = vector.load %arg23[%224, %c0_100] : memref<64x32xf32, #tpu.memory_space<vmem>>, vector<8x32xf32>
      tpu.vector_store %arg23[%224, %c0_100], %190 {strides = array<i32>} : memref<64x32xf32, #tpu.memory_space<vmem>>, vector<8x32xf32>,
      %c8_i32_101 = arith.constant 8 : i32
      %226 = arith.muli %157, %c8_i32_101 : i32
      %227 = tpu.assume_multiple %226, 8 : i32
      %228 = arith.index_cast %227 : i32 to index
      %c0_102 = arith.constant 0 : index
      %229 = vector.load %arg24[%228, %c0_102] : memref<64x32xf32, #tpu.memory_space<vmem>>, vector<8x32xf32>
      tpu.vector_store %arg24[%228, %c0_102], %221 {strides = array<i32>} : memref<64x32xf32, #tpu.memory_space<vmem>>, vector<8x32xf32>,
      %c4_i32_103 = arith.constant 4 : i32
      %230 = arith.muli %arg26, %c4_i32_103 : i32
      %c2_i32_104 = arith.constant 2 : i32
      %231 = arith.addi %230, %c2_i32_104 : i32
      %c7_i32_105 = arith.constant 7 : i32
      %232 = arith.subi %c7_i32_105, %231 : i32
      %cst_106 = arith.constant dense<0.000000e+00> : vector<8x96xf32>
      %233 = tpu.matmul %190, %11, %cst_106 {dimension_numbers = #tpu.dot_dimension_numbers<[1], [0], [0], [1], [0, 0, 1, 1], [], []>} : vector<8x32xf32>, vector<32x96xf32>, vector<8x96xf32> -> vector<8x96xf32>
      %cst_107 = arith.constant dense<0.000000e+00> : vector<8x96xf32>
      %234 = tpu.matmul %221, %12, %cst_107 {dimension_numbers = #tpu.dot_dimension_numbers<[1], [0], [0], [1], [0, 0, 1, 1], [], []>} : vector<8x32xf32>, vector<32x96xf32>, vector<8x96xf32> -> vector<8x96xf32>
      %c8_i32_108 = arith.constant 8 : i32
      %235 = arith.muli %231, %c8_i32_108 : i32
      %236 = tpu.assume_multiple %235, 8 : i32
      %237 = arith.index_cast %236 : i32 to index
      %c0_109 = arith.constant 0 : index
      %238 = vector.load %arg21[%237, %c0_109] : memref<64x96xf32, #tpu.memory_space<vmem>>, vector<8x96xf32>
      %239 = vector.extract_strided_slice %238 {offsets = [0, 0], sizes = [8, 32], strides = [1, 1]} : vector<8x96xf32> to vector<8x32xf32>
      %240 = vector.extract_strided_slice %233 {offsets = [0, 0], sizes = [8, 32], strides = [1, 1]} : vector<8x96xf32> to vector<8x32xf32>
      %241 = arith.addf %239, %240 : vector<8x32xf32>
      %242 = arith.negf %241 : vector<8x32xf32>
      %243 = math.exp %242 : vector<8x32xf32>
      %cst_110 = arith.constant 1.000000e+00 : f32
      %244 = vector.broadcast %cst_110 : f32 to vector<8x32xf32>
      %245 = arith.addf %244, %243 : vector<8x32xf32>
      %246 = arith.divf %244, %245 : vector<8x32xf32>
      %247 = vector.extract_strided_slice %238 {offsets = [0, 32], sizes = [8, 32], strides = [1, 1]} : vector<8x96xf32> to vector<8x32xf32>
      %248 = vector.extract_strided_slice %233 {offsets = [0, 32], sizes = [8, 32], strides = [1, 1]} : vector<8x96xf32> to vector<8x32xf32>
      %249 = arith.addf %247, %248 : vector<8x32xf32>
      %250 = arith.negf %249 : vector<8x32xf32>
      %251 = math.exp %250 : vector<8x32xf32>
      %cst_111 = arith.constant 1.000000e+00 : f32
      %252 = vector.broadcast %cst_111 : f32 to vector<8x32xf32>
      %253 = arith.addf %252, %251 : vector<8x32xf32>
      %254 = arith.divf %252, %253 : vector<8x32xf32>
      %255 = vector.extract_strided_slice %238 {offsets = [0, 64], sizes = [8, 32], strides = [1, 1]} : vector<8x96xf32> to vector<8x32xf32>
      %256 = vector.extract_strided_slice %233 {offsets = [0, 64], sizes = [8, 32], strides = [1, 1]} : vector<8x96xf32> to vector<8x32xf32>
      %257 = arith.addf %256, %16 : vector<8x32xf32>
      %258 = arith.mulf %246, %257 : vector<8x32xf32>
      %259 = arith.addf %255, %258 : vector<8x32xf32>
      %260 = math.tanh %259 : vector<8x32xf32>
      %cst_112 = arith.constant 1.000000e+00 : f32
      %261 = vector.broadcast %cst_112 : f32 to vector<8x32xf32>
      %262 = arith.subf %261, %254 : vector<8x32xf32>
      %263 = arith.mulf %262, %260 : vector<8x32xf32>
      %264 = arith.mulf %254, %190 : vector<8x32xf32>
      %265 = arith.addf %263, %264 : vector<8x32xf32>
      %c8_i32_113 = arith.constant 8 : i32
      %266 = arith.muli %232, %c8_i32_113 : i32
      %267 = tpu.assume_multiple %266, 8 : i32
      %268 = arith.index_cast %267 : i32 to index
      %c0_114 = arith.constant 0 : index
      %269 = vector.load %arg22[%268, %c0_114] : memref<64x96xf32, #tpu.memory_space<vmem>>, vector<8x96xf32>
      %270 = vector.extract_strided_slice %269 {offsets = [0, 0], sizes = [8, 32], strides = [1, 1]} : vector<8x96xf32> to vector<8x32xf32>
      %271 = vector.extract_strided_slice %234 {offsets = [0, 0], sizes = [8, 32], strides = [1, 1]} : vector<8x96xf32> to vector<8x32xf32>
      %272 = arith.addf %270, %271 : vector<8x32xf32>
      %273 = arith.negf %272 : vector<8x32xf32>
      %274 = math.exp %273 : vector<8x32xf32>
      %cst_115 = arith.constant 1.000000e+00 : f32
      %275 = vector.broadcast %cst_115 : f32 to vector<8x32xf32>
      %276 = arith.addf %275, %274 : vector<8x32xf32>
      %277 = arith.divf %275, %276 : vector<8x32xf32>
      %278 = vector.extract_strided_slice %269 {offsets = [0, 32], sizes = [8, 32], strides = [1, 1]} : vector<8x96xf32> to vector<8x32xf32>
      %279 = vector.extract_strided_slice %234 {offsets = [0, 32], sizes = [8, 32], strides = [1, 1]} : vector<8x96xf32> to vector<8x32xf32>
      %280 = arith.addf %278, %279 : vector<8x32xf32>
      %281 = arith.negf %280 : vector<8x32xf32>
      %282 = math.exp %281 : vector<8x32xf32>
      %cst_116 = arith.constant 1.000000e+00 : f32
      %283 = vector.broadcast %cst_116 : f32 to vector<8x32xf32>
      %284 = arith.addf %283, %282 : vector<8x32xf32>
      %285 = arith.divf %283, %284 : vector<8x32xf32>
      %286 = vector.extract_strided_slice %269 {offsets = [0, 64], sizes = [8, 32], strides = [1, 1]} : vector<8x96xf32> to vector<8x32xf32>
      %287 = vector.extract_strided_slice %234 {offsets = [0, 64], sizes = [8, 32], strides = [1, 1]} : vector<8x96xf32> to vector<8x32xf32>
      %288 = arith.addf %287, %19 : vector<8x32xf32>
      %289 = arith.mulf %277, %288 : vector<8x32xf32>
      %290 = arith.addf %286, %289 : vector<8x32xf32>
      %291 = math.tanh %290 : vector<8x32xf32>
      %cst_117 = arith.constant 1.000000e+00 : f32
      %292 = vector.broadcast %cst_117 : f32 to vector<8x32xf32>
      %293 = arith.subf %292, %285 : vector<8x32xf32>
      %294 = arith.mulf %293, %291 : vector<8x32xf32>
      %295 = arith.mulf %285, %221 : vector<8x32xf32>
      %296 = arith.addf %294, %295 : vector<8x32xf32>
      %c8_i32_118 = arith.constant 8 : i32
      %297 = arith.muli %231, %c8_i32_118 : i32
      %298 = tpu.assume_multiple %297, 8 : i32
      %299 = arith.index_cast %298 : i32 to index
      %c0_119 = arith.constant 0 : index
      %300 = vector.load %arg23[%299, %c0_119] : memref<64x32xf32, #tpu.memory_space<vmem>>, vector<8x32xf32>
      tpu.vector_store %arg23[%299, %c0_119], %265 {strides = array<i32>} : memref<64x32xf32, #tpu.memory_space<vmem>>, vector<8x32xf32>,
      %c8_i32_120 = arith.constant 8 : i32
      %301 = arith.muli %232, %c8_i32_120 : i32
      %302 = tpu.assume_multiple %301, 8 : i32
      %303 = arith.index_cast %302 : i32 to index
      %c0_121 = arith.constant 0 : index
      %304 = vector.load %arg24[%303, %c0_121] : memref<64x32xf32, #tpu.memory_space<vmem>>, vector<8x32xf32>
      tpu.vector_store %arg24[%303, %c0_121], %296 {strides = array<i32>} : memref<64x32xf32, #tpu.memory_space<vmem>>, vector<8x32xf32>,
      %c4_i32_122 = arith.constant 4 : i32
      %305 = arith.muli %arg26, %c4_i32_122 : i32
      %c3_i32 = arith.constant 3 : i32
      %306 = arith.addi %305, %c3_i32 : i32
      %c7_i32_123 = arith.constant 7 : i32
      %307 = arith.subi %c7_i32_123, %306 : i32
      %cst_124 = arith.constant dense<0.000000e+00> : vector<8x96xf32>
      %308 = tpu.matmul %265, %11, %cst_124 {dimension_numbers = #tpu.dot_dimension_numbers<[1], [0], [0], [1], [0, 0, 1, 1], [], []>} : vector<8x32xf32>, vector<32x96xf32>, vector<8x96xf32> -> vector<8x96xf32>
      %cst_125 = arith.constant dense<0.000000e+00> : vector<8x96xf32>
      %309 = tpu.matmul %296, %12, %cst_125 {dimension_numbers = #tpu.dot_dimension_numbers<[1], [0], [0], [1], [0, 0, 1, 1], [], []>} : vector<8x32xf32>, vector<32x96xf32>, vector<8x96xf32> -> vector<8x96xf32>
      %c8_i32_126 = arith.constant 8 : i32
      %310 = arith.muli %306, %c8_i32_126 : i32
      %311 = tpu.assume_multiple %310, 8 : i32
      %312 = arith.index_cast %311 : i32 to index
      %c0_127 = arith.constant 0 : index
      %313 = vector.load %arg21[%312, %c0_127] : memref<64x96xf32, #tpu.memory_space<vmem>>, vector<8x96xf32>
      %314 = vector.extract_strided_slice %313 {offsets = [0, 0], sizes = [8, 32], strides = [1, 1]} : vector<8x96xf32> to vector<8x32xf32>
      %315 = vector.extract_strided_slice %308 {offsets = [0, 0], sizes = [8, 32], strides = [1, 1]} : vector<8x96xf32> to vector<8x32xf32>
      %316 = arith.addf %314, %315 : vector<8x32xf32>
      %317 = arith.negf %316 : vector<8x32xf32>
      %318 = math.exp %317 : vector<8x32xf32>
      %cst_128 = arith.constant 1.000000e+00 : f32
      %319 = vector.broadcast %cst_128 : f32 to vector<8x32xf32>
      %320 = arith.addf %319, %318 : vector<8x32xf32>
      %321 = arith.divf %319, %320 : vector<8x32xf32>
      %322 = vector.extract_strided_slice %313 {offsets = [0, 32], sizes = [8, 32], strides = [1, 1]} : vector<8x96xf32> to vector<8x32xf32>
      %323 = vector.extract_strided_slice %308 {offsets = [0, 32], sizes = [8, 32], strides = [1, 1]} : vector<8x96xf32> to vector<8x32xf32>
      %324 = arith.addf %322, %323 : vector<8x32xf32>
      %325 = arith.negf %324 : vector<8x32xf32>
      %326 = math.exp %325 : vector<8x32xf32>
      %cst_129 = arith.constant 1.000000e+00 : f32
      %327 = vector.broadcast %cst_129 : f32 to vector<8x32xf32>
      %328 = arith.addf %327, %326 : vector<8x32xf32>
      %329 = arith.divf %327, %328 : vector<8x32xf32>
      %330 = vector.extract_strided_slice %313 {offsets = [0, 64], sizes = [8, 32], strides = [1, 1]} : vector<8x96xf32> to vector<8x32xf32>
      %331 = vector.extract_strided_slice %308 {offsets = [0, 64], sizes = [8, 32], strides = [1, 1]} : vector<8x96xf32> to vector<8x32xf32>
      %332 = arith.addf %331, %16 : vector<8x32xf32>
      %333 = arith.mulf %321, %332 : vector<8x32xf32>
      %334 = arith.addf %330, %333 : vector<8x32xf32>
      %335 = math.tanh %334 : vector<8x32xf32>
      %cst_130 = arith.constant 1.000000e+00 : f32
      %336 = vector.broadcast %cst_130 : f32 to vector<8x32xf32>
      %337 = arith.subf %336, %329 : vector<8x32xf32>
      %338 = arith.mulf %337, %335 : vector<8x32xf32>
      %339 = arith.mulf %329, %265 : vector<8x32xf32>
      %340 = arith.addf %338, %339 : vector<8x32xf32>
      %c8_i32_131 = arith.constant 8 : i32
      %341 = arith.muli %307, %c8_i32_131 : i32
      %342 = tpu.assume_multiple %341, 8 : i32
      %343 = arith.index_cast %342 : i32 to index
      %c0_132 = arith.constant 0 : index
      %344 = vector.load %arg22[%343, %c0_132] : memref<64x96xf32, #tpu.memory_space<vmem>>, vector<8x96xf32>
      %345 = vector.extract_strided_slice %344 {offsets = [0, 0], sizes = [8, 32], strides = [1, 1]} : vector<8x96xf32> to vector<8x32xf32>
      %346 = vector.extract_strided_slice %309 {offsets = [0, 0], sizes = [8, 32], strides = [1, 1]} : vector<8x96xf32> to vector<8x32xf32>
      %347 = arith.addf %345, %346 : vector<8x32xf32>
      %348 = arith.negf %347 : vector<8x32xf32>
      %349 = math.exp %348 : vector<8x32xf32>
      %cst_133 = arith.constant 1.000000e+00 : f32
      %350 = vector.broadcast %cst_133 : f32 to vector<8x32xf32>
      %351 = arith.addf %350, %349 : vector<8x32xf32>
      %352 = arith.divf %350, %351 : vector<8x32xf32>
      %353 = vector.extract_strided_slice %344 {offsets = [0, 32], sizes = [8, 32], strides = [1, 1]} : vector<8x96xf32> to vector<8x32xf32>
      %354 = vector.extract_strided_slice %309 {offsets = [0, 32], sizes = [8, 32], strides = [1, 1]} : vector<8x96xf32> to vector<8x32xf32>
      %355 = arith.addf %353, %354 : vector<8x32xf32>
      %356 = arith.negf %355 : vector<8x32xf32>
      %357 = math.exp %356 : vector<8x32xf32>
      %cst_134 = arith.constant 1.000000e+00 : f32
      %358 = vector.broadcast %cst_134 : f32 to vector<8x32xf32>
      %359 = arith.addf %358, %357 : vector<8x32xf32>
      %360 = arith.divf %358, %359 : vector<8x32xf32>
      %361 = vector.extract_strided_slice %344 {offsets = [0, 64], sizes = [8, 32], strides = [1, 1]} : vector<8x96xf32> to vector<8x32xf32>
      %362 = vector.extract_strided_slice %309 {offsets = [0, 64], sizes = [8, 32], strides = [1, 1]} : vector<8x96xf32> to vector<8x32xf32>
      %363 = arith.addf %362, %19 : vector<8x32xf32>
      %364 = arith.mulf %352, %363 : vector<8x32xf32>
      %365 = arith.addf %361, %364 : vector<8x32xf32>
      %366 = math.tanh %365 : vector<8x32xf32>
      %cst_135 = arith.constant 1.000000e+00 : f32
      %367 = vector.broadcast %cst_135 : f32 to vector<8x32xf32>
      %368 = arith.subf %367, %360 : vector<8x32xf32>
      %369 = arith.mulf %368, %366 : vector<8x32xf32>
      %370 = arith.mulf %360, %296 : vector<8x32xf32>
      %371 = arith.addf %369, %370 : vector<8x32xf32>
      %c8_i32_136 = arith.constant 8 : i32
      %372 = arith.muli %306, %c8_i32_136 : i32
      %373 = tpu.assume_multiple %372, 8 : i32
      %374 = arith.index_cast %373 : i32 to index
      %c0_137 = arith.constant 0 : index
      %375 = vector.load %arg23[%374, %c0_137] : memref<64x32xf32, #tpu.memory_space<vmem>>, vector<8x32xf32>
      tpu.vector_store %arg23[%374, %c0_137], %340 {strides = array<i32>} : memref<64x32xf32, #tpu.memory_space<vmem>>, vector<8x32xf32>,
      %c8_i32_138 = arith.constant 8 : i32
      %376 = arith.muli %307, %c8_i32_138 : i32
      %377 = tpu.assume_multiple %376, 8 : i32
      %378 = arith.index_cast %377 : i32 to index
      %c0_139 = arith.constant 0 : index
      %379 = vector.load %arg24[%378, %c0_139] : memref<64x32xf32, #tpu.memory_space<vmem>>, vector<8x32xf32>
      tpu.vector_store %arg24[%378, %c0_139], %371 {strides = array<i32>} : memref<64x32xf32, #tpu.memory_space<vmem>>, vector<8x32xf32>,
      scf.yield %340, %371 : vector<8x32xf32>, vector<8x32xf32>
    }
    %c2_i32_25 = arith.constant 2 : i32
    %c0_26 = arith.constant 0 : index
    %c0_27 = arith.constant 0 : index
    %29 = vector.load %arg23[%c0_26, %c0_27] : memref<64x32xf32, #tpu.memory_space<vmem>>, vector<64x32xf32>
    %c0_28 = arith.constant 0 : index
    %c0_29 = arith.constant 0 : index
    %30 = vector.load %arg8[%c0_28, %c0_29] : memref<32x96xf32, #tpu.memory_space<vmem>>, vector<32x96xf32>
    %cst_30 = arith.constant dense<0.000000e+00> : vector<64x96xf32>
    %31 = tpu.matmul %29, %30, %cst_30 {dimension_numbers = #tpu.dot_dimension_numbers<[1], [0], [0], [1], [0, 0, 1, 1], [], []>} : vector<64x32xf32>, vector<32x96xf32>, vector<64x96xf32> -> vector<64x96xf32>
    %c0_31 = arith.constant 0 : index
    %c0_32 = arith.constant 0 : index
    %32 = vector.load %arg24[%c0_31, %c0_32] : memref<64x32xf32, #tpu.memory_space<vmem>>, vector<64x32xf32>
    %c0_33 = arith.constant 0 : index
    %c0_34 = arith.constant 0 : index
    %33 = vector.load %arg9[%c0_33, %c0_34] : memref<32x96xf32, #tpu.memory_space<vmem>>, vector<32x96xf32>
    %cst_35 = arith.constant dense<0.000000e+00> : vector<64x96xf32>
    %34 = tpu.matmul %32, %33, %cst_35 {dimension_numbers = #tpu.dot_dimension_numbers<[1], [0], [0], [1], [0, 0, 1, 1], [], []>} : vector<64x32xf32>, vector<32x96xf32>, vector<64x96xf32> -> vector<64x96xf32>
    %35 = arith.addf %31, %34 : vector<64x96xf32>
    %c0_36 = arith.constant 0 : index
    %c0_37 = arith.constant 0 : index
    %36 = vector.load %arg10[%c0_36, %c0_37] : memref<1x96xf32, #tpu.memory_space<vmem>>, vector<1x96xf32>
    %37 = vector.broadcast %36 : vector<1x96xf32> to vector<64x96xf32>
    %38 = arith.addf %35, %37 : vector<64x96xf32>
    %c0_38 = arith.constant 0 : index
    %c0_39 = arith.constant 0 : index
    %39 = vector.load %arg25[%c0_38, %c0_39] : memref<64x96xf32, #tpu.memory_space<vmem>>, vector<64x96xf32>
    tpu.vector_store %arg25[%c0_38, %c0_39], %38 {strides = array<i32>} : memref<64x96xf32, #tpu.memory_space<vmem>>, vector<64x96xf32>,
    %c0_i32_40 = arith.constant 0 : i32
    %c2_i32_41 = arith.constant 2 : i32
    %40 = arith.addi %c0_i32_40, %c2_i32_41 : i32
    %c1_i32_42 = arith.constant 1 : i32
    %41 = scf.for %arg26 = %c0_i32_40 to %40 step %c1_i32_42 iter_args(%arg27 = %26) -> (vector<8x32xf32>)  : i32 {
      %c4_i32 = arith.constant 4 : i32
      %80 = arith.muli %arg26, %c4_i32 : i32
      %c0_i32_68 = arith.constant 0 : i32
      %81 = arith.addi %80, %c0_i32_68 : i32
      %cst_69 = arith.constant dense<0.000000e+00> : vector<8x96xf32>
      %82 = tpu.matmul %arg27, %13, %cst_69 {dimension_numbers = #tpu.dot_dimension_numbers<[1], [0], [0], [1], [0, 0, 1, 1], [], []>} : vector<8x32xf32>, vector<32x96xf32>, vector<8x96xf32> -> vector<8x96xf32>
      %c8_i32 = arith.constant 8 : i32
      %83 = arith.muli %81, %c8_i32 : i32
      %84 = tpu.assume_multiple %83, 8 : i32
      %85 = arith.index_cast %84 : i32 to index
      %c0_70 = arith.constant 0 : index
      %86 = vector.load %arg25[%85, %c0_70] : memref<64x96xf32, #tpu.memory_space<vmem>>, vector<8x96xf32>
      %87 = vector.extract_strided_slice %86 {offsets = [0, 0], sizes = [8, 32], strides = [1, 1]} : vector<8x96xf32> to vector<8x32xf32>
      %88 = vector.extract_strided_slice %82 {offsets = [0, 0], sizes = [8, 32], strides = [1, 1]} : vector<8x96xf32> to vector<8x32xf32>
      %89 = arith.addf %87, %88 : vector<8x32xf32>
      %90 = arith.negf %89 : vector<8x32xf32>
      %91 = math.exp %90 : vector<8x32xf32>
      %cst_71 = arith.constant 1.000000e+00 : f32
      %92 = vector.broadcast %cst_71 : f32 to vector<8x32xf32>
      %93 = arith.addf %92, %91 : vector<8x32xf32>
      %94 = arith.divf %92, %93 : vector<8x32xf32>
      %95 = vector.extract_strided_slice %86 {offsets = [0, 32], sizes = [8, 32], strides = [1, 1]} : vector<8x96xf32> to vector<8x32xf32>
      %96 = vector.extract_strided_slice %82 {offsets = [0, 32], sizes = [8, 32], strides = [1, 1]} : vector<8x96xf32> to vector<8x32xf32>
      %97 = arith.addf %95, %96 : vector<8x32xf32>
      %98 = arith.negf %97 : vector<8x32xf32>
      %99 = math.exp %98 : vector<8x32xf32>
      %cst_72 = arith.constant 1.000000e+00 : f32
      %100 = vector.broadcast %cst_72 : f32 to vector<8x32xf32>
      %101 = arith.addf %100, %99 : vector<8x32xf32>
      %102 = arith.divf %100, %101 : vector<8x32xf32>
      %103 = vector.extract_strided_slice %86 {offsets = [0, 64], sizes = [8, 32], strides = [1, 1]} : vector<8x96xf32> to vector<8x32xf32>
      %104 = vector.extract_strided_slice %82 {offsets = [0, 64], sizes = [8, 32], strides = [1, 1]} : vector<8x96xf32> to vector<8x32xf32>
      %105 = arith.addf %104, %22 : vector<8x32xf32>
      %106 = arith.mulf %94, %105 : vector<8x32xf32>
      %107 = arith.addf %103, %106 : vector<8x32xf32>
      %108 = math.tanh %107 : vector<8x32xf32>
      %cst_73 = arith.constant 1.000000e+00 : f32
      %109 = vector.broadcast %cst_73 : f32 to vector<8x32xf32>
      %110 = arith.subf %109, %102 : vector<8x32xf32>
      %111 = arith.mulf %110, %108 : vector<8x32xf32>
      %112 = arith.mulf %102, %arg27 : vector<8x32xf32>
      %113 = arith.addf %111, %112 : vector<8x32xf32>
      %c4_i32_74 = arith.constant 4 : i32
      %114 = arith.muli %arg26, %c4_i32_74 : i32
      %c1_i32_75 = arith.constant 1 : i32
      %115 = arith.addi %114, %c1_i32_75 : i32
      %cst_76 = arith.constant dense<0.000000e+00> : vector<8x96xf32>
      %116 = tpu.matmul %113, %13, %cst_76 {dimension_numbers = #tpu.dot_dimension_numbers<[1], [0], [0], [1], [0, 0, 1, 1], [], []>} : vector<8x32xf32>, vector<32x96xf32>, vector<8x96xf32> -> vector<8x96xf32>
      %c8_i32_77 = arith.constant 8 : i32
      %117 = arith.muli %115, %c8_i32_77 : i32
      %118 = tpu.assume_multiple %117, 8 : i32
      %119 = arith.index_cast %118 : i32 to index
      %c0_78 = arith.constant 0 : index
      %120 = vector.load %arg25[%119, %c0_78] : memref<64x96xf32, #tpu.memory_space<vmem>>, vector<8x96xf32>
      %121 = vector.extract_strided_slice %120 {offsets = [0, 0], sizes = [8, 32], strides = [1, 1]} : vector<8x96xf32> to vector<8x32xf32>
      %122 = vector.extract_strided_slice %116 {offsets = [0, 0], sizes = [8, 32], strides = [1, 1]} : vector<8x96xf32> to vector<8x32xf32>
      %123 = arith.addf %121, %122 : vector<8x32xf32>
      %124 = arith.negf %123 : vector<8x32xf32>
      %125 = math.exp %124 : vector<8x32xf32>
      %cst_79 = arith.constant 1.000000e+00 : f32
      %126 = vector.broadcast %cst_79 : f32 to vector<8x32xf32>
      %127 = arith.addf %126, %125 : vector<8x32xf32>
      %128 = arith.divf %126, %127 : vector<8x32xf32>
      %129 = vector.extract_strided_slice %120 {offsets = [0, 32], sizes = [8, 32], strides = [1, 1]} : vector<8x96xf32> to vector<8x32xf32>
      %130 = vector.extract_strided_slice %116 {offsets = [0, 32], sizes = [8, 32], strides = [1, 1]} : vector<8x96xf32> to vector<8x32xf32>
      %131 = arith.addf %129, %130 : vector<8x32xf32>
      %132 = arith.negf %131 : vector<8x32xf32>
      %133 = math.exp %132 : vector<8x32xf32>
      %cst_80 = arith.constant 1.000000e+00 : f32
      %134 = vector.broadcast %cst_80 : f32 to vector<8x32xf32>
      %135 = arith.addf %134, %133 : vector<8x32xf32>
      %136 = arith.divf %134, %135 : vector<8x32xf32>
      %137 = vector.extract_strided_slice %120 {offsets = [0, 64], sizes = [8, 32], strides = [1, 1]} : vector<8x96xf32> to vector<8x32xf32>
      %138 = vector.extract_strided_slice %116 {offsets = [0, 64], sizes = [8, 32], strides = [1, 1]} : vector<8x96xf32> to vector<8x32xf32>
      %139 = arith.addf %138, %22 : vector<8x32xf32>
      %140 = arith.mulf %128, %139 : vector<8x32xf32>
      %141 = arith.addf %137, %140 : vector<8x32xf32>
      %142 = math.tanh %141 : vector<8x32xf32>
      %cst_81 = arith.constant 1.000000e+00 : f32
      %143 = vector.broadcast %cst_81 : f32 to vector<8x32xf32>
      %144 = arith.subf %143, %136 : vector<8x32xf32>
      %145 = arith.mulf %144, %142 : vector<8x32xf32>
      %146 = arith.mulf %136, %113 : vector<8x32xf32>
      %147 = arith.addf %145, %146 : vector<8x32xf32>
      %c4_i32_82 = arith.constant 4 : i32
      %148 = arith.muli %arg26, %c4_i32_82 : i32
      %c2_i32_83 = arith.constant 2 : i32
      %149 = arith.addi %148, %c2_i32_83 : i32
      %cst_84 = arith.constant dense<0.000000e+00> : vector<8x96xf32>
      %150 = tpu.matmul %147, %13, %cst_84 {dimension_numbers = #tpu.dot_dimension_numbers<[1], [0], [0], [1], [0, 0, 1, 1], [], []>} : vector<8x32xf32>, vector<32x96xf32>, vector<8x96xf32> -> vector<8x96xf32>
      %c8_i32_85 = arith.constant 8 : i32
      %151 = arith.muli %149, %c8_i32_85 : i32
      %152 = tpu.assume_multiple %151, 8 : i32
      %153 = arith.index_cast %152 : i32 to index
      %c0_86 = arith.constant 0 : index
      %154 = vector.load %arg25[%153, %c0_86] : memref<64x96xf32, #tpu.memory_space<vmem>>, vector<8x96xf32>
      %155 = vector.extract_strided_slice %154 {offsets = [0, 0], sizes = [8, 32], strides = [1, 1]} : vector<8x96xf32> to vector<8x32xf32>
      %156 = vector.extract_strided_slice %150 {offsets = [0, 0], sizes = [8, 32], strides = [1, 1]} : vector<8x96xf32> to vector<8x32xf32>
      %157 = arith.addf %155, %156 : vector<8x32xf32>
      %158 = arith.negf %157 : vector<8x32xf32>
      %159 = math.exp %158 : vector<8x32xf32>
      %cst_87 = arith.constant 1.000000e+00 : f32
      %160 = vector.broadcast %cst_87 : f32 to vector<8x32xf32>
      %161 = arith.addf %160, %159 : vector<8x32xf32>
      %162 = arith.divf %160, %161 : vector<8x32xf32>
      %163 = vector.extract_strided_slice %154 {offsets = [0, 32], sizes = [8, 32], strides = [1, 1]} : vector<8x96xf32> to vector<8x32xf32>
      %164 = vector.extract_strided_slice %150 {offsets = [0, 32], sizes = [8, 32], strides = [1, 1]} : vector<8x96xf32> to vector<8x32xf32>
      %165 = arith.addf %163, %164 : vector<8x32xf32>
      %166 = arith.negf %165 : vector<8x32xf32>
      %167 = math.exp %166 : vector<8x32xf32>
      %cst_88 = arith.constant 1.000000e+00 : f32
      %168 = vector.broadcast %cst_88 : f32 to vector<8x32xf32>
      %169 = arith.addf %168, %167 : vector<8x32xf32>
      %170 = arith.divf %168, %169 : vector<8x32xf32>
      %171 = vector.extract_strided_slice %154 {offsets = [0, 64], sizes = [8, 32], strides = [1, 1]} : vector<8x96xf32> to vector<8x32xf32>
      %172 = vector.extract_strided_slice %150 {offsets = [0, 64], sizes = [8, 32], strides = [1, 1]} : vector<8x96xf32> to vector<8x32xf32>
      %173 = arith.addf %172, %22 : vector<8x32xf32>
      %174 = arith.mulf %162, %173 : vector<8x32xf32>
      %175 = arith.addf %171, %174 : vector<8x32xf32>
      %176 = math.tanh %175 : vector<8x32xf32>
      %cst_89 = arith.constant 1.000000e+00 : f32
      %177 = vector.broadcast %cst_89 : f32 to vector<8x32xf32>
      %178 = arith.subf %177, %170 : vector<8x32xf32>
      %179 = arith.mulf %178, %176 : vector<8x32xf32>
      %180 = arith.mulf %170, %147 : vector<8x32xf32>
      %181 = arith.addf %179, %180 : vector<8x32xf32>
      %c4_i32_90 = arith.constant 4 : i32
      %182 = arith.muli %arg26, %c4_i32_90 : i32
      %c3_i32 = arith.constant 3 : i32
      %183 = arith.addi %182, %c3_i32 : i32
      %cst_91 = arith.constant dense<0.000000e+00> : vector<8x96xf32>
      %184 = tpu.matmul %181, %13, %cst_91 {dimension_numbers = #tpu.dot_dimension_numbers<[1], [0], [0], [1], [0, 0, 1, 1], [], []>} : vector<8x32xf32>, vector<32x96xf32>, vector<8x96xf32> -> vector<8x96xf32>
      %c8_i32_92 = arith.constant 8 : i32
      %185 = arith.muli %183, %c8_i32_92 : i32
      %186 = tpu.assume_multiple %185, 8 : i32
      %187 = arith.index_cast %186 : i32 to index
      %c0_93 = arith.constant 0 : index
      %188 = vector.load %arg25[%187, %c0_93] : memref<64x96xf32, #tpu.memory_space<vmem>>, vector<8x96xf32>
      %189 = vector.extract_strided_slice %188 {offsets = [0, 0], sizes = [8, 32], strides = [1, 1]} : vector<8x96xf32> to vector<8x32xf32>
      %190 = vector.extract_strided_slice %184 {offsets = [0, 0], sizes = [8, 32], strides = [1, 1]} : vector<8x96xf32> to vector<8x32xf32>
      %191 = arith.addf %189, %190 : vector<8x32xf32>
      %192 = arith.negf %191 : vector<8x32xf32>
      %193 = math.exp %192 : vector<8x32xf32>
      %cst_94 = arith.constant 1.000000e+00 : f32
      %194 = vector.broadcast %cst_94 : f32 to vector<8x32xf32>
      %195 = arith.addf %194, %193 : vector<8x32xf32>
      %196 = arith.divf %194, %195 : vector<8x32xf32>
      %197 = vector.extract_strided_slice %188 {offsets = [0, 32], sizes = [8, 32], strides = [1, 1]} : vector<8x96xf32> to vector<8x32xf32>
      %198 = vector.extract_strided_slice %184 {offsets = [0, 32], sizes = [8, 32], strides = [1, 1]} : vector<8x96xf32> to vector<8x32xf32>
      %199 = arith.addf %197, %198 : vector<8x32xf32>
      %200 = arith.negf %199 : vector<8x32xf32>
      %201 = math.exp %200 : vector<8x32xf32>
      %cst_95 = arith.constant 1.000000e+00 : f32
      %202 = vector.broadcast %cst_95 : f32 to vector<8x32xf32>
      %203 = arith.addf %202, %201 : vector<8x32xf32>
      %204 = arith.divf %202, %203 : vector<8x32xf32>
      %205 = vector.extract_strided_slice %188 {offsets = [0, 64], sizes = [8, 32], strides = [1, 1]} : vector<8x96xf32> to vector<8x32xf32>
      %206 = vector.extract_strided_slice %184 {offsets = [0, 64], sizes = [8, 32], strides = [1, 1]} : vector<8x96xf32> to vector<8x32xf32>
      %207 = arith.addf %206, %22 : vector<8x32xf32>
      %208 = arith.mulf %196, %207 : vector<8x32xf32>
      %209 = arith.addf %205, %208 : vector<8x32xf32>
      %210 = math.tanh %209 : vector<8x32xf32>
      %cst_96 = arith.constant 1.000000e+00 : f32
      %211 = vector.broadcast %cst_96 : f32 to vector<8x32xf32>
      %212 = arith.subf %211, %204 : vector<8x32xf32>
      %213 = arith.mulf %212, %210 : vector<8x32xf32>
      %214 = arith.mulf %204, %181 : vector<8x32xf32>
      %215 = arith.addf %213, %214 : vector<8x32xf32>
      scf.yield %215 : vector<8x32xf32>
    }
    %c2_i32_43 = arith.constant 2 : i32
    %c56 = arith.constant 56 : index
    %c0_44 = arith.constant 0 : index
    %42 = vector.load %arg23[%c56, %c0_44] : memref<64x32xf32, #tpu.memory_space<vmem>>, vector<8x32xf32>
    %c56_45 = arith.constant 56 : index
    %c0_46 = arith.constant 0 : index
    %43 = vector.load %arg24[%c56_45, %c0_46] : memref<64x32xf32, #tpu.memory_space<vmem>>, vector<8x32xf32>
    %c0_47 = arith.constant 0 : index
    %c0_48 = arith.constant 0 : index
    %44 = vector.load %arg13[%c0_47, %c0_48] : memref<32x96xf32, #tpu.memory_space<vmem>>, vector<32x96xf32>
    %cst_49 = arith.constant dense<0.000000e+00> : vector<8x96xf32>
    %45 = tpu.matmul %42, %44, %cst_49 {dimension_numbers = #tpu.dot_dimension_numbers<[1], [0], [0], [1], [0, 0, 1, 1], [], []>} : vector<8x32xf32>, vector<32x96xf32>, vector<8x96xf32> -> vector<8x96xf32>
    %c0_50 = arith.constant 0 : index
    %c0_51 = arith.constant 0 : index
    %46 = vector.load %arg14[%c0_50, %c0_51] : memref<32x96xf32, #tpu.memory_space<vmem>>, vector<32x96xf32>
    %cst_52 = arith.constant dense<0.000000e+00> : vector<8x96xf32>
    %47 = tpu.matmul %43, %46, %cst_52 {dimension_numbers = #tpu.dot_dimension_numbers<[1], [0], [0], [1], [0, 0, 1, 1], [], []>} : vector<8x32xf32>, vector<32x96xf32>, vector<8x96xf32> -> vector<8x96xf32>
    %48 = arith.addf %45, %47 : vector<8x96xf32>
    %c0_53 = arith.constant 0 : index
    %c0_54 = arith.constant 0 : index
    %49 = vector.load %arg15[%c0_53, %c0_54] : memref<1x96xf32, #tpu.memory_space<vmem>>, vector<1x96xf32>
    %50 = vector.broadcast %49 : vector<1x96xf32> to vector<8x96xf32>
    %51 = arith.addf %48, %50 : vector<8x96xf32>
    %52 = vector.extract_strided_slice %51 {offsets = [0, 0], sizes = [8, 32], strides = [1, 1]} : vector<8x96xf32> to vector<8x32xf32>
    %53 = arith.negf %52 : vector<8x32xf32>
    %54 = math.exp %53 : vector<8x32xf32>
    %cst_55 = arith.constant 1.000000e+00 : f32
    %55 = vector.broadcast %cst_55 : f32 to vector<8x32xf32>
    %56 = arith.addf %55, %54 : vector<8x32xf32>
    %57 = arith.divf %55, %56 : vector<8x32xf32>
    %58 = vector.extract_strided_slice %51 {offsets = [0, 32], sizes = [8, 32], strides = [1, 1]} : vector<8x96xf32> to vector<8x32xf32>
    %59 = arith.negf %58 : vector<8x32xf32>
    %60 = math.exp %59 : vector<8x32xf32>
    %cst_56 = arith.constant 1.000000e+00 : f32
    %61 = vector.broadcast %cst_56 : f32 to vector<8x32xf32>
    %62 = arith.addf %61, %60 : vector<8x32xf32>
    %63 = arith.divf %61, %62 : vector<8x32xf32>
    %64 = vector.extract_strided_slice %51 {offsets = [0, 64], sizes = [8, 32], strides = [1, 1]} : vector<8x96xf32> to vector<8x32xf32>
    %65 = arith.mulf %57, %25 : vector<8x32xf32>
    %66 = arith.addf %64, %65 : vector<8x32xf32>
    %67 = math.tanh %66 : vector<8x32xf32>
    %cst_57 = arith.constant 1.000000e+00 : f32
    %68 = vector.broadcast %cst_57 : f32 to vector<8x32xf32>
    %69 = arith.subf %68, %63 : vector<8x32xf32>
    %70 = arith.mulf %69, %67 : vector<8x32xf32>
    %c0_58 = arith.constant 0 : index
    %c0_59 = arith.constant 0 : index
    %71 = vector.load %arg17[%c0_58, %c0_59] : memref<32x32xf32, #tpu.memory_space<vmem>>, vector<32x32xf32>
    %cst_60 = arith.constant dense<0.000000e+00> : vector<8x32xf32>
    %72 = tpu.matmul %41, %71, %cst_60 {dimension_numbers = #tpu.dot_dimension_numbers<[1], [0], [0], [1], [0, 0, 1, 1], [], []>} : vector<8x32xf32>, vector<32x32xf32>, vector<8x32xf32> -> vector<8x32xf32>
    %c0_61 = arith.constant 0 : index
    %c0_62 = arith.constant 0 : index
    %73 = vector.load %arg18[%c0_61, %c0_62] : memref<32x32xf32, #tpu.memory_space<vmem>>, vector<32x32xf32>
    %cst_63 = arith.constant dense<0.000000e+00> : vector<8x32xf32>
    %74 = tpu.matmul %70, %73, %cst_63 {dimension_numbers = #tpu.dot_dimension_numbers<[1], [0], [0], [1], [0, 0, 1, 1], [], []>} : vector<8x32xf32>, vector<32x32xf32>, vector<8x32xf32> -> vector<8x32xf32>
    %75 = arith.addf %72, %74 : vector<8x32xf32>
    %c0_64 = arith.constant 0 : index
    %c0_65 = arith.constant 0 : index
    %76 = vector.load %arg19[%c0_64, %c0_65] : memref<1x32xf32, #tpu.memory_space<vmem>>, vector<1x32xf32>
    %77 = vector.broadcast %76 : vector<1x32xf32> to vector<8x32xf32>
    %78 = arith.addf %75, %77 : vector<8x32xf32>
    %c0_66 = arith.constant 0 : index
    %c0_67 = arith.constant 0 : index
    %79 = vector.load %arg20[%c0_66, %c0_67] : memref<8x32xf32, #tpu.memory_space<vmem>>, vector<8x32xf32>
    tpu.vector_store %arg20[%c0_66, %c0_67], %78 {strides = array<i32>} : memref<8x32xf32, #tpu.memory_space<vmem>>, vector<8x32xf32>,
    return
  }
  func.func @transform_0(%arg0: i32) -> (i32, i32, i32) {
    %c0_i32 = arith.constant 0 : i32
    %c0_i32_0 = arith.constant 0 : i32
    %c0_i32_1 = arith.constant 0 : i32
    return %arg0, %c0_i32, %c0_i32_0 : i32, i32, i32
  }
  func.func @transform_1(%arg0: i32) -> (i32, i32) {
    %c0_i32 = arith.constant 0 : i32
    %c0_i32_0 = arith.constant 0 : i32
    %c0_i32_1 = arith.constant 0 : i32
    return %c0_i32, %c0_i32_0 : i32, i32
  }
  func.func @transform_2(%arg0: i32) -> (i32, i32) {
    %c0_i32 = arith.constant 0 : i32
    %c0_i32_0 = arith.constant 0 : i32
    %c0_i32_1 = arith.constant 0 : i32
    return %c0_i32, %c0_i32_0 : i32, i32
  }
  func.func @transform_3(%arg0: i32) -> (i32, i32) {
    %c0_i32 = arith.constant 0 : i32
    %c0_i32_0 = arith.constant 0 : i32
    %c0_i32_1 = arith.constant 0 : i32
    return %c0_i32, %c0_i32_0 : i32, i32
  }
  func.func @transform_4(%arg0: i32) -> (i32, i32) {
    %c0_i32 = arith.constant 0 : i32
    %c0_i32_0 = arith.constant 0 : i32
    %c0_i32_1 = arith.constant 0 : i32
    return %c0_i32, %c0_i32_0 : i32, i32
  }
  func.func @transform_5(%arg0: i32) -> (i32, i32) {
    %c0_i32 = arith.constant 0 : i32
    %c0_i32_0 = arith.constant 0 : i32
    %c0_i32_1 = arith.constant 0 : i32
    return %c0_i32, %c0_i32_0 : i32, i32
  }
  func.func @transform_6(%arg0: i32) -> (i32, i32) {
    %c0_i32 = arith.constant 0 : i32
    %c0_i32_0 = arith.constant 0 : i32
    %c0_i32_1 = arith.constant 0 : i32
    return %c0_i32, %c0_i32_0 : i32, i32
  }
  func.func @transform_7(%arg0: i32) -> (i32, i32) {
    %c0_i32 = arith.constant 0 : i32
    %c0_i32_0 = arith.constant 0 : i32
    %c0_i32_1 = arith.constant 0 : i32
    return %c0_i32, %c0_i32_0 : i32, i32
  }
  func.func @transform_8(%arg0: i32) -> (i32, i32) {
    %c0_i32 = arith.constant 0 : i32
    %c0_i32_0 = arith.constant 0 : i32
    %c0_i32_1 = arith.constant 0 : i32
    return %c0_i32, %c0_i32_0 : i32, i32
  }
  func.func @transform_9(%arg0: i32) -> (i32, i32) {
    %c0_i32 = arith.constant 0 : i32
    %c0_i32_0 = arith.constant 0 : i32
    %c0_i32_1 = arith.constant 0 : i32
    return %c0_i32, %c0_i32_0 : i32, i32
  }
  func.func @transform_10(%arg0: i32) -> (i32, i32) {
    %c0_i32 = arith.constant 0 : i32
    %c0_i32_0 = arith.constant 0 : i32
    %c0_i32_1 = arith.constant 0 : i32
    return %c0_i32, %c0_i32_0 : i32, i32
  }
  func.func @transform_11(%arg0: i32) -> (i32, i32) {
    %c0_i32 = arith.constant 0 : i32
    %c0_i32_0 = arith.constant 0 : i32
    %c0_i32_1 = arith.constant 0 : i32
    return %c0_i32, %c0_i32_0 : i32, i32
  }
  func.func @transform_12(%arg0: i32) -> (i32, i32) {
    %c0_i32 = arith.constant 0 : i32
    %c0_i32_0 = arith.constant 0 : i32
    %c0_i32_1 = arith.constant 0 : i32
    return %c0_i32, %c0_i32_0 : i32, i32
  }
  func.func @transform_13(%arg0: i32) -> (i32, i32) {
    %c0_i32 = arith.constant 0 : i32
    %c0_i32_0 = arith.constant 0 : i32
    %c0_i32_1 = arith.constant 0 : i32
    return %c0_i32, %c0_i32_0 : i32, i32
  }
  func.func @transform_14(%arg0: i32) -> (i32, i32) {
    %c0_i32 = arith.constant 0 : i32
    %c0_i32_0 = arith.constant 0 : i32
    %c0_i32_1 = arith.constant 0 : i32
    return %c0_i32, %c0_i32_0 : i32, i32
  }
  func.func @transform_15(%arg0: i32) -> (i32, i32) {
    %c0_i32 = arith.constant 0 : i32
    %c0_i32_0 = arith.constant 0 : i32
    %c0_i32_1 = arith.constant 0 : i32
    return %c0_i32, %c0_i32_0 : i32, i32
  }
  func.func @transform_16(%arg0: i32) -> (i32, i32) {
    %c0_i32 = arith.constant 0 : i32
    %c0_i32_0 = arith.constant 0 : i32
    %c0_i32_1 = arith.constant 0 : i32
    return %c0_i32, %c0_i32_0 : i32, i32
  }
  func.func @transform_17(%arg0: i32) -> (i32, i32) {
    %c0_i32 = arith.constant 0 : i32
    %c0_i32_0 = arith.constant 0 : i32
    %c0_i32_1 = arith.constant 0 : i32
    return %c0_i32, %c0_i32_0 : i32, i32
  }
  func.func @transform_18(%arg0: i32) -> (i32, i32) {
    %c0_i32 = arith.constant 0 : i32
    %c0_i32_0 = arith.constant 0 : i32
    %c0_i32_1 = arith.constant 0 : i32
    return %c0_i32, %c0_i32_0 : i32, i32
  }
  func.func @transform_19(%arg0: i32) -> (i32, i32) {
    %c0_i32 = arith.constant 0 : i32
    %c0_i32_0 = arith.constant 0 : i32
    return %arg0, %c0_i32 : i32, i32
  }
}

</mosaic_0001>

<llo_original>
// kernel: tpu_custom_call.1
$region0: #{tpu_custom_call.1}
  #allocation0 [shape = 'u32[]', space=smem, size = 0x4, offset = 0x4, fixed_abs, tag = 'smem constant byte address 0x4 - core index']
  #allocation1 [shape = 'u32[144,128]{1,0:T(1,128)}', space=vmem, size = 0x12000, scoped, tag = 'internal scratch']
  #allocation2 [shape = 'f32[64,96]{1,0:T(8,128)}', space=vmem, size = 0x8000, scoped, tag = 'scratch operand']
  #allocation3 [shape = 'f32[64,96]{1,0:T(8,128)}', space=vmem, size = 0x8000, scoped, tag = 'scratch operand']
  #allocation4 [shape = 'f32[64,32]{1,0:T(8,128)}', space=vmem, size = 0x8000, scoped, tag = 'scratch operand']
  #allocation5 [shape = 'f32[64,32]{1,0:T(8,128)}', space=vmem, size = 0x8000, scoped, tag = 'scratch operand']
  #allocation6 [shape = 'f32[64,96]{1,0:T(8,128)}', space=vmem, size = 0x8000, scoped, tag = 'scratch operand']
  %s0 = inlined_call_operand.hbm [shape: f32[1,64,32], index: 0, kind: input, shape index: {}]
  %s1 = inlined_call_operand.hbm [shape: f32[32,192], index: 1, kind: input, shape index: {}]
  %s2 = inlined_call_operand.hbm [shape: f32[1,192], index: 2, kind: input, shape index: {}]
  %s3 = inlined_call_operand.hbm [shape: f32[32,96], index: 3, kind: input, shape index: {}]
  %s4 = inlined_call_operand.hbm [shape: f32[1,32], index: 4, kind: input, shape index: {}]
  %s5 = inlined_call_operand.hbm [shape: f32[32,96], index: 5, kind: input, shape index: {}]
  %s6 = inlined_call_operand.hbm [shape: f32[1,32], index: 6, kind: input, shape index: {}]
  %s7 = inlined_call_operand.hbm [shape: f32[32,96], index: 7, kind: input, shape index: {}]
  %s8 = inlined_call_operand.hbm [shape: f32[32,96], index: 8, kind: input, shape index: {}]
  %s9 = inlined_call_operand.hbm [shape: f32[1,96], index: 9, kind: input, shape index: {}]
  %s10 = inlined_call_operand.hbm [shape: f32[32,96], index: 10, kind: input, shape index: {}]
  %s11 = inlined_call_operand.hbm [shape: f32[1,32], index: 11, kind: input, shape index: {}]
  %s12 = inlined_call_operand.hbm [shape: f32[32,96], index: 12, kind: input, shape index: {}]
  %s13 = inlined_call_operand.hbm [shape: f32[32,96], index: 13, kind: input, shape index: {}]
  %s14 = inlined_call_operand.hbm [shape: f32[1,96], index: 14, kind: input, shape index: {}]
  %s15 = inlined_call_operand.hbm [shape: f32[1,32], index: 15, kind: input, shape index: {}]
  %s16 = inlined_call_operand.hbm [shape: f32[32,32], index: 16, kind: input, shape index: {}]
  %s17 = inlined_call_operand.hbm [shape: f32[32,32], index: 17, kind: input, shape index: {}]
  %s18 = inlined_call_operand.hbm [shape: f32[1,32], index: 18, kind: input, shape index: {}]
  %s19 = inlined_call_operand.hbm [shape: f32[8,32], index: 19, kind: output, shape index: {}]
  %s20 = sld [smem:[#allocation0]]
  $region176: #{tpu_custom_call.1} parent=0
    _
  %s22 = ssub.s32 1, %s20
  %s23 = scalar_select 0, %s22, %s20
  $region1: #{tpu_custom_call.1} parent=0
    #allocation7 [shape = 'u8[32768]{0}', space=vmem, size = 0x8000, scoped, tag = 'input window, operand 0, single buffered']
    #allocation8 [shape = 's32[1]{0}', space=sflag, size = 0x4, scoped, tag = 'scoped memory for tpu_custom_call.1']
    #allocation9 [shape = 's32[1]{0}', space=sflag, size = 0x4, scoped, tag = 'scoped memory for tpu_custom_call.1']
    #allocation10 [shape = 'u8[32768]{0}', space=vmem, size = 0x8000, scoped, tag = 'input window, operand 1, single buffered']
    #allocation11 [shape = 's32[1]{0}', space=sflag, size = 0x4, scoped, tag = 'scoped memory for tpu_custom_call.1']
    #allocation12 [shape = 'u8[1024]{0}', space=vmem, size = 0x400, scoped, tag = 'input window, operand 2, single buffered']
    #allocation13 [shape = 'u8[16384]{0}', space=vmem, size = 0x4000, scoped, tag = 'input window, operand 3, single buffered']
    #allocation14 [shape = 's32[1]{0}', space=sflag, size = 0x4, scoped, tag = 'scoped memory for tpu_custom_call.1']
    #allocation15 [shape = 'u8[512]{0}', space=vmem, size = 0x400, scoped, tag = 'input window, operand 4, single buffered']
    #allocation16 [shape = 'u8[16384]{0}', space=vmem, size = 0x4000, scoped, tag = 'input window, operand 5, single buffered']
    #allocation17 [shape = 's32[1]{0}', space=sflag, size = 0x4, scoped, tag = 'scoped memory for tpu_custom_call.1']
    #allocation18 [shape = 'u8[512]{0}', space=vmem, size = 0x400, scoped, tag = 'input window, operand 6, single buffered']
    #allocation19 [shape = 'u8[16384]{0}', space=vmem, size = 0x4000, scoped, tag = 'input window, operand 7, single buffered']
    #allocation20 [shape = 's32[1]{0}', space=sflag, size = 0x4, scoped, tag = 'scoped memory for tpu_custom_call.1']
    #allocation21 [shape = 'u8[16384]{0}', space=vmem, size = 0x4000, scoped, tag = 'input window, operand 8, single buffered']
    #allocation22 [shape = 'u8[512]{0}', space=vmem, size = 0x400, scoped, tag = 'input window, operand 9, single buffered']
    #allocation23 [shape = 's32[1]{0}', space=sflag, size = 0x4, scoped, tag = 'scoped memory for tpu_custom_call.1']
    #allocation24 [shape = 'u8[16384]{0}', space=vmem, size = 0x4000, scoped, tag = 'input window, operand 10, single buffered']
    #allocation25 [shape = 'u8[512]{0}', space=vmem, size = 0x400, scoped, tag = 'input window, operand 11, single buffered']
    #allocation26 [shape = 's32[1]{0}', space=sflag, size = 0x4, scoped, tag = 'scoped memory for tpu_custom_call.1']
    #allocation27 [shape = 'u8[16384]{0}', space=vmem, size = 0x4000, scoped, tag = 'input window, operand 12, single buffered']
    #allocation28 [shape = 'u8[16384]{0}', space=vmem, size = 0x4000, scoped, tag = 'input window, operand 13, single buffered']
    #allocation29 [shape = 's32[1]{0}', space=sflag, size = 0x4, scoped, tag = 'scoped memory for tpu_custom_call.1']
    #allocation30 [shape = 'u8[512]{0}', space=vmem, size = 0x400, scoped, tag = 'input window, operand 14, single buffered']
    #allocation31 [shape = 'u8[512]{0}', space=vmem, size = 0x400, scoped, tag = 'input window, operand 15, single buffered']
    #allocation32 [shape = 's32[1]{0}', space=sflag, size = 0x4, scoped, tag = 'scoped memory for tpu_custom_call.1']
    #allocation33 [shape = 'u8[16384]{0}', space=vmem, size = 0x4000, scoped, tag = 'input window, operand 16, single buffered']
    #allocation34 [shape = 'u8[16384]{0}', space=vmem, size = 0x4000, scoped, tag = 'input window, operand 17, single buffered']
    #allocation35 [shape = 's32[1]{0}', space=sflag, size = 0x4, scoped, tag = 'scoped memory for tpu_custom_call.1']
    #allocation36 [shape = 'u8[512]{0}', space=vmem, size = 0x400, scoped, tag = 'input window, operand 18, single buffered']
    #allocation37 [shape = 'u8[4096]{0}', space=vmem, size = 0x1000, scoped, tag = 'output window, operand 0, single buffered']
    %24 = vsyncpa [#allocation8], 0
    %25 = vsyncpa [#allocation11], 0
    %26 = vsyncpa [#allocation14], 0
    %27 = vsyncpa [#allocation17], 0
    %28 = vsyncpa [#allocation20], 0
    %29 = vsyncpa [#allocation23], 0
    %30 = vsyncpa [#allocation26], 0
    %31 = vsyncpa [#allocation29], 0
    %32 = vsyncpa [#allocation32], 0
    %33 = vsyncpa [#allocation35], 0
    %34 = vsyncpa [#allocation9], 0
    // Predicated region
    $region2: #{tpu_custom_call.1} parent=1 // pred_check
      _
    $region3: #{tpu_custom_call.1} parent=1 // pred_check_branch
      %36 = sbr.rel (0) target = $region5
    $region4: #{tpu_custom_call.1} parent=1 // pred_region
      %s38 = ssub.s32 1024, 1024
      %39 = vsyncadd [#allocation8], %s38
      %s40 = sshll.u32 [#allocation7], 4
      %s41 = int_to_ptr.vmem [resolvable:$true] %s40
      %46 = dma.hbm_to_vmem [thread:$0]  %s0, 1024, %s41, [#allocation8], 128, 128, 8
    $region5: #{tpu_custom_call.1} parent=1 // pred_fallthru
      _
    // Predicated region
    $region6: #{tpu_custom_call.1} parent=1 // pred_check
      _
    $region7: #{tpu_custom_call.1} parent=1 // pred_check_branch
      %48 = sbr.rel (0) target = $region9
    $region8: #{tpu_custom_call.1} parent=1 // pred_region
      %s50 = ssub.s32 1024, 1024
      %51 = vsyncadd [#allocation11], %s50
      %s52 = sshll.u32 [#allocation10], 4
      %s53 = int_to_ptr.vmem [resolvable:$true] %s52
      %58 = dma.hbm_to_vmem [thread:$0]  %s1, 1024, %s53, [#allocation11], 256, 256, 16
    $region9: #{tpu_custom_call.1} parent=1 // pred_fallthru
      _
    // Predicated region
    $region10: #{tpu_custom_call.1} parent=1 // pred_check
      _
    $region11: #{tpu_custom_call.1} parent=1 // pred_check_branch
      %60 = sbr.rel (0) target = $region13
    $region12: #{tpu_custom_call.1} parent=1 // pred_region
      %s62 = ssub.s32 32, 32
      %63 = vsyncadd [#allocation11], %s62
      %s65 = sshll.u32 [#allocation12], 4
      %s66 = int_to_ptr.vmem [resolvable:$true] %s65
      %68 = dma.hbm_to_vmem [thread:$0]  %s2, 32, %s66, [#allocation11]
    $region13: #{tpu_custom_call.1} parent=1 // pred_fallthru
      _
    // Predicated region
    $region14: #{tpu_custom_call.1} parent=1 // pred_check
      _
    $region15: #{tpu_custom_call.1} parent=1 // pred_check_branch
      %70 = sbr.rel (0) target = $region17
    $region16: #{tpu_custom_call.1} parent=1 // pred_region
      %s72 = ssub.s32 512, 512
      %73 = vsyncadd [#allocation14], %s72
      %s74 = sshll.u32 [#allocation13], 4
      %s75 = int_to_ptr.vmem [resolvable:$true] %s74
      %80 = dma.hbm_to_vmem [thread:$0]  %s3, 512, %s75, [#allocation14], 128, 128, 8
    $region17: #{tpu_custom_call.1} parent=1 // pred_fallthru
      _
    // Predicated region
    $region18: #{tpu_custom_call.1} parent=1 // pred_check
      _
    $region19: #{tpu_custom_call.1} parent=1 // pred_check_branch
      %82 = sbr.rel (0) target = $region21
    $region20: #{tpu_custom_call.1} parent=1 // pred_region
      %s84 = ssub.s32 16, 16
      %85 = vsyncadd [#allocation14], %s84
      %s87 = sshll.u32 [#allocation15], 4
      %s88 = int_to_ptr.vmem [resolvable:$true] %s87
      %90 = dma.hbm_to_vmem [thread:$0]  %s4, 16, %s88, [#allocation14]
    $region21: #{tpu_custom_call.1} parent=1 // pred_fallthru
      _
    // Predicated region
    $region22: #{tpu_custom_call.1} parent=1 // pred_check
      _
    $region23: #{tpu_custom_call.1} parent=1 // pred_check_branch
      %92 = sbr.rel (0) target = $region25
    $region24: #{tpu_custom_call.1} parent=1 // pred_region
      %s94 = ssub.s32 512, 512
      %95 = vsyncadd [#allocation17], %s94
      %s96 = sshll.u32 [#allocation16], 4
      %s97 = int_to_ptr.vmem [resolvable:$true] %s96
      %102 = dma.hbm_to_vmem [thread:$0]  %s5, 512, %s97, [#allocation17], 128, 128, 8
    $region25: #{tpu_custom_call.1} parent=1 // pred_fallthru
      _
    // Predicated region
    $region26: #{tpu_custom_call.1} parent=1 // pred_check
      _
    $region27: #{tpu_custom_call.1} parent=1 // pred_check_branch
      %104 = sbr.rel (0) target = $region29
    $region28: #{tpu_custom_call.1} parent=1 // pred_region
      %s106 = ssub.s32 16, 16
      %107 = vsyncadd [#allocation17], %s106
      %s109 = sshll.u32 [#allocation18], 4
      %s110 = int_to_ptr.vmem [resolvable:$true] %s109
      %112 = dma.hbm_to_vmem [thread:$0]  %s6, 16, %s110, [#allocation17]
    $region29: #{tpu_custom_call.1} parent=1 // pred_fallthru
      _
    // Predicated region
    $region30: #{tpu_custom_call.1} parent=1 // pred_check
      _
    $region31: #{tpu_custom_call.1} parent=1 // pred_check_branch
      %114 = sbr.rel (0) target = $region33
    $region32: #{tpu_custom_call.1} parent=1 // pred_region
      %s116 = ssub.s32 512, 512
      %117 = vsyncadd [#allocation20], %s116
      %s118 = sshll.u32 [#allocation19], 4
      %s119 = int_to_ptr.vmem [resolvable:$true] %s118
      %124 = dma.hbm_to_vmem [thread:$0]  %s7, 512, %s119, [#allocation20], 128, 128, 8
    $region33: #{tpu_custom_call.1} parent=1 // pred_fallthru
      _
    // Predicated region
    $region34: #{tpu_custom_call.1} parent=1 // pred_check
      _
    $region35: #{tpu_custom_call.1} parent=1 // pred_check_branch
      %126 = sbr.rel (0) target = $region37
    $region36: #{tpu_custom_call.1} parent=1 // pred_region
      %s128 = ssub.s32 512, 512
      %129 = vsyncadd [#allocation20], %s128
      %s130 = sshll.u32 [#allocation21], 4
      %s131 = int_to_ptr.vmem [resolvable:$true] %s130
      %136 = dma.hbm_to_vmem [thread:$0]  %s8, 512, %s131, [#allocation20], 128, 128, 8
    $region37: #{tpu_custom_call.1} parent=1 // pred_fallthru
      _
    // Predicated region
    $region38: #{tpu_custom_call.1} parent=1 // pred_check
      _
    $region39: #{tpu_custom_call.1} parent=1 // pred_check_branch
      %138 = sbr.rel (0) target = $region41
    $region40: #{tpu_custom_call.1} parent=1 // pred_region
      %s140 = ssub.s32 16, 16
      %141 = vsyncadd [#allocation23], %s140
      %s143 = sshll.u32 [#allocation22], 4
      %s144 = int_to_ptr.vmem [resolvable:$true] %s143
      %146 = dma.hbm_to_vmem [thread:$0]  %s9, 16, %s144, [#allocation23]
    $region41: #{tpu_custom_call.1} parent=1 // pred_fallthru
      _
    // Predicated region
    $region42: #{tpu_custom_call.1} parent=1 // pred_check
      _
    $region43: #{tpu_custom_call.1} parent=1 // pred_check_branch
      %148 = sbr.rel (0) target = $region45
    $region44: #{tpu_custom_call.1} parent=1 // pred_region
      %s150 = ssub.s32 512, 512
      %151 = vsyncadd [#allocation23], %s150
      %s152 = sshll.u32 [#allocation24], 4
      %s153 = int_to_ptr.vmem [resolvable:$true] %s152
      %158 = dma.hbm_to_vmem [thread:$0]  %s10, 512, %s153, [#allocation23], 128, 128, 8
    $region45: #{tpu_custom_call.1} parent=1 // pred_fallthru
      _
    // Predicated region
    $region46: #{tpu_custom_call.1} parent=1 // pred_check
      _
    $region47: #{tpu_custom_call.1} parent=1 // pred_check_branch
      %160 = sbr.rel (0) target = $region49
    $region48: #{tpu_custom_call.1} parent=1 // pred_region
      %s162 = ssub.s32 16, 16
      %163 = vsyncadd [#allocation26], %s162
      %s165 = sshll.u32 [#allocation25], 4
      %s166 = int_to_ptr.vmem [resolvable:$true] %s165
      %168 = dma.hbm_to_vmem [thread:$0]  %s11, 16, %s166, [#allocation26]
    $region49: #{tpu_custom_call.1} parent=1 // pred_fallthru
      _
    // Predicated region
    $region50: #{tpu_custom_call.1} parent=1 // pred_check
      _
    $region51: #{tpu_custom_call.1} parent=1 // pred_check_branch
      %170 = sbr.rel (0) target = $region53
    $region52: #{tpu_custom_call.1} parent=1 // pred_region
      %s172 = ssub.s32 512, 512
      %173 = vsyncadd [#allocation26], %s172
      %s174 = sshll.u32 [#allocation27], 4
      %s175 = int_to_ptr.vmem [resolvable:$true] %s174
      %180 = dma.hbm_to_vmem [thread:$0]  %s12, 512, %s175, [#allocation26], 128, 128, 8
    $region53: #{tpu_custom_call.1} parent=1 // pred_fallthru
      _
    // Predicated region
    $region54: #{tpu_custom_call.1} parent=1 // pred_check
      _
    $region55: #{tpu_custom_call.1} parent=1 // pred_check_branch
      %182 = sbr.rel (0) target = $region57
    $region56: #{tpu_custom_call.1} parent=1 // pred_region
      %s184 = ssub.s32 512, 512
      %185 = vsyncadd [#allocation29], %s184
      %s186 = sshll.u32 [#allocation28], 4
      %s187 = int_to_ptr.vmem [resolvable:$true] %s186
      %192 = dma.hbm_to_vmem [thread:$0]  %s13, 512, %s187, [#allocation29], 128, 128, 8
    $region57: #{tpu_custom_call.1} parent=1 // pred_fallthru
      _
    // Predicated region
    $region58: #{tpu_custom_call.1} parent=1 // pred_check
      _
    $region59: #{tpu_custom_call.1} parent=1 // pred_check_branch
      %194 = sbr.rel (0) target = $region61
    $region60: #{tpu_custom_call.1} parent=1 // pred_region
      %s196 = ssub.s32 16, 16
      %197 = vsyncadd [#allocation29], %s196
      %s199 = sshll.u32 [#allocation30], 4
      %s200 = int_to_ptr.vmem [resolvable:$true] %s199
      %202 = dma.hbm_to_vmem [thread:$0]  %s14, 16, %s200, [#allocation29]
    $region61: #{tpu_custom_call.1} parent=1 // pred_fallthru
      _
    // Predicated region
    $region62: #{tpu_custom_call.1} parent=1 // pred_check
      _
    $region63: #{tpu_custom_call.1} parent=1 // pred_check_branch
      %204 = sbr.rel (0) target = $region65
    $region64: #{tpu_custom_call.1} parent=1 // pred_region
      %s206 = ssub.s32 16, 16
      %207 = vsyncadd [#allocation32], %s206
      %s209 = sshll.u32 [#allocation31], 4
      %s210 = int_to_ptr.vmem [resolvable:$true] %s209
      %212 = dma.hbm_to_vmem [thread:$0]  %s15, 16, %s210, [#allocation32]
    $region65: #{tpu_custom_call.1} parent=1 // pred_fallthru
      _
    // Predicated region
    $region66: #{tpu_custom_call.1} parent=1 // pred_check
      _
    $region67: #{tpu_custom_call.1} parent=1 // pred_check_branch
      %214 = sbr.rel (0) target = $region69
    $region68: #{tpu_custom_call.1} parent=1 // pred_region
      %s216 = ssub.s32 512, 512
      %217 = vsyncadd [#allocation32], %s216
      %s218 = sshll.u32 [#allocation33], 4
      %s219 = int_to_ptr.vmem [resolvable:$true] %s218
      %224 = dma.hbm_to_vmem [thread:$0]  %s16, 512, %s219, [#allocation32], 128, 128, 8
    $region69: #{tpu_custom_call.1} parent=1 // pred_fallthru
      _
    // Predicated region
    $region70: #{tpu_custom_call.1} parent=1 // pred_check
      _
    $region71: #{tpu_custom_call.1} parent=1 // pred_check_branch
      %226 = sbr.rel (0) target = $region73
    $region72: #{tpu_custom_call.1} parent=1 // pred_region
      %s228 = ssub.s32 512, 512
      %229 = vsyncadd [#allocation35], %s228
      %s230 = sshll.u32 [#allocation34], 4
      %s231 = int_to_ptr.vmem [resolvable:$true] %s230
      %236 = dma.hbm_to_vmem [thread:$0]  %s17, 512, %s231, [#allocation35], 128, 128, 8
    $region73: #{tpu_custom_call.1} parent=1 // pred_fallthru
      _
    // Predicated region
    $region74: #{tpu_custom_call.1} parent=1 // pred_check
      _
    $region75: #{tpu_custom_call.1} parent=1 // pred_check_branch
      %238 = sbr.rel (0) target = $region77
    $region76: #{tpu_custom_call.1} parent=1 // pred_region
      %s240 = ssub.s32 16, 16
      %241 = vsyncadd [#allocation35], %s240
      %s243 = sshll.u32 [#allocation36], 4
      %s244 = int_to_ptr.vmem [resolvable:$true] %s243
      %246 = dma.hbm_to_vmem [thread:$0]  %s18, 16, %s244, [#allocation35]
    $region77: #{tpu_custom_call.1} parent=1 // pred_fallthru
      _
    // Predicated region
    $region78: #{tpu_custom_call.1} parent=1 // pred_check
      _
    $region79: #{tpu_custom_call.1} parent=1 // pred_check_branch
      %248 = sbr.rel (0) target = $region81
    $region80: #{tpu_custom_call.1} parent=1 // pred_region
      %249 = dma.done [#allocation8], 1024
    $region81: #{tpu_custom_call.1} parent=1 // pred_fallthru
      _
    // Predicated region
    $region82: #{tpu_custom_call.1} parent=1 // pred_check
      _
    $region83: #{tpu_custom_call.1} parent=1 // pred_check_branch
      %251 = sbr.rel (0) target = $region85
    $region84: #{tpu_custom_call.1} parent=1 // pred_region
      %252 = dma.done [#allocation11], 1024
    $region85: #{tpu_custom_call.1} parent=1 // pred_fallthru
      _
    // Predicated region
    $region86: #{tpu_custom_call.1} parent=1 // pred_check
      _
    $region87: #{tpu_custom_call.1} parent=1 // pred_check_branch
      %254 = sbr.rel (0) target = $region89
    $region88: #{tpu_custom_call.1} parent=1 // pred_region
      %255 = dma.done [#allocation11], 32
    $region89: #{tpu_custom_call.1} parent=1 // pred_fallthru
      _
    // Predicated region
    $region90: #{tpu_custom_call.1} parent=1 // pred_check
      _
    $region91: #{tpu_custom_call.1} parent=1 // pred_check_branch
      %257 = sbr.rel (0) target = $region93
    $region92: #{tpu_custom_call.1} parent=1 // pred_region
      %258 = dma.done [#allocation14], 512
    $region93: #{tpu_custom_call.1} parent=1 // pred_fallthru
      _
    // Predicated region
    $region94: #{tpu_custom_call.1} parent=1 // pred_check
      _
    $region95: #{tpu_custom_call.1} parent=1 // pred_check_branch
      %260 = sbr.rel (0) target = $region97
    $region96: #{tpu_custom_call.1} parent=1 // pred_region
      %261 = dma.done [#allocation14], 16
    $region97: #{tpu_custom_call.1} parent=1 // pred_fallthru
      _
    // Predicated region
    $region98: #{tpu_custom_call.1} parent=1 // pred_check
      _
    $region99: #{tpu_custom_call.1} parent=1 // pred_check_branch
      %263 = sbr.rel (0) target = $region101
    $region100: #{tpu_custom_call.1} parent=1 // pred_region
      %264 = dma.done [#allocation17], 512
    $region101: #{tpu_custom_call.1} parent=1 // pred_fallthru
      _
    // Predicated region
    $region102: #{tpu_custom_call.1} parent=1 // pred_check
      _
    $region103: #{tpu_custom_call.1} parent=1 // pred_check_branch
      %266 = sbr.rel (0) target = $region105
    $region104: #{tpu_custom_call.1} parent=1 // pred_region
      %267 = dma.done [#allocation17], 16
    $region105: #{tpu_custom_call.1} parent=1 // pred_fallthru
      _
    // Predicated region
    $region106: #{tpu_custom_call.1} parent=1 // pred_check
      _
    $region107: #{tpu_custom_call.1} parent=1 // pred_check_branch
      %269 = sbr.rel (0) target = $region109
    $region108: #{tpu_custom_call.1} parent=1 // pred_region
      %270 = dma.done [#allocation20], 512
    $region109: #{tpu_custom_call.1} parent=1 // pred_fallthru
      _
    // Predicated region
    $region110: #{tpu_custom_call.1} parent=1 // pred_check
      _
    $region111: #{tpu_custom_call.1} parent=1 // pred_check_branch
      %272 = sbr.rel (0) target = $region113
    $region112: #{tpu_custom_call.1} parent=1 // pred_region
      %273 = dma.done [#allocation20], 512
    $region113: #{tpu_custom_call.1} parent=1 // pred_fallthru
      _
    // Predicated region
    $region114: #{tpu_custom_call.1} parent=1 // pred_check
      _
    $region115: #{tpu_custom_call.1} parent=1 // pred_check_branch
      %275 = sbr.rel (0) target = $region117
    $region116: #{tpu_custom_call.1} parent=1 // pred_region
      %276 = dma.done [#allocation23], 16
    $region117: #{tpu_custom_call.1} parent=1 // pred_fallthru
      _
    // Predicated region
    $region118: #{tpu_custom_call.1} parent=1 // pred_check
      _
    $region119: #{tpu_custom_call.1} parent=1 // pred_check_branch
      %278 = sbr.rel (0) target = $region121
    $region120: #{tpu_custom_call.1} parent=1 // pred_region
      %279 = dma.done [#allocation23], 512
    $region121: #{tpu_custom_call.1} parent=1 // pred_fallthru
      _
    // Predicated region
    $region122: #{tpu_custom_call.1} parent=1 // pred_check
      _
    $region123: #{tpu_custom_call.1} parent=1 // pred_check_branch
      %281 = sbr.rel (0) target = $region125
    $region124: #{tpu_custom_call.1} parent=1 // pred_region
      %282 = dma.done [#allocation26], 16
    $region125: #{tpu_custom_call.1} parent=1 // pred_fallthru
      _
    // Predicated region
    $region126: #{tpu_custom_call.1} parent=1 // pred_check
      _
    $region127: #{tpu_custom_call.1} parent=1 // pred_check_branch
      %284 = sbr.rel (0) target = $region129
    $region128: #{tpu_custom_call.1} parent=1 // pred_region
      %285 = dma.done [#allocation26], 512
    $region129: #{tpu_custom_call.1} parent=1 // pred_fallthru
      _
    // Predicated region
    $region130: #{tpu_custom_call.1} parent=1 // pred_check
      _
    $region131: #{tpu_custom_call.1} parent=1 // pred_check_branch
      %287 = sbr.rel (0) target = $region133
    $region132: #{tpu_custom_call.1} parent=1 // pred_region
      %288 = dma.done [#allocation29], 512
    $region133: #{tpu_custom_call.1} parent=1 // pred_fallthru
      _
    // Predicated region
    $region134: #{tpu_custom_call.1} parent=1 // pred_check
      _
    $region135: #{tpu_custom_call.1} parent=1 // pred_check_branch
      %290 = sbr.rel (0) target = $region137
    $region136: #{tpu_custom_call.1} parent=1 // pred_region
      %291 = dma.done [#allocation29], 16
    $region137: #{tpu_custom_call.1} parent=1 // pred_fallthru
      _
    // Predicated region
    $region138: #{tpu_custom_call.1} parent=1 // pred_check
      _
    $region139: #{tpu_custom_call.1} parent=1 // pred_check_branch
      %293 = sbr.rel (0) target = $region141
    $region140: #{tpu_custom_call.1} parent=1 // pred_region
      %294 = dma.done [#allocation32], 16
    $region141: #{tpu_custom_call.1} parent=1 // pred_fallthru
      _
    // Predicated region
    $region142: #{tpu_custom_call.1} parent=1 // pred_check
      _
    $region143: #{tpu_custom_call.1} parent=1 // pred_check_branch
      %296 = sbr.rel (0) target = $region145
    $region144: #{tpu_custom_call.1} parent=1 // pred_region
      %297 = dma.done [#allocation32], 512
    $region145: #{tpu_custom_call.1} parent=1 // pred_fallthru
      _
    // Predicated region
    $region146: #{tpu_custom_call.1} parent=1 // pred_check
      _
    $region147: #{tpu_custom_call.1} parent=1 // pred_check_branch
      %299 = sbr.rel (0) target = $region149
    $region148: #{tpu_custom_call.1} parent=1 // pred_region
      %300 = dma.done [#allocation35], 512
    $region149: #{tpu_custom_call.1} parent=1 // pred_fallthru
      _
    // Predicated region
    $region150: #{tpu_custom_call.1} parent=1 // pred_check
      _
    $region151: #{tpu_custom_call.1} parent=1 // pred_check_branch
      %302 = sbr.rel (0) target = $region153
    $region152: #{tpu_custom_call.1} parent=1 // pred_region
      %303 = dma.done [#allocation35], 16
    $region153: #{tpu_custom_call.1} parent=1 // pred_fallthru
      _
    %v304 = vld [vmem:[#allocation7] sm:$0xff]
    %v305 = vld [vmem:[#allocation7 + $0x8] sm:$0xff]
    %v306 = vld [vmem:[#allocation7 + $0x10] sm:$0xff]
    %v307 = vld [vmem:[#allocation7 + $0x18] sm:$0xff]
    %v308 = vld [vmem:[#allocation7 + $0x20] sm:$0xff]
    %v309 = vld [vmem:[#allocation7 + $0x28] sm:$0xff]
    %v310 = vld [vmem:[#allocation7 + $0x30] sm:$0xff]
    %v311 = vld [vmem:[#allocation7 + $0x38] sm:$0xff]
    %v312 = vld [vmem:[#allocation10] sm:$0xff]
    %v313 = vld [vmem:[#allocation10 + $0x8] sm:$0xff]
    %v314 = vld [vmem:[#allocation10 + $0x10] sm:$0xff]
    %v315 = vld [vmem:[#allocation10 + $0x18] sm:$0xff]
    %v316 = vld [vmem:[#allocation10 + $0x20] sm:$0xff]
    %v317 = vld [vmem:[#allocation10 + $0x28] sm:$0xff]
    %v318 = vld [vmem:[#allocation10 + $0x30] sm:$0xff]
    %v319 = vld [vmem:[#allocation10 + $0x38] sm:$0xff]
    %v320 = vld [vmem:[#allocation12] sm:$0x3]
    %v322 = vlaneseq
    %v323 = vshrl.u32 %v322, 7
    %v324 = vsub.s32 0, %v323
    %v325 = vrot.slane %v320, %v324
    %v326 = vlaneseq
    %v327 = vshrl.u32 %v326, 7
    %v328 = vsub.s32 1, %v327
    %v329 = vrot.slane %v320, %v328
    %vm332 = vcmask 261120
    %v334 = vsel %vm332, %v304, 0
    %v337 = vsel %vm332, %v305, 0
    %v340 = vsel %vm332, %v306, 0
    %v343 = vsel %vm332, %v307, 0
    %v346 = vsel %vm332, %v308, 0
    %v349 = vsel %vm332, %v309, 0
    %v352 = vsel %vm332, %v310, 0
    %v355 = vsel %vm332, %v311, 0
    %357 = vmatprep.subr.mxu0 %v313
    %358 = vmatpush1.msra.mxu0 %v312
    %359 = vmatprep.subr.mxu0 %v315
    %360 = vmatpush1.msra.mxu0 %v314
    %361 = vmatprep.subr.mxu0 %v317
    %362 = vmatpush1.msra.mxu0 %v316
    %363 = vmatprep.subr.mxu0 %v319
    %364 = vmatpush1.msra.mxu0 %v318
    %365 = vmatprep.subr.mxu0 0.0
    %366 = vmatpush1.msra.mxu0 0.0
    %367 = vmatprep.subr.mxu0 0.0
    %368 = vmatpush1.msra.mxu0 0.0
    %369 = vmatprep.subr.mxu0 0.0
    %370 = vmatpush1.msra.mxu0 0.0
    %371 = vmatprep.subr.mxu0 0.0
    %372 = vmatpush1.msra.mxu0 0.0
    %373 = vmatprep.subr.mxu0 0.0
    %374 = vmatpush1.msra.mxu0 0.0
    %375 = vmatprep.subr.mxu0 0.0
    %376 = vmatpush1.msra.mxu0 0.0
    %377 = vmatprep.subr.mxu0 0.0
    %378 = vmatpush1.msra.mxu0 0.0
    %379 = vmatprep.subr.mxu0 0.0
    %380 = vmatpush1.msra.mxu0 0.0
    %381 = vmatprep.subr.mxu0 0.0
    %382 = vmatpush1.msra.mxu0 0.0
    %383 = vmatprep.subr.mxu0 0.0
    %384 = vmatpush1.msra.mxu0 0.0
    %385 = vmatprep.subr.mxu0 0.0
    %386 = vmatpush1.msra.mxu0 0.0
    %387 = vmatprep.subr.mxu0 0.0
    %388 = vmatpush1.msra.mxu0 0.0
    %389 = vmatprep.subr.mxu0 0.0
    %390 = vmatpush1.msra.mxu0 0.0
    %391 = vmatprep.subr.mxu0 0.0
    %392 = vmatpush1.msra.mxu0 0.0
    %393 = vmatprep.subr.mxu0 0.0
    %394 = vmatpush1.msra.mxu0 0.0
    %395 = vmatprep.subr.mxu0 0.0
    %396 = vmatpush1.msra.mxu0 0.0
    %397 = vmatprep.subr.mxu0 0.0
    %398 = vmatpush1.msra.mxu0 0.0
    %399 = vmatprep.subr.mxu0 0.0
    %400 = vmatpush1.msra.mxu0 0.0
    %401 = vmatprep.subr.mxu0 0.0
    %402 = vmatpush1.msra.mxu0 0.0
    %403 = vmatprep.subr.mxu0 0.0
    %404 = vmatpush1.msra.mxu0 0.0
    %405 = vmatprep.subr.mxu0 0.0
    %406 = vmatpush1.msra.mxu0 0.0
    %407 = vmatprep.subr.mxu0 0.0
    %408 = vmatpush1.msra.mxu0 0.0
    %409 = vmatprep.subr.mxu0 0.0
    %410 = vmatpush1.msra.mxu0 0.0
    %411 = vmatprep.subr.mxu0 0.0
    %412 = vmatpush1.msra.mxu0 0.0
    %413 = vmatprep.subr.mxu0 0.0
    %414 = vmatpush1.msra.mxu0 0.0
    %415 = vmatprep.subr.mxu0 0.0
    %416 = vmatpush1.msra.mxu0 0.0
    %417 = vmatprep.subr.mxu0 0.0
    %418 = vmatpush1.msra.mxu0 0.0
    %419 = vmatprep.subr.mxu0 0.0
    %420 = vmatpush1.msra.mxu0 0.0
    %421 = vmatprep.mubr.f32.mxu0 0.0
    %422 = vmatmul.mubr.f32.gmra.mrb[0].mxu0 %v334
    %v423 = vpop.f32.mrb[0].mxu0
    %v424 = vadd.f32 %v325, %v423
    %v425 = vpop.f32.mrb[0].mxu0
    %v426 = vadd.f32 %v329, %v425
    %427 = vmatprep.mubr.f32.mxu0 0.0
    %428 = vmatmul.mubr.f32.gmra.mrb[0].mxu0 %v337
    %v429 = vpop.f32.mrb[0].mxu0
    %v430 = vadd.f32 %v325, %v429
    %v431 = vpop.f32.mrb[0].mxu0
    %v432 = vadd.f32 %v329, %v431
    %433 = vmatprep.mubr.f32.mxu0 0.0
    %434 = vmatmul.mubr.f32.gmra.mrb[0].mxu0 %v340
    %v435 = vpop.f32.mrb[0].mxu0
    %v436 = vadd.f32 %v325, %v435
    %v437 = vpop.f32.mrb[0].mxu0
    %v438 = vadd.f32 %v329, %v437
    %439 = vmatprep.mubr.f32.mxu0 0.0
    %440 = vmatmul.mubr.f32.gmra.mrb[0].mxu0 %v343
    %v441 = vpop.f32.mrb[0].mxu0
    %v442 = vadd.f32 %v325, %v441
    %v443 = vpop.f32.mrb[0].mxu0
    %v444 = vadd.f32 %v329, %v443
    %445 = vmatprep.mubr.f32.mxu0 0.0
    %446 = vmatmul.mubr.f32.gmra.mrb[0].mxu0 %v346
    %v447 = vpop.f32.mrb[0].mxu0
    %v448 = vadd.f32 %v325, %v447
    %v449 = vpop.f32.mrb[0].mxu0
    %v450 = vadd.f32 %v329, %v449
    %451 = vmatprep.mubr.f32.mxu0 0.0
    %452 = vmatmul.mubr.f32.gmra.mrb[0].mxu0 %v349
    %v453 = vpop.f32.mrb[0].mxu0
    %v454 = vadd.f32 %v325, %v453
    %v455 = vpop.f32.mrb[0].mxu0
    %v456 = vadd.f32 %v329, %v455
    %457 = vmatprep.mubr.f32.mxu0 0.0
    %458 = vmatmul.mubr.f32.gmra.mrb[0].mxu0 %v352
    %v459 = vpop.f32.mrb[0].mxu0
    %v460 = vadd.f32 %v325, %v459
    %v461 = vpop.f32.mrb[0].mxu0
    %v462 = vadd.f32 %v329, %v461
    %463 = vmatprep.mubr.f32.mxu0 0.0
    %464 = vmatmul.mubr.f32.gmra.mrb[0].mxu0 %v355
    %v465 = vpop.f32.mrb[0].mxu0
    %v466 = vadd.f32 %v325, %v465
    %v467 = vpop.f32.mrb[0].mxu0
    %v468 = vadd.f32 %v329, %v467
    %469 = vdwg.mxu0
    %vm470 = vcmask 785408
    %471 = vst.msk [vmem:[#allocation2] sm:$0xff] %vm470, %v424
    %472 = vst.msk [vmem:[#allocation2 + $0x8] sm:$0xff] %vm470, %v430
    %473 = vst.msk [vmem:[#allocation2 + $0x10] sm:$0xff] %vm470, %v436
    %474 = vst.msk [vmem:[#allocation2 + $0x18] sm:$0xff] %vm470, %v442
    %475 = vst.msk [vmem:[#allocation2 + $0x20] sm:$0xff] %vm470, %v448
    %476 = vst.msk [vmem:[#allocation2 + $0x28] sm:$0xff] %vm470, %v454
    %477 = vst.msk [vmem:[#allocation2 + $0x30] sm:$0xff] %vm470, %v460
    %478 = vst.msk [vmem:[#allocation2 + $0x38] sm:$0xff] %vm470, %v466
    %495 = vrot.lane.b32.xlu0 %v424, 32
    %v496 = vpop.permute.xlu0 %495
    %497 = vrot.lane.b32.xlu0 %v426, 32
    %v498 = vpop.permute.xlu0 %497
    %499 = vrot.lane.b32.xlu0 %v430, 32
    %v500 = vpop.permute.xlu0 %499
    %501 = vrot.lane.b32.xlu0 %v432, 32
    %v502 = vpop.permute.xlu0 %501
    %503 = vrot.lane.b32.xlu0 %v436, 32
    %v504 = vpop.permute.xlu0 %503
    %505 = vrot.lane.b32.xlu0 %v438, 32
    %v506 = vpop.permute.xlu0 %505
    %507 = vrot.lane.b32.xlu0 %v442, 32
    %v508 = vpop.permute.xlu0 %507
    %509 = vrot.lane.b32.xlu0 %v444, 32
    %v510 = vpop.permute.xlu0 %509
    %511 = vrot.lane.b32.xlu0 %v448, 32
    %v512 = vpop.permute.xlu0 %511
    %513 = vrot.lane.b32.xlu0 %v450, 32
    %v514 = vpop.permute.xlu0 %513
    %515 = vrot.lane.b32.xlu0 %v454, 32
    %v516 = vpop.permute.xlu0 %515
    %517 = vrot.lane.b32.xlu0 %v456, 32
    %v518 = vpop.permute.xlu0 %517
    %519 = vrot.lane.b32.xlu0 %v460, 32
    %v520 = vpop.permute.xlu0 %519
    %521 = vrot.lane.b32.xlu0 %v462, 32
    %v522 = vpop.permute.xlu0 %521
    %523 = vrot.lane.b32.xlu0 %v466, 32
    %v524 = vpop.permute.xlu0 %523
    %525 = vrot.lane.b32.xlu0 %v468, 32
    %v526 = vpop.permute.xlu0 %525
    %v527 = vsel %vm332, %v496, %v498
    %v528 = vsel %vm332, %v500, %v502
    %v529 = vsel %vm332, %v504, %v506
    %v530 = vsel %vm332, %v508, %v510
    %v531 = vsel %vm332, %v512, %v514
    %v532 = vsel %vm332, %v516, %v518
    %v533 = vsel %vm332, %v520, %v522
    %v534 = vsel %vm332, %v524, %v526
    %543 = vst.msk [vmem:[#allocation3] sm:$0xff] %vm470, %v527
    %544 = vst.msk [vmem:[#allocation3 + $0x8] sm:$0xff] %vm470, %v528
    %545 = vst.msk [vmem:[#allocation3 + $0x10] sm:$0xff] %vm470, %v529
    %546 = vst.msk [vmem:[#allocation3 + $0x18] sm:$0xff] %vm470, %v530
    %547 = vst.msk [vmem:[#allocation3 + $0x20] sm:$0xff] %vm470, %v531
    %548 = vst.msk [vmem:[#allocation3 + $0x28] sm:$0xff] %vm470, %v532
    %549 = vst.msk [vmem:[#allocation3 + $0x30] sm:$0xff] %vm470, %v533
    %550 = vst.msk [vmem:[#allocation3 + $0x38] sm:$0xff] %vm470, %v534
    %v551 = vld [vmem:[#allocation13] sm:$0xff]
    %v552 = vld [vmem:[#allocation13 + $0x8] sm:$0xff]
    %v553 = vld [vmem:[#allocation13 + $0x10] sm:$0xff]
    %v554 = vld [vmem:[#allocation13 + $0x18] sm:$0xff]
    %v555 = vld [vmem:[#allocation16] sm:$0xff]
    %v556 = vld [vmem:[#allocation16 + $0x8] sm:$0xff]
    %v557 = vld [vmem:[#allocation16 + $0x10] sm:$0xff]
    %v558 = vld [vmem:[#allocation16 + $0x18] sm:$0xff]
    %v559 = vld [vmem:[#allocation24] sm:$0xff]
    %v560 = vld [vmem:[#allocation24 + $0x8] sm:$0xff]
    %v561 = vld [vmem:[#allocation24 + $0x10] sm:$0xff]
    %v562 = vld [vmem:[#allocation24 + $0x18] sm:$0xff]
    %v563 = vld [vmem:[#allocation15] sm:$0x1]
    %v565 = vlaneseq
    %v566 = vshrl.u32 %v565, 7
    %v567 = vsub.s32 0, %v566
    %v568 = vrot.slane %v563, %v567
    %v569 = vld [vmem:[#allocation18] sm:$0x1]
    %v571 = vlaneseq
    %v572 = vshrl.u32 %v571, 7
    %v573 = vsub.s32 0, %v572
    %v574 = vrot.slane %v569, %v573
    %v575 = vld [vmem:[#allocation25] sm:$0x1]
    %v577 = vlaneseq
    %v578 = vshrl.u32 %v577, 7
    %v579 = vsub.s32 0, %v578
    %v580 = vrot.slane %v575, %v579
    %v581 = vld [vmem:[#allocation31] sm:$0x1]
    %v583 = vlaneseq
    %v584 = vshrl.u32 %v583, 7
    %v585 = vsub.s32 0, %v584
    %v586 = vrot.slane %v581, %v585
    loop: start=0, step=1, limit=2
    $region154: #{tpu_custom_call.1} parent=1 // loop_pre_header
      _
    $region155: #{tpu_custom_call.1} parent=1 // loop_header
      %s589 = sphi 0, %s593
      %p590 = scmp.ge.s32.totalorder %s589, 2
      %v594 = vphi 0.0, %v1437
      %v595 = vphi 0.0, %v1467
    $region156: #{tpu_custom_call.1} parent=1 // loop_header_branch
      %592 = sbr.rel (%p590) target = $region160
    $region157: #{tpu_custom_call.1} parent=1 // loop_body
      %s596 = smul.u32 %s589, 4
      %s597 = ssub.s32 7, %s596
      %599 = vrot.lane.b32.xlu0 %v594, 96
      %v600 = vpop.permute.xlu0 %599
      %v601 = vsel %vm332, %v600, 0
      %603 = vmatprep.subr.mxu0 0.0
      %604 = vmatpush1.msra.mxu0 %v551
      %605 = vmatprep.subr.mxu0 0.0
      %606 = vmatpush1.msra.mxu0 %v552
      %607 = vmatprep.subr.mxu0 0.0
      %608 = vmatpush1.msra.mxu0 %v553
      %609 = vmatprep.subr.mxu0 0.0
      %610 = vmatpush1.msra.mxu0 %v554
      %611 = vmatprep.subr.mxu0 0.0
      %612 = vmatpush1.msra.mxu0 0.0
      %613 = vmatprep.subr.mxu0 0.0
      %614 = vmatpush1.msra.mxu0 0.0
      %615 = vmatprep.subr.mxu0 0.0
      %616 = vmatpush1.msra.mxu0 0.0
      %617 = vmatprep.subr.mxu0 0.0
      %618 = vmatpush1.msra.mxu0 0.0
      %619 = vmatprep.subr.mxu0 0.0
      %620 = vmatpush1.msra.mxu0 0.0
      %621 = vmatprep.subr.mxu0 0.0
      %622 = vmatpush1.msra.mxu0 0.0
      %623 = vmatprep.subr.mxu0 0.0
      %624 = vmatpush1.msra.mxu0 0.0
      %625 = vmatprep.subr.mxu0 0.0
      %626 = vmatpush1.msra.mxu0 0.0
      %627 = vmatprep.subr.mxu0 0.0
      %628 = vmatpush1.msra.mxu0 0.0
      %629 = vmatprep.subr.mxu0 0.0
      %630 = vmatpush1.msra.mxu0 0.0
      %631 = vmatprep.subr.mxu0 0.0
      %632 = vmatpush1.msra.mxu0 0.0
      %633 = vmatprep.subr.mxu0 0.0
      %634 = vmatpush1.msra.mxu0 0.0
      %635 = vmatprep.subr.mxu0 0.0
      %636 = vmatpush1.msra.mxu0 0.0
      %637 = vmatprep.subr.mxu0 0.0
      %638 = vmatpush1.msra.mxu0 0.0
      %639 = vmatprep.subr.mxu0 0.0
      %640 = vmatpush1.msra.mxu0 0.0
      %641 = vmatprep.subr.mxu0 0.0
      %642 = vmatpush1.msra.mxu0 0.0
      %643 = vmatprep.subr.mxu0 0.0
      %644 = vmatpush1.msra.mxu0 0.0
      %645 = vmatprep.subr.mxu0 0.0
      %646 = vmatpush1.msra.mxu0 0.0
      %647 = vmatprep.subr.mxu0 0.0
      %648 = vmatpush1.msra.mxu0 0.0
      %649 = vmatprep.subr.mxu0 0.0
      %650 = vmatpush1.msra.mxu0 0.0
      %651 = vmatprep.subr.mxu0 0.0
      %652 = vmatpush1.msra.mxu0 0.0
      %653 = vmatprep.subr.mxu0 0.0
      %654 = vmatpush1.msra.mxu0 0.0
      %655 = vmatprep.subr.mxu0 0.0
      %656 = vmatpush1.msra.mxu0 0.0
      %657 = vmatprep.subr.mxu0 0.0
      %658 = vmatpush1.msra.mxu0 0.0
      %659 = vmatprep.subr.mxu0 0.0
      %660 = vmatpush1.msra.mxu0 0.0
      %661 = vmatprep.subr.mxu0 0.0
      %662 = vmatpush1.msra.mxu0 0.0
      %663 = vmatprep.subr.mxu0 0.0
      %664 = vmatpush1.msra.mxu0 0.0
      %665 = vmatprep.subr.mxu0 0.0
      %666 = vmatpush1.msra.mxu0 0.0
      %667 = vmatprep.mubr.f32.mxu0 0.0
      %668 = vmatmul.mubr.f32.gmra.mrb[0].mxu0 %v601
      %v669 = vpop.f32.mrb[0].mxu0
      %v670 = vadd.f32 0.0, %v669
      %v671 = vpop.f32.mrb[0].mxu0
      %672 = vdwg.mxu0
      %674 = vrot.lane.b32.xlu0 %v595, 96
      %v675 = vpop.permute.xlu0 %674
      %v676 = vsel %vm332, %v675, 0
      %678 = vmatprep.subr.mxu0 0.0
      %679 = vmatpush1.msra.mxu0 %v555
      %680 = vmatprep.subr.mxu0 0.0
      %681 = vmatpush1.msra.mxu0 %v556
      %682 = vmatprep.subr.mxu0 0.0
      %683 = vmatpush1.msra.mxu0 %v557
      %684 = vmatprep.subr.mxu0 0.0
      %685 = vmatpush1.msra.mxu0 %v558
      %686 = vmatprep.subr.mxu0 0.0
      %687 = vmatpush1.msra.mxu0 0.0
      %688 = vmatprep.subr.mxu0 0.0
      %689 = vmatpush1.msra.mxu0 0.0
      %690 = vmatprep.subr.mxu0 0.0
      %691 = vmatpush1.msra.mxu0 0.0
      %692 = vmatprep.subr.mxu0 0.0
      %693 = vmatpush1.msra.mxu0 0.0
      %694 = vmatprep.subr.mxu0 0.0
      %695 = vmatpush1.msra.mxu0 0.0
      %696 = vmatprep.subr.mxu0 0.0
      %697 = vmatpush1.msra.mxu0 0.0
      %698 = vmatprep.subr.mxu0 0.0
      %699 = vmatpush1.msra.mxu0 0.0
      %700 = vmatprep.subr.mxu0 0.0
      %701 = vmatpush1.msra.mxu0 0.0
      %702 = vmatprep.subr.mxu0 0.0
      %703 = vmatpush1.msra.mxu0 0.0
      %704 = vmatprep.subr.mxu0 0.0
      %705 = vmatpush1.msra.mxu0 0.0
      %706 = vmatprep.subr.mxu0 0.0
      %707 = vmatpush1.msra.mxu0 0.0
      %708 = vmatprep.subr.mxu0 0.0
      %709 = vmatpush1.msra.mxu0 0.0
      %710 = vmatprep.subr.mxu0 0.0
      %711 = vmatpush1.msra.mxu0 0.0
      %712 = vmatprep.subr.mxu0 0.0
      %713 = vmatpush1.msra.mxu0 0.0
      %714 = vmatprep.subr.mxu0 0.0
      %715 = vmatpush1.msra.mxu0 0.0
      %716 = vmatprep.subr.mxu0 0.0
      %717 = vmatpush1.msra.mxu0 0.0
      %718 = vmatprep.subr.mxu0 0.0
      %719 = vmatpush1.msra.mxu0 0.0
      %720 = vmatprep.subr.mxu0 0.0
      %721 = vmatpush1.msra.mxu0 0.0
      %722 = vmatprep.subr.mxu0 0.0
      %723 = vmatpush1.msra.mxu0 0.0
      %724 = vmatprep.subr.mxu0 0.0
      %725 = vmatpush1.msra.mxu0 0.0
      %726 = vmatprep.subr.mxu0 0.0
      %727 = vmatpush1.msra.mxu0 0.0
      %728 = vmatprep.subr.mxu0 0.0
      %729 = vmatpush1.msra.mxu0 0.0
      %730 = vmatprep.subr.mxu0 0.0
      %731 = vmatpush1.msra.mxu0 0.0
      %732 = vmatprep.subr.mxu0 0.0
      %733 = vmatpush1.msra.mxu0 0.0
      %734 = vmatprep.subr.mxu0 0.0
      %735 = vmatpush1.msra.mxu0 0.0
      %736 = vmatprep.subr.mxu0 0.0
      %737 = vmatpush1.msra.mxu0 0.0
      %738 = vmatprep.subr.mxu0 0.0
      %739 = vmatpush1.msra.mxu0 0.0
      %740 = vmatprep.subr.mxu0 0.0
      %741 = vmatpush1.msra.mxu0 0.0
      %742 = vmatprep.mubr.f32.mxu0 0.0
      %743 = vmatmul.mubr.f32.gmra.mrb[0].mxu0 %v676
      %v744 = vpop.f32.mrb[0].mxu0
      %v745 = vadd.f32 0.0, %v744
      %v746 = vpop.f32.mrb[0].mxu0
      %747 = vdwg.mxu0
      %s748 = smul.u32 %s589, 32
      %s749 = scalar_lea.vmem [#allocation2], %s748
      %v750 = vld [vmem:[%s749] sm:$0xff]
      %v751 = vadd.f32 %v750, %v670
      %v752 = vxor.u32 %v751, 2147483648
      %v753 = vmul.f32 %v752, 1.442695
      %v754 = vpow.pop %v753
      %v755 = vadd.f32 %v754, 1.0
      %v756 = vrcp.pop %v755
      %v757 = vmul.f32 1.0, %v756
      %758 = vrot.lane.b32.xlu0 %v568, 64
      %v759 = vpop.permute.xlu0 %758
      %v761 = vadd.f32 %v670, %v759
      %763 = vrot.lane.b32.xlu0 %v761, 64
      %v764 = vpop.permute.xlu0 %763
      %v766 = vmul.f32 %v757, %v764
      %768 = vrot.lane.b32.xlu0 %v766, 64
      %v769 = vpop.permute.xlu0 %768
      %v771 = vadd.f32 %v750, %v769
      %v772 = vtanh.pop %v771
      %v773 = vsub.f32 1.0, %v757
      %775 = vrot.lane.b32.xlu0 %v772, 96
      %v776 = vpop.permute.xlu0 %775
      %v778 = vmul.f32 %v773, %v776
      %v779 = vmul.f32 %v757, %v594
      %v780 = vadd.f32 %v778, %v779
      %s781 = smul.u32 %s597, 8
      %s782 = scalar_lea.vmem [#allocation3], %s781
      %v783 = vld [vmem:[%s782] sm:$0xff]
      %v784 = vadd.f32 %v783, %v745
      %v785 = vxor.u32 %v784, 2147483648
      %v786 = vmul.f32 %v785, 1.442695
      %v787 = vpow.pop %v786
      %v788 = vadd.f32 %v787, 1.0
      %v789 = vrcp.pop %v788
      %v790 = vmul.f32 1.0, %v789
      %791 = vrot.lane.b32.xlu0 %v574, 64
      %v792 = vpop.permute.xlu0 %791
      %v794 = vadd.f32 %v745, %v792
      %796 = vrot.lane.b32.xlu0 %v794, 64
      %v797 = vpop.permute.xlu0 %796
      %v799 = vmul.f32 %v790, %v797
      %801 = vrot.lane.b32.xlu0 %v799, 64
      %v802 = vpop.permute.xlu0 %801
      %v804 = vadd.f32 %v783, %v802
      %v805 = vtanh.pop %v804
      %v806 = vsub.f32 1.0, %v790
      %808 = vrot.lane.b32.xlu0 %v805, 96
      %v809 = vpop.permute.xlu0 %808
      %v811 = vmul.f32 %v806, %v809
      %v812 = vmul.f32 %v790, %v595
      %v813 = vadd.f32 %v811, %v812
      %815 = vrot.lane.b32.xlu0 %v780, 96
      %v816 = vpop.permute.xlu0 %815
      %s818 = scalar_lea.vmem [#allocation4], %s748
      %819 = vst.msk [vmem:[%s818] sm:$0xff] %vm332, %v816
      %821 = vrot.lane.b32.xlu0 %v813, 96
      %v822 = vpop.permute.xlu0 %821
      %s824 = scalar_lea.vmem [#allocation5], %s781
      %825 = vst.msk [vmem:[%s824] sm:$0xff] %vm332, %v822
      %s826 = sadd.s32 %s596, 1
      %s827 = ssub.s32 6, %s596
      %v828 = vsel %vm332, %v816, 0
      %830 = vmatprep.subr.mxu0 0.0
      %831 = vmatpush1.msra.mxu0 %v551
      %832 = vmatprep.subr.mxu0 0.0
      %833 = vmatpush1.msra.mxu0 %v552
      %834 = vmatprep.subr.mxu0 0.0
      %835 = vmatpush1.msra.mxu0 %v553
      %836 = vmatprep.subr.mxu0 0.0
      %837 = vmatpush1.msra.mxu0 %v554
      %838 = vmatprep.subr.mxu0 0.0
      %839 = vmatpush1.msra.mxu0 0.0
      %840 = vmatprep.subr.mxu0 0.0
      %841 = vmatpush1.msra.mxu0 0.0
      %842 = vmatprep.subr.mxu0 0.0
      %843 = vmatpush1.msra.mxu0 0.0
      %844 = vmatprep.subr.mxu0 0.0
      %845 = vmatpush1.msra.mxu0 0.0
      %846 = vmatprep.subr.mxu0 0.0
      %847 = vmatpush1.msra.mxu0 0.0
      %848 = vmatprep.subr.mxu0 0.0
      %849 = vmatpush1.msra.mxu0 0.0
      %850 = vmatprep.subr.mxu0 0.0
      %851 = vmatpush1.msra.mxu0 0.0
      %852 = vmatprep.subr.mxu0 0.0
      %853 = vmatpush1.msra.mxu0 0.0
      %854 = vmatprep.subr.mxu0 0.0
      %855 = vmatpush1.msra.mxu0 0.0
      %856 = vmatprep.subr.mxu0 0.0
      %857 = vmatpush1.msra.mxu0 0.0
      %858 = vmatprep.subr.mxu0 0.0
      %859 = vmatpush1.msra.mxu0 0.0
      %860 = vmatprep.subr.mxu0 0.0
      %861 = vmatpush1.msra.mxu0 0.0
      %862 = vmatprep.subr.mxu0 0.0
      %863 = vmatpush1.msra.mxu0 0.0
      %864 = vmatprep.subr.mxu0 0.0
      %865 = vmatpush1.msra.mxu0 0.0
      %866 = vmatprep.subr.mxu0 0.0
      %867 = vmatpush1.msra.mxu0 0.0
      %868 = vmatprep.subr.mxu0 0.0
      %869 = vmatpush1.msra.mxu0 0.0
      %870 = vmatprep.subr.mxu0 0.0
      %871 = vmatpush1.msra.mxu0 0.0
      %872 = vmatprep.subr.mxu0 0.0
      %873 = vmatpush1.msra.mxu0 0.0
      %874 = vmatprep.subr.mxu0 0.0
      %875 = vmatpush1.msra.mxu0 0.0
      %876 = vmatprep.subr.mxu0 0.0
      %877 = vmatpush1.msra.mxu0 0.0
      %878 = vmatprep.subr.mxu0 0.0
      %879 = vmatpush1.msra.mxu0 0.0
      %880 = vmatprep.subr.mxu0 0.0
      %881 = vmatpush1.msra.mxu0 0.0
      %882 = vmatprep.subr.mxu0 0.0
      %883 = vmatpush1.msra.mxu0 0.0
      %884 = vmatprep.subr.mxu0 0.0
      %885 = vmatpush1.msra.mxu0 0.0
      %886 = vmatprep.subr.mxu0 0.0
      %887 = vmatpush1.msra.mxu0 0.0
      %888 = vmatprep.subr.mxu0 0.0
      %889 = vmatpush1.msra.mxu0 0.0
      %890 = vmatprep.subr.mxu0 0.0
      %891 = vmatpush1.msra.mxu0 0.0
      %892 = vmatprep.subr.mxu0 0.0
      %893 = vmatpush1.msra.mxu0 0.0
      %894 = vmatprep.mubr.f32.mxu0 0.0
      %895 = vmatmul.mubr.f32.gmra.mrb[0].mxu0 %v828
      %v896 = vpop.f32.mrb[0].mxu0
      %v897 = vadd.f32 0.0, %v896
      %v898 = vpop.f32.mrb[0].mxu0
      %899 = vdwg.mxu0
      %v900 = vsel %vm332, %v822, 0
      %902 = vmatprep.subr.mxu0 0.0
      %903 = vmatpush1.msra.mxu0 %v555
      %904 = vmatprep.subr.mxu0 0.0
      %905 = vmatpush1.msra.mxu0 %v556
      %906 = vmatprep.subr.mxu0 0.0
      %907 = vmatpush1.msra.mxu0 %v557
      %908 = vmatprep.subr.mxu0 0.0
      %909 = vmatpush1.msra.mxu0 %v558
      %910 = vmatprep.subr.mxu0 0.0
      %911 = vmatpush1.msra.mxu0 0.0
      %912 = vmatprep.subr.mxu0 0.0
      %913 = vmatpush1.msra.mxu0 0.0
      %914 = vmatprep.subr.mxu0 0.0
      %915 = vmatpush1.msra.mxu0 0.0
      %916 = vmatprep.subr.mxu0 0.0
      %917 = vmatpush1.msra.mxu0 0.0
      %918 = vmatprep.subr.mxu0 0.0
      %919 = vmatpush1.msra.mxu0 0.0
      %920 = vmatprep.subr.mxu0 0.0
      %921 = vmatpush1.msra.mxu0 0.0
      %922 = vmatprep.subr.mxu0 0.0
      %923 = vmatpush1.msra.mxu0 0.0
      %924 = vmatprep.subr.mxu0 0.0
      %925 = vmatpush1.msra.mxu0 0.0
      %926 = vmatprep.subr.mxu0 0.0
      %927 = vmatpush1.msra.mxu0 0.0
      %928 = vmatprep.subr.mxu0 0.0
      %929 = vmatpush1.msra.mxu0 0.0
      %930 = vmatprep.subr.mxu0 0.0
      %931 = vmatpush1.msra.mxu0 0.0
      %932 = vmatprep.subr.mxu0 0.0
      %933 = vmatpush1.msra.mxu0 0.0
      %934 = vmatprep.subr.mxu0 0.0
      %935 = vmatpush1.msra.mxu0 0.0
      %936 = vmatprep.subr.mxu0 0.0
      %937 = vmatpush1.msra.mxu0 0.0
      %938 = vmatprep.subr.mxu0 0.0
      %939 = vmatpush1.msra.mxu0 0.0
      %940 = vmatprep.subr.mxu0 0.0
      %941 = vmatpush1.msra.mxu0 0.0
      %942 = vmatprep.subr.mxu0 0.0
      %943 = vmatpush1.msra.mxu0 0.0
      %944 = vmatprep.subr.mxu0 0.0
      %945 = vmatpush1.msra.mxu0 0.0
      %946 = vmatprep.subr.mxu0 0.0
      %947 = vmatpush1.msra.mxu0 0.0
      %948 = vmatprep.subr.mxu0 0.0
      %949 = vmatpush1.msra.mxu0 0.0
      %950 = vmatprep.subr.mxu0 0.0
      %951 = vmatpush1.msra.mxu0 0.0
      %952 = vmatprep.subr.mxu0 0.0
      %953 = vmatpush1.msra.mxu0 0.0
      %954 = vmatprep.subr.mxu0 0.0
      %955 = vmatpush1.msra.mxu0 0.0
      %956 = vmatprep.subr.mxu0 0.0
      %957 = vmatpush1.msra.mxu0 0.0
      %958 = vmatprep.subr.mxu0 0.0
      %959 = vmatpush1.msra.mxu0 0.0
      %960 = vmatprep.subr.mxu0 0.0
      %961 = vmatpush1.msra.mxu0 0.0
      %962 = vmatprep.subr.mxu0 0.0
      %963 = vmatpush1.msra.mxu0 0.0
      %964 = vmatprep.subr.mxu0 0.0
      %965 = vmatpush1.msra.mxu0 0.0
      %966 = vmatprep.mubr.f32.mxu0 0.0
      %967 = vmatmul.mubr.f32.gmra.mrb[0].mxu0 %v900
      %v968 = vpop.f32.mrb[0].mxu0
      %v969 = vadd.f32 0.0, %v968
      %v970 = vpop.f32.mrb[0].mxu0
      %971 = vdwg.mxu0
      %s972 = smul.u32 %s826, 8
      %s973 = scalar_lea.vmem [#allocation2], %s972
      %v974 = vld [vmem:[%s973] sm:$0xff]
      %v975 = vadd.f32 %v974, %v897
      %v976 = vxor.u32 %v975, 2147483648
      %v977 = vmul.f32 %v976, 1.442695
      %v978 = vpow.pop %v977
      %v979 = vadd.f32 %v978, 1.0
      %v980 = vrcp.pop %v979
      %v981 = vmul.f32 1.0, %v980
      %v982 = vadd.f32 %v897, %v759
      %984 = vrot.lane.b32.xlu0 %v982, 64
      %v985 = vpop.permute.xlu0 %984
      %v987 = vmul.f32 %v981, %v985
      %989 = vrot.lane.b32.xlu0 %v987, 64
      %v990 = vpop.permute.xlu0 %989
      %v992 = vadd.f32 %v974, %v990
      %v993 = vtanh.pop %v992
      %v994 = vsub.f32 1.0, %v981
      %996 = vrot.lane.b32.xlu0 %v993, 96
      %v997 = vpop.permute.xlu0 %996
      %v999 = vmul.f32 %v994, %v997
      %v1000 = vmul.f32 %v981, %v780
      %v1001 = vadd.f32 %v999, %v1000
      %s1002 = smul.u32 %s827, 8
      %s1003 = scalar_lea.vmem [#allocation3], %s1002
      %v1004 = vld [vmem:[%s1003] sm:$0xff]
      %v1005 = vadd.f32 %v1004, %v969
      %v1006 = vxor.u32 %v1005, 2147483648
      %v1007 = vmul.f32 %v1006, 1.442695
      %v1008 = vpow.pop %v1007
      %v1009 = vadd.f32 %v1008, 1.0
      %v1010 = vrcp.pop %v1009
      %v1011 = vmul.f32 1.0, %v1010
      %v1012 = vadd.f32 %v969, %v792
      %1014 = vrot.lane.b32.xlu0 %v1012, 64
      %v1015 = vpop.permute.xlu0 %1014
      %v1017 = vmul.f32 %v1011, %v1015
      %1019 = vrot.lane.b32.xlu0 %v1017, 64
      %v1020 = vpop.permute.xlu0 %1019
      %v1022 = vadd.f32 %v1004, %v1020
      %v1023 = vtanh.pop %v1022
      %v1024 = vsub.f32 1.0, %v1011
      %1026 = vrot.lane.b32.xlu0 %v1023, 96
      %v1027 = vpop.permute.xlu0 %1026
      %v1029 = vmul.f32 %v1024, %v1027
      %v1030 = vmul.f32 %v1011, %v813
      %v1031 = vadd.f32 %v1029, %v1030
      %1033 = vrot.lane.b32.xlu0 %v1001, 96
      %v1034 = vpop.permute.xlu0 %1033
      %s1036 = scalar_lea.vmem [#allocation4], %s972
      %1037 = vst.msk [vmem:[%s1036] sm:$0xff] %vm332, %v1034
      %1039 = vrot.lane.b32.xlu0 %v1031, 96
      %v1040 = vpop.permute.xlu0 %1039
      %s1042 = scalar_lea.vmem [#allocation5], %s1002
      %1043 = vst.msk [vmem:[%s1042] sm:$0xff] %vm332, %v1040
      %s1044 = sadd.s32 %s596, 2
      %s1045 = ssub.s32 5, %s596
      %v1046 = vsel %vm332, %v1034, 0
      %1048 = vmatprep.subr.mxu0 0.0
      %1049 = vmatpush1.msra.mxu0 %v551
      %1050 = vmatprep.subr.mxu0 0.0
      %1051 = vmatpush1.msra.mxu0 %v552
      %1052 = vmatprep.subr.mxu0 0.0
      %1053 = vmatpush1.msra.mxu0 %v553
      %1054 = vmatprep.subr.mxu0 0.0
      %1055 = vmatpush1.msra.mxu0 %v554
      %1056 = vmatprep.subr.mxu0 0.0
      %1057 = vmatpush1.msra.mxu0 0.0
      %1058 = vmatprep.subr.mxu0 0.0
      %1059 = vmatpush1.msra.mxu0 0.0
      %1060 = vmatprep.subr.mxu0 0.0
      %1061 = vmatpush1.msra.mxu0 0.0
      %1062 = vmatprep.subr.mxu0 0.0
      %1063 = vmatpush1.msra.mxu0 0.0
      %1064 = vmatprep.subr.mxu0 0.0
      %1065 = vmatpush1.msra.mxu0 0.0
      %1066 = vmatprep.subr.mxu0 0.0
      %1067 = vmatpush1.msra.mxu0 0.0
      %1068 = vmatprep.subr.mxu0 0.0
      %1069 = vmatpush1.msra.mxu0 0.0
      %1070 = vmatprep.subr.mxu0 0.0
      %1071 = vmatpush1.msra.mxu0 0.0
      %1072 = vmatprep.subr.mxu0 0.0
      %1073 = vmatpush1.msra.mxu0 0.0
      %1074 = vmatprep.subr.mxu0 0.0
      %1075 = vmatpush1.msra.mxu0 0.0
      %1076 = vmatprep.subr.mxu0 0.0
      %1077 = vmatpush1.msra.mxu0 0.0
      %1078 = vmatprep.subr.mxu0 0.0
      %1079 = vmatpush1.msra.mxu0 0.0
      %1080 = vmatprep.subr.mxu0 0.0
      %1081 = vmatpush1.msra.mxu0 0.0
      %1082 = vmatprep.subr.mxu0 0.0
      %1083 = vmatpush1.msra.mxu0 0.0
      %1084 = vmatprep.subr.mxu0 0.0
      %1085 = vmatpush1.msra.mxu0 0.0
      %1086 = vmatprep.subr.mxu0 0.0
      %1087 = vmatpush1.msra.mxu0 0.0
      %1088 = vmatprep.subr.mxu0 0.0
      %1089 = vmatpush1.msra.mxu0 0.0
      %1090 = vmatprep.subr.mxu0 0.0
      %1091 = vmatpush1.msra.mxu0 0.0
      %1092 = vmatprep.subr.mxu0 0.0
      %1093 = vmatpush1.msra.mxu0 0.0
      %1094 = vmatprep.subr.mxu0 0.0
      %1095 = vmatpush1.msra.mxu0 0.0
      %1096 = vmatprep.subr.mxu0 0.0
      %1097 = vmatpush1.msra.mxu0 0.0
      %1098 = vmatprep.subr.mxu0 0.0
      %1099 = vmatpush1.msra.mxu0 0.0
      %1100 = vmatprep.subr.mxu0 0.0
      %1101 = vmatpush1.msra.mxu0 0.0
      %1102 = vmatprep.subr.mxu0 0.0
      %1103 = vmatpush1.msra.mxu0 0.0
      %1104 = vmatprep.subr.mxu0 0.0
      %1105 = vmatpush1.msra.mxu0 0.0
      %1106 = vmatprep.subr.mxu0 0.0
      %1107 = vmatpush1.msra.mxu0 0.0
      %1108 = vmatprep.subr.mxu0 0.0
      %1109 = vmatpush1.msra.mxu0 0.0
      %1110 = vmatprep.subr.mxu0 0.0
      %1111 = vmatpush1.msra.mxu0 0.0
      %1112 = vmatprep.mubr.f32.mxu0 0.0
      %1113 = vmatmul.mubr.f32.gmra.mrb[0].mxu0 %v1046
      %v1114 = vpop.f32.mrb[0].mxu0
      %v1115 = vadd.f32 0.0, %v1114
      %v1116 = vpop.f32.mrb[0].mxu0
      %1117 = vdwg.mxu0
      %v1118 = vsel %vm332, %v1040, 0
      %1120 = vmatprep.subr.mxu0 0.0
      %1121 = vmatpush1.msra.mxu0 %v555
      %1122 = vmatprep.subr.mxu0 0.0
      %1123 = vmatpush1.msra.mxu0 %v556
      %1124 = vmatprep.subr.mxu0 0.0
      %1125 = vmatpush1.msra.mxu0 %v557
      %1126 = vmatprep.subr.mxu0 0.0
      %1127 = vmatpush1.msra.mxu0 %v558
      %1128 = vmatprep.subr.mxu0 0.0
      %1129 = vmatpush1.msra.mxu0 0.0
      %1130 = vmatprep.subr.mxu0 0.0
      %1131 = vmatpush1.msra.mxu0 0.0
      %1132 = vmatprep.subr.mxu0 0.0
      %1133 = vmatpush1.msra.mxu0 0.0
      %1134 = vmatprep.subr.mxu0 0.0
      %1135 = vmatpush1.msra.mxu0 0.0
      %1136 = vmatprep.subr.mxu0 0.0
      %1137 = vmatpush1.msra.mxu0 0.0
      %1138 = vmatprep.subr.mxu0 0.0
      %1139 = vmatpush1.msra.mxu0 0.0
      %1140 = vmatprep.subr.mxu0 0.0
      %1141 = vmatpush1.msra.mxu0 0.0
      %1142 = vmatprep.subr.mxu0 0.0
      %1143 = vmatpush1.msra.mxu0 0.0
      %1144 = vmatprep.subr.mxu0 0.0
      %1145 = vmatpush1.msra.mxu0 0.0
      %1146 = vmatprep.subr.mxu0 0.0
      %1147 = vmatpush1.msra.mxu0 0.0
      %1148 = vmatprep.subr.mxu0 0.0
      %1149 = vmatpush1.msra.mxu0 0.0
      %1150 = vmatprep.subr.mxu0 0.0
      %1151 = vmatpush1.msra.mxu0 0.0
      %1152 = vmatprep.subr.mxu0 0.0
      %1153 = vmatpush1.msra.mxu0 0.0
      %1154 = vmatprep.subr.mxu0 0.0
      %1155 = vmatpush1.msra.mxu0 0.0
      %1156 = vmatprep.subr.mxu0 0.0
      %1157 = vmatpush1.msra.mxu0 0.0
      %1158 = vmatprep.subr.mxu0 0.0
      %1159 = vmatpush1.msra.mxu0 0.0
      %1160 = vmatprep.subr.mxu0 0.0
      %1161 = vmatpush1.msra.mxu0 0.0
      %1162 = vmatprep.subr.mxu0 0.0
      %1163 = vmatpush1.msra.mxu0 0.0
      %1164 = vmatprep.subr.mxu0 0.0
      %1165 = vmatpush1.msra.mxu0 0.0
      %1166 = vmatprep.subr.mxu0 0.0
      %1167 = vmatpush1.msra.mxu0 0.0
      %1168 = vmatprep.subr.mxu0 0.0
      %1169 = vmatpush1.msra.mxu0 0.0
      %1170 = vmatprep.subr.mxu0 0.0
      %1171 = vmatpush1.msra.mxu0 0.0
      %1172 = vmatprep.subr.mxu0 0.0
      %1173 = vmatpush1.msra.mxu0 0.0
      %1174 = vmatprep.subr.mxu0 0.0
      %1175 = vmatpush1.msra.mxu0 0.0
      %1176 = vmatprep.subr.mxu0 0.0
      %1177 = vmatpush1.msra.mxu0 0.0
      %1178 = vmatprep.subr.mxu0 0.0
      %1179 = vmatpush1.msra.mxu0 0.0
      %1180 = vmatprep.subr.mxu0 0.0
      %1181 = vmatpush1.msra.mxu0 0.0
      %1182 = vmatprep.subr.mxu0 0.0
      %1183 = vmatpush1.msra.mxu0 0.0
      %1184 = vmatprep.mubr.f32.mxu0 0.0
      %1185 = vmatmul.mubr.f32.gmra.mrb[0].mxu0 %v1118
      %v1186 = vpop.f32.mrb[0].mxu0
      %v1187 = vadd.f32 0.0, %v1186
      %v1188 = vpop.f32.mrb[0].mxu0
      %1189 = vdwg.mxu0
      %s1190 = smul.u32 %s1044, 8
      %s1191 = scalar_lea.vmem [#allocation2], %s1190
      %v1192 = vld [vmem:[%s1191] sm:$0xff]
      %v1193 = vadd.f32 %v1192, %v1115
      %v1194 = vxor.u32 %v1193, 2147483648
      %v1195 = vmul.f32 %v1194, 1.442695
      %v1196 = vpow.pop %v1195
      %v1197 = vadd.f32 %v1196, 1.0
      %v1198 = vrcp.pop %v1197
      %v1199 = vmul.f32 1.0, %v1198
      %v1200 = vadd.f32 %v1115, %v759
      %1202 = vrot.lane.b32.xlu0 %v1200, 64
      %v1203 = vpop.permute.xlu0 %1202
      %v1205 = vmul.f32 %v1199, %v1203
      %1207 = vrot.lane.b32.xlu0 %v1205, 64
      %v1208 = vpop.permute.xlu0 %1207
      %v1210 = vadd.f32 %v1192, %v1208
      %v1211 = vtanh.pop %v1210
      %v1212 = vsub.f32 1.0, %v1199
      %1214 = vrot.lane.b32.xlu0 %v1211, 96
      %v1215 = vpop.permute.xlu0 %1214
      %v1217 = vmul.f32 %v1212, %v1215
      %v1218 = vmul.f32 %v1199, %v1001
      %v1219 = vadd.f32 %v1217, %v1218
      %s1220 = smul.u32 %s1045, 8
      %s1221 = scalar_lea.vmem [#allocation3], %s1220
      %v1222 = vld [vmem:[%s1221] sm:$0xff]
      %v1223 = vadd.f32 %v1222, %v1187
      %v1224 = vxor.u32 %v1223, 2147483648
      %v1225 = vmul.f32 %v1224, 1.442695
      %v1226 = vpow.pop %v1225
      %v1227 = vadd.f32 %v1226, 1.0
      %v1228 = vrcp.pop %v1227
      %v1229 = vmul.f32 1.0, %v1228
      %v1230 = vadd.f32 %v1187, %v792
      %1232 = vrot.lane.b32.xlu0 %v1230, 64
      %v1233 = vpop.permute.xlu0 %1232
      %v1235 = vmul.f32 %v1229, %v1233
      %1237 = vrot.lane.b32.xlu0 %v1235, 64
      %v1238 = vpop.permute.xlu0 %1237
      %v1240 = vadd.f32 %v1222, %v1238
      %v1241 = vtanh.pop %v1240
      %v1242 = vsub.f32 1.0, %v1229
      %1244 = vrot.lane.b32.xlu0 %v1241, 96
      %v1245 = vpop.permute.xlu0 %1244
      %v1247 = vmul.f32 %v1242, %v1245
      %v1248 = vmul.f32 %v1229, %v1031
      %v1249 = vadd.f32 %v1247, %v1248
      %1251 = vrot.lane.b32.xlu0 %v1219, 96
      %v1252 = vpop.permute.xlu0 %1251
      %s1254 = scalar_lea.vmem [#allocation4], %s1190
      %1255 = vst.msk [vmem:[%s1254] sm:$0xff] %vm332, %v1252
      %1257 = vrot.lane.b32.xlu0 %v1249, 96
      %v1258 = vpop.permute.xlu0 %1257
      %s1260 = scalar_lea.vmem [#allocation5], %s1220
      %1261 = vst.msk [vmem:[%s1260] sm:$0xff] %vm332, %v1258
      %s1262 = sadd.s32 %s596, 3
      %s1263 = ssub.s32 4, %s596
      %v1264 = vsel %vm332, %v1252, 0
      %1266 = vmatprep.subr.mxu0 0.0
      %1267 = vmatpush1.msra.mxu0 %v551
      %1268 = vmatprep.subr.mxu0 0.0
      %1269 = vmatpush1.msra.mxu0 %v552
      %1270 = vmatprep.subr.mxu0 0.0
      %1271 = vmatpush1.msra.mxu0 %v553
      %1272 = vmatprep.subr.mxu0 0.0
      %1273 = vmatpush1.msra.mxu0 %v554
      %1274 = vmatprep.subr.mxu0 0.0
      %1275 = vmatpush1.msra.mxu0 0.0
      %1276 = vmatprep.subr.mxu0 0.0
      %1277 = vmatpush1.msra.mxu0 0.0
      %1278 = vmatprep.subr.mxu0 0.0
      %1279 = vmatpush1.msra.mxu0 0.0
      %1280 = vmatprep.subr.mxu0 0.0
      %1281 = vmatpush1.msra.mxu0 0.0
      %1282 = vmatprep.subr.mxu0 0.0
      %1283 = vmatpush1.msra.mxu0 0.0
      %1284 = vmatprep.subr.mxu0 0.0
      %1285 = vmatpush1.msra.mxu0 0.0
      %1286 = vmatprep.subr.mxu0 0.0
      %1287 = vmatpush1.msra.mxu0 0.0
      %1288 = vmatprep.subr.mxu0 0.0
      %1289 = vmatpush1.msra.mxu0 0.0
      %1290 = vmatprep.subr.mxu0 0.0
      %1291 = vmatpush1.msra.mxu0 0.0
      %1292 = vmatprep.subr.mxu0 0.0
      %1293 = vmatpush1.msra.mxu0 0.0
      %1294 = vmatprep.subr.mxu0 0.0
      %1295 = vmatpush1.msra.mxu0 0.0
      %1296 = vmatprep.subr.mxu0 0.0
      %1297 = vmatpush1.msra.mxu0 0.0
      %1298 = vmatprep.subr.mxu0 0.0
      %1299 = vmatpush1.msra.mxu0 0.0
      %1300 = vmatprep.subr.mxu0 0.0
      %1301 = vmatpush1.msra.mxu0 0.0
      %1302 = vmatprep.subr.mxu0 0.0
      %1303 = vmatpush1.msra.mxu0 0.0
      %1304 = vmatprep.subr.mxu0 0.0
      %1305 = vmatpush1.msra.mxu0 0.0
      %1306 = vmatprep.subr.mxu0 0.0
      %1307 = vmatpush1.msra.mxu0 0.0
      %1308 = vmatprep.subr.mxu0 0.0
      %1309 = vmatpush1.msra.mxu0 0.0
      %1310 = vmatprep.subr.mxu0 0.0
      %1311 = vmatpush1.msra.mxu0 0.0
      %1312 = vmatprep.subr.mxu0 0.0
      %1313 = vmatpush1.msra.mxu0 0.0
      %1314 = vmatprep.subr.mxu0 0.0
      %1315 = vmatpush1.msra.mxu0 0.0
      %1316 = vmatprep.subr.mxu0 0.0
      %1317 = vmatpush1.msra.mxu0 0.0
      %1318 = vmatprep.subr.mxu0 0.0
      %1319 = vmatpush1.msra.mxu0 0.0
      %1320 = vmatprep.subr.mxu0 0.0
      %1321 = vmatpush1.msra.mxu0 0.0
      %1322 = vmatprep.subr.mxu0 0.0
      %1323 = vmatpush1.msra.mxu0 0.0
      %1324 = vmatprep.subr.mxu0 0.0
      %1325 = vmatpush1.msra.mxu0 0.0
      %1326 = vmatprep.subr.mxu0 0.0
      %1327 = vmatpush1.msra.mxu0 0.0
      %1328 = vmatprep.subr.mxu0 0.0
      %1329 = vmatpush1.msra.mxu0 0.0
      %1330 = vmatprep.mubr.f32.mxu0 0.0
      %1331 = vmatmul.mubr.f32.gmra.mrb[0].mxu0 %v1264
      %v1332 = vpop.f32.mrb[0].mxu0
      %v1333 = vadd.f32 0.0, %v1332
      %v1334 = vpop.f32.mrb[0].mxu0
      %1335 = vdwg.mxu0
      %v1336 = vsel %vm332, %v1258, 0
      %1338 = vmatprep.subr.mxu0 0.0
      %1339 = vmatpush1.msra.mxu0 %v555
      %1340 = vmatprep.subr.mxu0 0.0
      %1341 = vmatpush1.msra.mxu0 %v556
      %1342 = vmatprep.subr.mxu0 0.0
      %1343 = vmatpush1.msra.mxu0 %v557
      %1344 = vmatprep.subr.mxu0 0.0
      %1345 = vmatpush1.msra.mxu0 %v558
      %1346 = vmatprep.subr.mxu0 0.0
      %1347 = vmatpush1.msra.mxu0 0.0
      %1348 = vmatprep.subr.mxu0 0.0
      %1349 = vmatpush1.msra.mxu0 0.0
      %1350 = vmatprep.subr.mxu0 0.0
      %1351 = vmatpush1.msra.mxu0 0.0
      %1352 = vmatprep.subr.mxu0 0.0
      %1353 = vmatpush1.msra.mxu0 0.0
      %1354 = vmatprep.subr.mxu0 0.0
      %1355 = vmatpush1.msra.mxu0 0.0
      %1356 = vmatprep.subr.mxu0 0.0
      %1357 = vmatpush1.msra.mxu0 0.0
      %1358 = vmatprep.subr.mxu0 0.0
      %1359 = vmatpush1.msra.mxu0 0.0
      %1360 = vmatprep.subr.mxu0 0.0
      %1361 = vmatpush1.msra.mxu0 0.0
      %1362 = vmatprep.subr.mxu0 0.0
      %1363 = vmatpush1.msra.mxu0 0.0
      %1364 = vmatprep.subr.mxu0 0.0
      %1365 = vmatpush1.msra.mxu0 0.0
      %1366 = vmatprep.subr.mxu0 0.0
      %1367 = vmatpush1.msra.mxu0 0.0
      %1368 = vmatprep.subr.mxu0 0.0
      %1369 = vmatpush1.msra.mxu0 0.0
      %1370 = vmatprep.subr.mxu0 0.0
      %1371 = vmatpush1.msra.mxu0 0.0
      %1372 = vmatprep.subr.mxu0 0.0
      %1373 = vmatpush1.msra.mxu0 0.0
      %1374 = vmatprep.subr.mxu0 0.0
      %1375 = vmatpush1.msra.mxu0 0.0
      %1376 = vmatprep.subr.mxu0 0.0
      %1377 = vmatpush1.msra.mxu0 0.0
      %1378 = vmatprep.subr.mxu0 0.0
      %1379 = vmatpush1.msra.mxu0 0.0
      %1380 = vmatprep.subr.mxu0 0.0
      %1381 = vmatpush1.msra.mxu0 0.0
      %1382 = vmatprep.subr.mxu0 0.0
      %1383 = vmatpush1.msra.mxu0 0.0
      %1384 = vmatprep.subr.mxu0 0.0
      %1385 = vmatpush1.msra.mxu0 0.0
      %1386 = vmatprep.subr.mxu0 0.0
      %1387 = vmatpush1.msra.mxu0 0.0
      %1388 = vmatprep.subr.mxu0 0.0
      %1389 = vmatpush1.msra.mxu0 0.0
      %1390 = vmatprep.subr.mxu0 0.0
      %1391 = vmatpush1.msra.mxu0 0.0
      %1392 = vmatprep.subr.mxu0 0.0
      %1393 = vmatpush1.msra.mxu0 0.0
      %1394 = vmatprep.subr.mxu0 0.0
      %1395 = vmatpush1.msra.mxu0 0.0
      %1396 = vmatprep.subr.mxu0 0.0
      %1397 = vmatpush1.msra.mxu0 0.0
      %1398 = vmatprep.subr.mxu0 0.0
      %1399 = vmatpush1.msra.mxu0 0.0
      %1400 = vmatprep.subr.mxu0 0.0
      %1401 = vmatpush1.msra.mxu0 0.0
      %1402 = vmatprep.mubr.f32.mxu0 0.0
      %1403 = vmatmul.mubr.f32.gmra.mrb[0].mxu0 %v1336
      %v1404 = vpop.f32.mrb[0].mxu0
      %v1405 = vadd.f32 0.0, %v1404
      %v1406 = vpop.f32.mrb[0].mxu0
      %1407 = vdwg.mxu0
      %s1408 = smul.u32 %s1262, 8
      %s1409 = scalar_lea.vmem [#allocation2], %s1408
      %v1410 = vld [vmem:[%s1409] sm:$0xff]
      %v1411 = vadd.f32 %v1410, %v1333
      %v1412 = vxor.u32 %v1411, 2147483648
      %v1413 = vmul.f32 %v1412, 1.442695
      %v1414 = vpow.pop %v1413
      %v1415 = vadd.f32 %v1414, 1.0
      %v1416 = vrcp.pop %v1415
      %v1417 = vmul.f32 1.0, %v1416
      %v1418 = vadd.f32 %v1333, %v759
      %1420 = vrot.lane.b32.xlu0 %v1418, 64
      %v1421 = vpop.permute.xlu0 %1420
      %v1423 = vmul.f32 %v1417, %v1421
      %1425 = vrot.lane.b32.xlu0 %v1423, 64
      %v1426 = vpop.permute.xlu0 %1425
      %v1428 = vadd.f32 %v1410, %v1426
      %v1429 = vtanh.pop %v1428
      %v1430 = vsub.f32 1.0, %v1417
      %1432 = vrot.lane.b32.xlu0 %v1429, 96
      %v1433 = vpop.permute.xlu0 %1432
      %v1435 = vmul.f32 %v1430, %v1433
      %v1436 = vmul.f32 %v1417, %v1219
      %v1437 = vadd.f32 %v1435, %v1436
      %s1438 = smul.u32 %s1263, 8
      %s1439 = scalar_lea.vmem [#allocation3], %s1438
      %v1440 = vld [vmem:[%s1439] sm:$0xff]
      %v1441 = vadd.f32 %v1440, %v1405
      %v1442 = vxor.u32 %v1441, 2147483648
      %v1443 = vmul.f32 %v1442, 1.442695
      %v1444 = vpow.pop %v1443
      %v1445 = vadd.f32 %v1444, 1.0
      %v1446 = vrcp.pop %v1445
      %v1447 = vmul.f32 1.0, %v1446
      %v1448 = vadd.f32 %v1405, %v792
      %1450 = vrot.lane.b32.xlu0 %v1448, 64
      %v1451 = vpop.permute.xlu0 %1450
      %v1453 = vmul.f32 %v1447, %v1451
      %1455 = vrot.lane.b32.xlu0 %v1453, 64
      %v1456 = vpop.permute.xlu0 %1455
      %v1458 = vadd.f32 %v1440, %v1456
      %v1459 = vtanh.pop %v1458
      %v1460 = vsub.f32 1.0, %v1447
      %1462 = vrot.lane.b32.xlu0 %v1459, 96
      %v1463 = vpop.permute.xlu0 %1462
      %v1465 = vmul.f32 %v1460, %v1463
      %v1466 = vmul.f32 %v1447, %v1249
      %v1467 = vadd.f32 %v1465, %v1466
      %1469 = vrot.lane.b32.xlu0 %v1437, 96
      %v1470 = vpop.permute.xlu0 %1469
      %s1472 = scalar_lea.vmem [#allocation4], %s1408
      %1473 = vst.msk [vmem:[%s1472] sm:$0xff] %vm332, %v1470
      %1475 = vrot.lane.b32.xlu0 %v1467, 96
      %v1476 = vpop.permute.xlu0 %1475
      %s1478 = scalar_lea.vmem [#allocation5], %s1438
      %1479 = vst.msk [vmem:[%s1478] sm:$0xff] %vm332, %v1476
    $region158: #{tpu_custom_call.1} parent=1 // loop_footer
      %s593 = sadd.s32 1, %s589
    $region159: #{tpu_custom_call.1} parent=1 // loop_footer_branch
      %588 = sbr.rel target = $region155
    $region160: #{tpu_custom_call.1} parent=1 // loop_exit
      _
    %v1480 = vld [vmem:[#allocation4] sm:$0xff]
    %v1481 = vld [vmem:[#allocation4 + $0x8] sm:$0xff]
    %v1482 = vld [vmem:[#allocation4 + $0x10] sm:$0xff]
    %v1483 = vld [vmem:[#allocation4 + $0x18] sm:$0xff]
    %v1484 = vld [vmem:[#allocation4 + $0x20] sm:$0xff]
    %v1485 = vld [vmem:[#allocation4 + $0x28] sm:$0xff]
    %v1486 = vld [vmem:[#allocation4 + $0x30] sm:$0xff]
    %v1487 = vld [vmem:[#allocation4 + $0x38] sm:$0xff]
    %v1488 = vld [vmem:[#allocation19] sm:$0xff]
    %v1489 = vld [vmem:[#allocation19 + $0x8] sm:$0xff]
    %v1490 = vld [vmem:[#allocation19 + $0x10] sm:$0xff]
    %v1491 = vld [vmem:[#allocation19 + $0x18] sm:$0xff]
    %v1492 = vld [vmem:[#allocation5] sm:$0xff]
    %v1493 = vld [vmem:[#allocation5 + $0x8] sm:$0xff]
    %v1494 = vld [vmem:[#allocation5 + $0x10] sm:$0xff]
    %v1495 = vld [vmem:[#allocation5 + $0x18] sm:$0xff]
    %v1496 = vld [vmem:[#allocation5 + $0x20] sm:$0xff]
    %v1497 = vld [vmem:[#allocation5 + $0x28] sm:$0xff]
    %v1498 = vld [vmem:[#allocation5 + $0x30] sm:$0xff]
    %v1499 = vld [vmem:[#allocation5 + $0x38] sm:$0xff]
    %v1500 = vld [vmem:[#allocation21] sm:$0xff]
    %v1501 = vld [vmem:[#allocation21 + $0x8] sm:$0xff]
    %v1502 = vld [vmem:[#allocation21 + $0x10] sm:$0xff]
    %v1503 = vld [vmem:[#allocation21 + $0x18] sm:$0xff]
    %v1505 = vsel %vm332, %v1492, 0
    %v1508 = vsel %vm332, %v1493, 0
    %v1511 = vsel %vm332, %v1494, 0
    %v1514 = vsel %vm332, %v1495, 0
    %v1517 = vsel %vm332, %v1496, 0
    %v1520 = vsel %vm332, %v1497, 0
    %v1523 = vsel %vm332, %v1498, 0
    %v1526 = vsel %vm332, %v1499, 0
    %1528 = vmatprep.subr.mxu0 0.0
    %1529 = vmatpush1.msra.mxu0 %v1500
    %1530 = vmatprep.subr.mxu0 0.0
    %1531 = vmatpush1.msra.mxu0 %v1501
    %1532 = vmatprep.subr.mxu0 0.0
    %1533 = vmatpush1.msra.mxu0 %v1502
    %1534 = vmatprep.subr.mxu0 0.0
    %1535 = vmatpush1.msra.mxu0 %v1503
    %1536 = vmatprep.subr.mxu0 0.0
    %1537 = vmatpush1.msra.mxu0 0.0
    %1538 = vmatprep.subr.mxu0 0.0
    %1539 = vmatpush1.msra.mxu0 0.0
    %1540 = vmatprep.subr.mxu0 0.0
    %1541 = vmatpush1.msra.mxu0 0.0
    %1542 = vmatprep.subr.mxu0 0.0
    %1543 = vmatpush1.msra.mxu0 0.0
    %1544 = vmatprep.subr.mxu0 0.0
    %1545 = vmatpush1.msra.mxu0 0.0
    %1546 = vmatprep.subr.mxu0 0.0
    %1547 = vmatpush1.msra.mxu0 0.0
    %1548 = vmatprep.subr.mxu0 0.0
    %1549 = vmatpush1.msra.mxu0 0.0
    %1550 = vmatprep.subr.mxu0 0.0
    %1551 = vmatpush1.msra.mxu0 0.0
    %1552 = vmatprep.subr.mxu0 0.0
    %1553 = vmatpush1.msra.mxu0 0.0
    %1554 = vmatprep.subr.mxu0 0.0
    %1555 = vmatpush1.msra.mxu0 0.0
    %1556 = vmatprep.subr.mxu0 0.0
    %1557 = vmatpush1.msra.mxu0 0.0
    %1558 = vmatprep.subr.mxu0 0.0
    %1559 = vmatpush1.msra.mxu0 0.0
    %1560 = vmatprep.subr.mxu0 0.0
    %1561 = vmatpush1.msra.mxu0 0.0
    %1562 = vmatprep.subr.mxu0 0.0
    %1563 = vmatpush1.msra.mxu0 0.0
    %1564 = vmatprep.subr.mxu0 0.0
    %1565 = vmatpush1.msra.mxu0 0.0
    %1566 = vmatprep.subr.mxu0 0.0
    %1567 = vmatpush1.msra.mxu0 0.0
    %1568 = vmatprep.subr.mxu0 0.0
    %1569 = vmatpush1.msra.mxu0 0.0
    %1570 = vmatprep.subr.mxu0 0.0
    %1571 = vmatpush1.msra.mxu0 0.0
    %1572 = vmatprep.subr.mxu0 0.0
    %1573 = vmatpush1.msra.mxu0 0.0
    %1574 = vmatprep.subr.mxu0 0.0
    %1575 = vmatpush1.msra.mxu0 0.0
    %1576 = vmatprep.subr.mxu0 0.0
    %1577 = vmatpush1.msra.mxu0 0.0
    %1578 = vmatprep.subr.mxu0 0.0
    %1579 = vmatpush1.msra.mxu0 0.0
    %1580 = vmatprep.subr.mxu0 0.0
    %1581 = vmatpush1.msra.mxu0 0.0
    %1582 = vmatprep.subr.mxu0 0.0
    %1583 = vmatpush1.msra.mxu0 0.0
    %1584 = vmatprep.subr.mxu0 0.0
    %1585 = vmatpush1.msra.mxu0 0.0
    %1586 = vmatprep.subr.mxu0 0.0
    %1587 = vmatpush1.msra.mxu0 0.0
    %1588 = vmatprep.subr.mxu0 0.0
    %1589 = vmatpush1.msra.mxu0 0.0
    %1590 = vmatprep.subr.mxu0 0.0
    %1591 = vmatpush1.msra.mxu0 0.0
    %1592 = vmatprep.mubr.f32.mxu0 0.0
    %1593 = vmatmul.mubr.f32.gmra.mrb[0].mxu0 %v1505
    %v1594 = vpop.f32.mrb[0].mxu0
    %v1595 = vadd.f32 0.0, %v1594
    %v1596 = vpop.f32.mrb[0].mxu0
    %1597 = vmatprep.mubr.f32.mxu0 0.0
    %1598 = vmatmul.mubr.f32.gmra.mrb[0].mxu0 %v1508
    %v1599 = vpop.f32.mrb[0].mxu0
    %v1600 = vadd.f32 0.0, %v1599
    %v1601 = vpop.f32.mrb[0].mxu0
    %1602 = vmatprep.mubr.f32.mxu0 0.0
    %1603 = vmatmul.mubr.f32.gmra.mrb[0].mxu0 %v1511
    %v1604 = vpop.f32.mrb[0].mxu0
    %v1605 = vadd.f32 0.0, %v1604
    %v1606 = vpop.f32.mrb[0].mxu0
    %1607 = vmatprep.mubr.f32.mxu0 0.0
    %1608 = vmatmul.mubr.f32.gmra.mrb[0].mxu0 %v1514
    %v1609 = vpop.f32.mrb[0].mxu0
    %v1610 = vadd.f32 0.0, %v1609
    %v1611 = vpop.f32.mrb[0].mxu0
    %1612 = vmatprep.mubr.f32.mxu0 0.0
    %1613 = vmatmul.mubr.f32.gmra.mrb[0].mxu0 %v1517
    %v1614 = vpop.f32.mrb[0].mxu0
    %v1615 = vadd.f32 0.0, %v1614
    %v1616 = vpop.f32.mrb[0].mxu0
    %1617 = vmatprep.mubr.f32.mxu0 0.0
    %1618 = vmatmul.mubr.f32.gmra.mrb[0].mxu0 %v1520
    %v1619 = vpop.f32.mrb[0].mxu0
    %v1620 = vadd.f32 0.0, %v1619
    %v1621 = vpop.f32.mrb[0].mxu0
    %1622 = vmatprep.mubr.f32.mxu0 0.0
    %1623 = vmatmul.mubr.f32.gmra.mrb[0].mxu0 %v1523
    %v1624 = vpop.f32.mrb[0].mxu0
    %v1625 = vadd.f32 0.0, %v1624
    %v1626 = vpop.f32.mrb[0].mxu0
    %1627 = vmatprep.mubr.f32.mxu0 0.0
    %1628 = vmatmul.mubr.f32.gmra.mrb[0].mxu0 %v1526
    %v1629 = vpop.f32.mrb[0].mxu0
    %v1630 = vadd.f32 0.0, %v1629
    %v1631 = vpop.f32.mrb[0].mxu0
    %1632 = vdwg.mxu0
    %v1634 = vsel %vm332, %v1480, 0
    %v1637 = vsel %vm332, %v1481, 0
    %v1640 = vsel %vm332, %v1482, 0
    %v1643 = vsel %vm332, %v1483, 0
    %v1646 = vsel %vm332, %v1484, 0
    %v1649 = vsel %vm332, %v1485, 0
    %v1652 = vsel %vm332, %v1486, 0
    %v1655 = vsel %vm332, %v1487, 0
    %1657 = vmatprep.subr.mxu0 0.0
    %1658 = vmatpush1.msra.mxu0 %v1488
    %1659 = vmatprep.subr.mxu0 0.0
    %1660 = vmatpush1.msra.mxu0 %v1489
    %1661 = vmatprep.subr.mxu0 0.0
    %1662 = vmatpush1.msra.mxu0 %v1490
    %1663 = vmatprep.subr.mxu0 0.0
    %1664 = vmatpush1.msra.mxu0 %v1491
    %1665 = vmatprep.subr.mxu0 0.0
    %1666 = vmatpush1.msra.mxu0 0.0
    %1667 = vmatprep.subr.mxu0 0.0
    %1668 = vmatpush1.msra.mxu0 0.0
    %1669 = vmatprep.subr.mxu0 0.0
    %1670 = vmatpush1.msra.mxu0 0.0
    %1671 = vmatprep.subr.mxu0 0.0
    %1672 = vmatpush1.msra.mxu0 0.0
    %1673 = vmatprep.subr.mxu0 0.0
    %1674 = vmatpush1.msra.mxu0 0.0
    %1675 = vmatprep.subr.mxu0 0.0
    %1676 = vmatpush1.msra.mxu0 0.0
    %1677 = vmatprep.subr.mxu0 0.0
    %1678 = vmatpush1.msra.mxu0 0.0
    %1679 = vmatprep.subr.mxu0 0.0
    %1680 = vmatpush1.msra.mxu0 0.0
    %1681 = vmatprep.subr.mxu0 0.0
    %1682 = vmatpush1.msra.mxu0 0.0
    %1683 = vmatprep.subr.mxu0 0.0
    %1684 = vmatpush1.msra.mxu0 0.0
    %1685 = vmatprep.subr.mxu0 0.0
    %1686 = vmatpush1.msra.mxu0 0.0
    %1687 = vmatprep.subr.mxu0 0.0
    %1688 = vmatpush1.msra.mxu0 0.0
    %1689 = vmatprep.subr.mxu0 0.0
    %1690 = vmatpush1.msra.mxu0 0.0
    %1691 = vmatprep.subr.mxu0 0.0
    %1692 = vmatpush1.msra.mxu0 0.0
    %1693 = vmatprep.subr.mxu0 0.0
    %1694 = vmatpush1.msra.mxu0 0.0
    %1695 = vmatprep.subr.mxu0 0.0
    %1696 = vmatpush1.msra.mxu0 0.0
    %1697 = vmatprep.subr.mxu0 0.0
    %1698 = vmatpush1.msra.mxu0 0.0
    %1699 = vmatprep.subr.mxu0 0.0
    %1700 = vmatpush1.msra.mxu0 0.0
    %1701 = vmatprep.subr.mxu0 0.0
    %1702 = vmatpush1.msra.mxu0 0.0
    %1703 = vmatprep.subr.mxu0 0.0
    %1704 = vmatpush1.msra.mxu0 0.0
    %1705 = vmatprep.subr.mxu0 0.0
    %1706 = vmatpush1.msra.mxu0 0.0
    %1707 = vmatprep.subr.mxu0 0.0
    %1708 = vmatpush1.msra.mxu0 0.0
    %1709 = vmatprep.subr.mxu0 0.0
    %1710 = vmatpush1.msra.mxu0 0.0
    %1711 = vmatprep.subr.mxu0 0.0
    %1712 = vmatpush1.msra.mxu0 0.0
    %1713 = vmatprep.subr.mxu0 0.0
    %1714 = vmatpush1.msra.mxu0 0.0
    %1715 = vmatprep.subr.mxu0 0.0
    %1716 = vmatpush1.msra.mxu0 0.0
    %1717 = vmatprep.subr.mxu0 0.0
    %1718 = vmatpush1.msra.mxu0 0.0
    %1719 = vmatprep.subr.mxu0 0.0
    %1720 = vmatpush1.msra.mxu0 0.0
    %1721 = vmatprep.mubr.f32.mxu0 0.0
    %1722 = vmatmul.mubr.f32.gmra.mrb[0].mxu0 %v1634
    %v1723 = vpop.f32.mrb[0].mxu0
    %v1724 = vadd.f32 %v1595, %v1723
    %v1725 = vpop.f32.mrb[0].mxu0
    %1726 = vmatprep.mubr.f32.mxu0 0.0
    %1727 = vmatmul.mubr.f32.gmra.mrb[0].mxu0 %v1637
    %v1728 = vpop.f32.mrb[0].mxu0
    %v1729 = vadd.f32 %v1600, %v1728
    %v1730 = vpop.f32.mrb[0].mxu0
    %1731 = vmatprep.mubr.f32.mxu0 0.0
    %1732 = vmatmul.mubr.f32.gmra.mrb[0].mxu0 %v1640
    %v1733 = vpop.f32.mrb[0].mxu0
    %v1734 = vadd.f32 %v1605, %v1733
    %v1735 = vpop.f32.mrb[0].mxu0
    %1736 = vmatprep.mubr.f32.mxu0 0.0
    %1737 = vmatmul.mubr.f32.gmra.mrb[0].mxu0 %v1643
    %v1738 = vpop.f32.mrb[0].mxu0
    %v1739 = vadd.f32 %v1610, %v1738
    %v1740 = vpop.f32.mrb[0].mxu0
    %1741 = vmatprep.mubr.f32.mxu0 0.0
    %1742 = vmatmul.mubr.f32.gmra.mrb[0].mxu0 %v1646
    %v1743 = vpop.f32.mrb[0].mxu0
    %v1744 = vadd.f32 %v1615, %v1743
    %v1745 = vpop.f32.mrb[0].mxu0
    %1746 = vmatprep.mubr.f32.mxu0 0.0
    %1747 = vmatmul.mubr.f32.gmra.mrb[0].mxu0 %v1649
    %v1748 = vpop.f32.mrb[0].mxu0
    %v1749 = vadd.f32 %v1620, %v1748
    %v1750 = vpop.f32.mrb[0].mxu0
    %1751 = vmatprep.mubr.f32.mxu0 0.0
    %1752 = vmatmul.mubr.f32.gmra.mrb[0].mxu0 %v1652
    %v1753 = vpop.f32.mrb[0].mxu0
    %v1754 = vadd.f32 %v1625, %v1753
    %v1755 = vpop.f32.mrb[0].mxu0
    %1756 = vmatprep.mubr.f32.mxu0 0.0
    %1757 = vmatmul.mubr.f32.gmra.mrb[0].mxu0 %v1655
    %v1758 = vpop.f32.mrb[0].mxu0
    %v1759 = vadd.f32 %v1630, %v1758
    %v1760 = vpop.f32.mrb[0].mxu0
    %1761 = vdwg.mxu0
    %v1762 = vld [vmem:[#allocation22] sm:$0x1]
    %v1764 = vlaneseq
    %v1765 = vshrl.u32 %v1764, 7
    %v1766 = vsub.s32 0, %v1765
    %v1767 = vrot.slane %v1762, %v1766
    %v1769 = vadd.f32 %v1724, %v1767
    %v1770 = vadd.f32 %v1729, %v1767
    %v1771 = vadd.f32 %v1734, %v1767
    %v1772 = vadd.f32 %v1739, %v1767
    %v1773 = vadd.f32 %v1744, %v1767
    %v1774 = vadd.f32 %v1749, %v1767
    %v1775 = vadd.f32 %v1754, %v1767
    %v1776 = vadd.f32 %v1759, %v1767
    %1777 = vst.msk [vmem:[#allocation6] sm:$0xff] %vm470, %v1769
    %1778 = vst.msk [vmem:[#allocation6 + $0x8] sm:$0xff] %vm470, %v1770
    %1779 = vst.msk [vmem:[#allocation6 + $0x10] sm:$0xff] %vm470, %v1771
    %1780 = vst.msk [vmem:[#allocation6 + $0x18] sm:$0xff] %vm470, %v1772
    %1781 = vst.msk [vmem:[#allocation6 + $0x20] sm:$0xff] %vm470, %v1773
    %1782 = vst.msk [vmem:[#allocation6 + $0x28] sm:$0xff] %vm470, %v1774
    %1783 = vst.msk [vmem:[#allocation6 + $0x30] sm:$0xff] %vm470, %v1775
    %1784 = vst.msk [vmem:[#allocation6 + $0x38] sm:$0xff] %vm470, %v1776
    loop: start=0, step=1, limit=2
    $region161: #{tpu_custom_call.1} parent=1 // loop_pre_header
      _
    $region162: #{tpu_custom_call.1} parent=1 // loop_header
      %s1786 = sphi 0, %s1790
      %p1787 = scmp.ge.s32.totalorder %s1786, 2
      %v1791 = vphi 0.0, %v2218
    $region163: #{tpu_custom_call.1} parent=1 // loop_header_branch
      %1789 = sbr.rel (%p1787) target = $region167
    $region164: #{tpu_custom_call.1} parent=1 // loop_body
      %1793 = vrot.lane.b32.xlu0 %v1791, 96
      %v1794 = vpop.permute.xlu0 %1793
      %v1795 = vsel %vm332, %v1794, 0
      %1797 = vmatprep.subr.mxu0 0.0
      %1798 = vmatpush1.msra.mxu0 %v559
      %1799 = vmatprep.subr.mxu0 0.0
      %1800 = vmatpush1.msra.mxu0 %v560
      %1801 = vmatprep.subr.mxu0 0.0
      %1802 = vmatpush1.msra.mxu0 %v561
      %1803 = vmatprep.subr.mxu0 0.0
      %1804 = vmatpush1.msra.mxu0 %v562
      %1805 = vmatprep.subr.mxu0 0.0
      %1806 = vmatpush1.msra.mxu0 0.0
      %1807 = vmatprep.subr.mxu0 0.0
      %1808 = vmatpush1.msra.mxu0 0.0
      %1809 = vmatprep.subr.mxu0 0.0
      %1810 = vmatpush1.msra.mxu0 0.0
      %1811 = vmatprep.subr.mxu0 0.0
      %1812 = vmatpush1.msra.mxu0 0.0
      %1813 = vmatprep.subr.mxu0 0.0
      %1814 = vmatpush1.msra.mxu0 0.0
      %1815 = vmatprep.subr.mxu0 0.0
      %1816 = vmatpush1.msra.mxu0 0.0
      %1817 = vmatprep.subr.mxu0 0.0
      %1818 = vmatpush1.msra.mxu0 0.0
      %1819 = vmatprep.subr.mxu0 0.0
      %1820 = vmatpush1.msra.mxu0 0.0
      %1821 = vmatprep.subr.mxu0 0.0
      %1822 = vmatpush1.msra.mxu0 0.0
      %1823 = vmatprep.subr.mxu0 0.0
      %1824 = vmatpush1.msra.mxu0 0.0
      %1825 = vmatprep.subr.mxu0 0.0
      %1826 = vmatpush1.msra.mxu0 0.0
      %1827 = vmatprep.subr.mxu0 0.0
      %1828 = vmatpush1.msra.mxu0 0.0
      %1829 = vmatprep.subr.mxu0 0.0
      %1830 = vmatpush1.msra.mxu0 0.0
      %1831 = vmatprep.subr.mxu0 0.0
      %1832 = vmatpush1.msra.mxu0 0.0
      %1833 = vmatprep.subr.mxu0 0.0
      %1834 = vmatpush1.msra.mxu0 0.0
      %1835 = vmatprep.subr.mxu0 0.0
      %1836 = vmatpush1.msra.mxu0 0.0
      %1837 = vmatprep.subr.mxu0 0.0
      %1838 = vmatpush1.msra.mxu0 0.0
      %1839 = vmatprep.subr.mxu0 0.0
      %1840 = vmatpush1.msra.mxu0 0.0
      %1841 = vmatprep.subr.mxu0 0.0
      %1842 = vmatpush1.msra.mxu0 0.0
      %1843 = vmatprep.subr.mxu0 0.0
      %1844 = vmatpush1.msra.mxu0 0.0
      %1845 = vmatprep.subr.mxu0 0.0
      %1846 = vmatpush1.msra.mxu0 0.0
      %1847 = vmatprep.subr.mxu0 0.0
      %1848 = vmatpush1.msra.mxu0 0.0
      %1849 = vmatprep.subr.mxu0 0.0
      %1850 = vmatpush1.msra.mxu0 0.0
      %1851 = vmatprep.subr.mxu0 0.0
      %1852 = vmatpush1.msra.mxu0 0.0
      %1853 = vmatprep.subr.mxu0 0.0
      %1854 = vmatpush1.msra.mxu0 0.0
      %1855 = vmatprep.subr.mxu0 0.0
      %1856 = vmatpush1.msra.mxu0 0.0
      %1857 = vmatprep.subr.mxu0 0.0
      %1858 = vmatpush1.msra.mxu0 0.0
      %1859 = vmatprep.subr.mxu0 0.0
      %1860 = vmatpush1.msra.mxu0 0.0
      %1861 = vmatprep.mubr.f32.mxu0 0.0
      %1862 = vmatmul.mubr.f32.gmra.mrb[0].mxu0 %v1795
      %v1863 = vpop.f32.mrb[0].mxu0
      %v1864 = vadd.f32 0.0, %v1863
      %v1865 = vpop.f32.mrb[0].mxu0
      %1866 = vdwg.mxu0
      %s1867 = smul.u32 %s1786, 32
      %s1868 = scalar_lea.vmem [#allocation6], %s1867
      %v1869 = vld [vmem:[%s1868] sm:$0xff]
      %v1870 = vadd.f32 %v1869, %v1864
      %v1871 = vxor.u32 %v1870, 2147483648
      %v1872 = vmul.f32 %v1871, 1.442695
      %v1873 = vpow.pop %v1872
      %v1874 = vadd.f32 %v1873, 1.0
      %v1875 = vrcp.pop %v1874
      %v1876 = vmul.f32 1.0, %v1875
      %1877 = vrot.lane.b32.xlu0 %v580, 64
      %v1878 = vpop.permute.xlu0 %1877
      %v1880 = vadd.f32 %v1864, %v1878
      %1882 = vrot.lane.b32.xlu0 %v1880, 64
      %v1883 = vpop.permute.xlu0 %1882
      %v1885 = vmul.f32 %v1876, %v1883
      %1887 = vrot.lane.b32.xlu0 %v1885, 64
      %v1888 = vpop.permute.xlu0 %1887
      %v1890 = vadd.f32 %v1869, %v1888
      %v1891 = vtanh.pop %v1890
      %v1892 = vsub.f32 1.0, %v1876
      %1894 = vrot.lane.b32.xlu0 %v1891, 96
      %v1895 = vpop.permute.xlu0 %1894
      %v1897 = vmul.f32 %v1892, %v1895
      %v1898 = vmul.f32 %v1876, %v1791
      %v1899 = vadd.f32 %v1897, %v1898
      %s1900 = smul.u32 %s1786, 4
      %s1901 = sadd.s32 %s1900, 1
      %1903 = vrot.lane.b32.xlu0 %v1899, 96
      %v1904 = vpop.permute.xlu0 %1903
      %v1905 = vsel %vm332, %v1904, 0
      %1907 = vmatprep.subr.mxu0 0.0
      %1908 = vmatpush1.msra.mxu0 %v559
      %1909 = vmatprep.subr.mxu0 0.0
      %1910 = vmatpush1.msra.mxu0 %v560
      %1911 = vmatprep.subr.mxu0 0.0
      %1912 = vmatpush1.msra.mxu0 %v561
      %1913 = vmatprep.subr.mxu0 0.0
      %1914 = vmatpush1.msra.mxu0 %v562
      %1915 = vmatprep.subr.mxu0 0.0
      %1916 = vmatpush1.msra.mxu0 0.0
      %1917 = vmatprep.subr.mxu0 0.0
      %1918 = vmatpush1.msra.mxu0 0.0
      %1919 = vmatprep.subr.mxu0 0.0
      %1920 = vmatpush1.msra.mxu0 0.0
      %1921 = vmatprep.subr.mxu0 0.0
      %1922 = vmatpush1.msra.mxu0 0.0
      %1923 = vmatprep.subr.mxu0 0.0
      %1924 = vmatpush1.msra.mxu0 0.0
      %1925 = vmatprep.subr.mxu0 0.0
      %1926 = vmatpush1.msra.mxu0 0.0
      %1927 = vmatprep.subr.mxu0 0.0
      %1928 = vmatpush1.msra.mxu0 0.0
      %1929 = vmatprep.subr.mxu0 0.0
      %1930 = vmatpush1.msra.mxu0 0.0
      %1931 = vmatprep.subr.mxu0 0.0
      %1932 = vmatpush1.msra.mxu0 0.0
      %1933 = vmatprep.subr.mxu0 0.0
      %1934 = vmatpush1.msra.mxu0 0.0
      %1935 = vmatprep.subr.mxu0 0.0
      %1936 = vmatpush1.msra.mxu0 0.0
      %1937 = vmatprep.subr.mxu0 0.0
      %1938 = vmatpush1.msra.mxu0 0.0
      %1939 = vmatprep.subr.mxu0 0.0
      %1940 = vmatpush1.msra.mxu0 0.0
      %1941 = vmatprep.subr.mxu0 0.0
      %1942 = vmatpush1.msra.mxu0 0.0
      %1943 = vmatprep.subr.mxu0 0.0
      %1944 = vmatpush1.msra.mxu0 0.0
      %1945 = vmatprep.subr.mxu0 0.0
      %1946 = vmatpush1.msra.mxu0 0.0
      %1947 = vmatprep.subr.mxu0 0.0
      %1948 = vmatpush1.msra.mxu0 0.0
      %1949 = vmatprep.subr.mxu0 0.0
      %1950 = vmatpush1.msra.mxu0 0.0
      %1951 = vmatprep.subr.mxu0 0.0
      %1952 = vmatpush1.msra.mxu0 0.0
      %1953 = vmatprep.subr.mxu0 0.0
      %1954 = vmatpush1.msra.mxu0 0.0
      %1955 = vmatprep.subr.mxu0 0.0
      %1956 = vmatpush1.msra.mxu0 0.0
      %1957 = vmatprep.subr.mxu0 0.0
      %1958 = vmatpush1.msra.mxu0 0.0
      %1959 = vmatprep.subr.mxu0 0.0
      %1960 = vmatpush1.msra.mxu0 0.0
      %1961 = vmatprep.subr.mxu0 0.0
      %1962 = vmatpush1.msra.mxu0 0.0
      %1963 = vmatprep.subr.mxu0 0.0
      %1964 = vmatpush1.msra.mxu0 0.0
      %1965 = vmatprep.subr.mxu0 0.0
      %1966 = vmatpush1.msra.mxu0 0.0
      %1967 = vmatprep.subr.mxu0 0.0
      %1968 = vmatpush1.msra.mxu0 0.0
      %1969 = vmatprep.subr.mxu0 0.0
      %1970 = vmatpush1.msra.mxu0 0.0
      %1971 = vmatprep.mubr.f32.mxu0 0.0
      %1972 = vmatmul.mubr.f32.gmra.mrb[0].mxu0 %v1905
      %v1973 = vpop.f32.mrb[0].mxu0
      %v1974 = vadd.f32 0.0, %v1973
      %v1975 = vpop.f32.mrb[0].mxu0
      %1976 = vdwg.mxu0
      %s1977 = smul.u32 %s1901, 8
      %s1978 = scalar_lea.vmem [#allocation6], %s1977
      %v1979 = vld [vmem:[%s1978] sm:$0xff]
      %v1980 = vadd.f32 %v1979, %v1974
      %v1981 = vxor.u32 %v1980, 2147483648
      %v1982 = vmul.f32 %v1981, 1.442695
      %v1983 = vpow.pop %v1982
      %v1984 = vadd.f32 %v1983, 1.0
      %v1985 = vrcp.pop %v1984
      %v1986 = vmul.f32 1.0, %v1985
      %v1987 = vadd.f32 %v1974, %v1878
      %1989 = vrot.lane.b32.xlu0 %v1987, 64
      %v1990 = vpop.permute.xlu0 %1989
      %v1992 = vmul.f32 %v1986, %v1990
      %1994 = vrot.lane.b32.xlu0 %v1992, 64
      %v1995 = vpop.permute.xlu0 %1994
      %v1997 = vadd.f32 %v1979, %v1995
      %v1998 = vtanh.pop %v1997
      %v1999 = vsub.f32 1.0, %v1986
      %2001 = vrot.lane.b32.xlu0 %v1998, 96
      %v2002 = vpop.permute.xlu0 %2001
      %v2004 = vmul.f32 %v1999, %v2002
      %v2005 = vmul.f32 %v1986, %v1899
      %v2006 = vadd.f32 %v2004, %v2005
      %s2007 = sadd.s32 %s1900, 2
      %2009 = vrot.lane.b32.xlu0 %v2006, 96
      %v2010 = vpop.permute.xlu0 %2009
      %v2011 = vsel %vm332, %v2010, 0
      %2013 = vmatprep.subr.mxu0 0.0
      %2014 = vmatpush1.msra.mxu0 %v559
      %2015 = vmatprep.subr.mxu0 0.0
      %2016 = vmatpush1.msra.mxu0 %v560
      %2017 = vmatprep.subr.mxu0 0.0
      %2018 = vmatpush1.msra.mxu0 %v561
      %2019 = vmatprep.subr.mxu0 0.0
      %2020 = vmatpush1.msra.mxu0 %v562
      %2021 = vmatprep.subr.mxu0 0.0
      %2022 = vmatpush1.msra.mxu0 0.0
      %2023 = vmatprep.subr.mxu0 0.0
      %2024 = vmatpush1.msra.mxu0 0.0
      %2025 = vmatprep.subr.mxu0 0.0
      %2026 = vmatpush1.msra.mxu0 0.0
      %2027 = vmatprep.subr.mxu0 0.0
      %2028 = vmatpush1.msra.mxu0 0.0
      %2029 = vmatprep.subr.mxu0 0.0
      %2030 = vmatpush1.msra.mxu0 0.0
      %2031 = vmatprep.subr.mxu0 0.0
      %2032 = vmatpush1.msra.mxu0 0.0
      %2033 = vmatprep.subr.mxu0 0.0
      %2034 = vmatpush1.msra.mxu0 0.0
      %2035 = vmatprep.subr.mxu0 0.0
      %2036 = vmatpush1.msra.mxu0 0.0
      %2037 = vmatprep.subr.mxu0 0.0
      %2038 = vmatpush1.msra.mxu0 0.0
      %2039 = vmatprep.subr.mxu0 0.0
      %2040 = vmatpush1.msra.mxu0 0.0
      %2041 = vmatprep.subr.mxu0 0.0
      %2042 = vmatpush1.msra.mxu0 0.0
      %2043 = vmatprep.subr.mxu0 0.0
      %2044 = vmatpush1.msra.mxu0 0.0
      %2045 = vmatprep.subr.mxu0 0.0
      %2046 = vmatpush1.msra.mxu0 0.0
      %2047 = vmatprep.subr.mxu0 0.0
      %2048 = vmatpush1.msra.mxu0 0.0
      %2049 = vmatprep.subr.mxu0 0.0
      %2050 = vmatpush1.msra.mxu0 0.0
      %2051 = vmatprep.subr.mxu0 0.0
      %2052 = vmatpush1.msra.mxu0 0.0
      %2053 = vmatprep.subr.mxu0 0.0
      %2054 = vmatpush1.msra.mxu0 0.0
      %2055 = vmatprep.subr.mxu0 0.0
      %2056 = vmatpush1.msra.mxu0 0.0
      %2057 = vmatprep.subr.mxu0 0.0
      %2058 = vmatpush1.msra.mxu0 0.0
      %2059 = vmatprep.subr.mxu0 0.0
      %2060 = vmatpush1.msra.mxu0 0.0
      %2061 = vmatprep.subr.mxu0 0.0
      %2062 = vmatpush1.msra.mxu0 0.0
      %2063 = vmatprep.subr.mxu0 0.0
      %2064 = vmatpush1.msra.mxu0 0.0
      %2065 = vmatprep.subr.mxu0 0.0
      %2066 = vmatpush1.msra.mxu0 0.0
      %2067 = vmatprep.subr.mxu0 0.0
      %2068 = vmatpush1.msra.mxu0 0.0
      %2069 = vmatprep.subr.mxu0 0.0
      %2070 = vmatpush1.msra.mxu0 0.0
      %2071 = vmatprep.subr.mxu0 0.0
      %2072 = vmatpush1.msra.mxu0 0.0
      %2073 = vmatprep.subr.mxu0 0.0
      %2074 = vmatpush1.msra.mxu0 0.0
      %2075 = vmatprep.subr.mxu0 0.0
      %2076 = vmatpush1.msra.mxu0 0.0
      %2077 = vmatprep.mubr.f32.mxu0 0.0
      %2078 = vmatmul.mubr.f32.gmra.mrb[0].mxu0 %v2011
      %v2079 = vpop.f32.mrb[0].mxu0
      %v2080 = vadd.f32 0.0, %v2079
      %v2081 = vpop.f32.mrb[0].mxu0
      %2082 = vdwg.mxu0
      %s2083 = smul.u32 %s2007, 8
      %s2084 = scalar_lea.vmem [#allocation6], %s2083
      %v2085 = vld [vmem:[%s2084] sm:$0xff]
      %v2086 = vadd.f32 %v2085, %v2080
      %v2087 = vxor.u32 %v2086, 2147483648
      %v2088 = vmul.f32 %v2087, 1.442695
      %v2089 = vpow.pop %v2088
      %v2090 = vadd.f32 %v2089, 1.0
      %v2091 = vrcp.pop %v2090
      %v2092 = vmul.f32 1.0, %v2091
      %v2093 = vadd.f32 %v2080, %v1878
      %2095 = vrot.lane.b32.xlu0 %v2093, 64
      %v2096 = vpop.permute.xlu0 %2095
      %v2098 = vmul.f32 %v2092, %v2096
      %2100 = vrot.lane.b32.xlu0 %v2098, 64
      %v2101 = vpop.permute.xlu0 %2100
      %v2103 = vadd.f32 %v2085, %v2101
      %v2104 = vtanh.pop %v2103
      %v2105 = vsub.f32 1.0, %v2092
      %2107 = vrot.lane.b32.xlu0 %v2104, 96
      %v2108 = vpop.permute.xlu0 %2107
      %v2110 = vmul.f32 %v2105, %v2108
      %v2111 = vmul.f32 %v2092, %v2006
      %v2112 = vadd.f32 %v2110, %v2111
      %s2113 = sadd.s32 %s1900, 3
      %2115 = vrot.lane.b32.xlu0 %v2112, 96
      %v2116 = vpop.permute.xlu0 %2115
      %v2117 = vsel %vm332, %v2116, 0
      %2119 = vmatprep.subr.mxu0 0.0
      %2120 = vmatpush1.msra.mxu0 %v559
      %2121 = vmatprep.subr.mxu0 0.0
      %2122 = vmatpush1.msra.mxu0 %v560
      %2123 = vmatprep.subr.mxu0 0.0
      %2124 = vmatpush1.msra.mxu0 %v561
      %2125 = vmatprep.subr.mxu0 0.0
      %2126 = vmatpush1.msra.mxu0 %v562
      %2127 = vmatprep.subr.mxu0 0.0
      %2128 = vmatpush1.msra.mxu0 0.0
      %2129 = vmatprep.subr.mxu0 0.0
      %2130 = vmatpush1.msra.mxu0 0.0
      %2131 = vmatprep.subr.mxu0 0.0
      %2132 = vmatpush1.msra.mxu0 0.0
      %2133 = vmatprep.subr.mxu0 0.0
      %2134 = vmatpush1.msra.mxu0 0.0
      %2135 = vmatprep.subr.mxu0 0.0
      %2136 = vmatpush1.msra.mxu0 0.0
      %2137 = vmatprep.subr.mxu0 0.0
      %2138 = vmatpush1.msra.mxu0 0.0
      %2139 = vmatprep.subr.mxu0 0.0
      %2140 = vmatpush1.msra.mxu0 0.0
      %2141 = vmatprep.subr.mxu0 0.0
      %2142 = vmatpush1.msra.mxu0 0.0
      %2143 = vmatprep.subr.mxu0 0.0
      %2144 = vmatpush1.msra.mxu0 0.0
      %2145 = vmatprep.subr.mxu0 0.0
      %2146 = vmatpush1.msra.mxu0 0.0
      %2147 = vmatprep.subr.mxu0 0.0
      %2148 = vmatpush1.msra.mxu0 0.0
      %2149 = vmatprep.subr.mxu0 0.0
      %2150 = vmatpush1.msra.mxu0 0.0
      %2151 = vmatprep.subr.mxu0 0.0
      %2152 = vmatpush1.msra.mxu0 0.0
      %2153 = vmatprep.subr.mxu0 0.0
      %2154 = vmatpush1.msra.mxu0 0.0
      %2155 = vmatprep.subr.mxu0 0.0
      %2156 = vmatpush1.msra.mxu0 0.0
      %2157 = vmatprep.subr.mxu0 0.0
      %2158 = vmatpush1.msra.mxu0 0.0
      %2159 = vmatprep.subr.mxu0 0.0
      %2160 = vmatpush1.msra.mxu0 0.0
      %2161 = vmatprep.subr.mxu0 0.0
      %2162 = vmatpush1.msra.mxu0 0.0
      %2163 = vmatprep.subr.mxu0 0.0
      %2164 = vmatpush1.msra.mxu0 0.0
      %2165 = vmatprep.subr.mxu0 0.0
      %2166 = vmatpush1.msra.mxu0 0.0
      %2167 = vmatprep.subr.mxu0 0.0
      %2168 = vmatpush1.msra.mxu0 0.0
      %2169 = vmatprep.subr.mxu0 0.0
      %2170 = vmatpush1.msra.mxu0 0.0
      %2171 = vmatprep.subr.mxu0 0.0
      %2172 = vmatpush1.msra.mxu0 0.0
      %2173 = vmatprep.subr.mxu0 0.0
      %2174 = vmatpush1.msra.mxu0 0.0
      %2175 = vmatprep.subr.mxu0 0.0
      %2176 = vmatpush1.msra.mxu0 0.0
      %2177 = vmatprep.subr.mxu0 0.0
      %2178 = vmatpush1.msra.mxu0 0.0
      %2179 = vmatprep.subr.mxu0 0.0
      %2180 = vmatpush1.msra.mxu0 0.0
      %2181 = vmatprep.subr.mxu0 0.0
      %2182 = vmatpush1.msra.mxu0 0.0
      %2183 = vmatprep.mubr.f32.mxu0 0.0
      %2184 = vmatmul.mubr.f32.gmra.mrb[0].mxu0 %v2117
      %v2185 = vpop.f32.mrb[0].mxu0
      %v2186 = vadd.f32 0.0, %v2185
      %v2187 = vpop.f32.mrb[0].mxu0
      %2188 = vdwg.mxu0
      %s2189 = smul.u32 %s2113, 8
      %s2190 = scalar_lea.vmem [#allocation6], %s2189
      %v2191 = vld [vmem:[%s2190] sm:$0xff]
      %v2192 = vadd.f32 %v2191, %v2186
      %v2193 = vxor.u32 %v2192, 2147483648
      %v2194 = vmul.f32 %v2193, 1.442695
      %v2195 = vpow.pop %v2194
      %v2196 = vadd.f32 %v2195, 1.0
      %v2197 = vrcp.pop %v2196
      %v2198 = vmul.f32 1.0, %v2197
      %v2199 = vadd.f32 %v2186, %v1878
      %2201 = vrot.lane.b32.xlu0 %v2199, 64
      %v2202 = vpop.permute.xlu0 %2201
      %v2204 = vmul.f32 %v2198, %v2202
      %2206 = vrot.lane.b32.xlu0 %v2204, 64
      %v2207 = vpop.permute.xlu0 %2206
      %v2209 = vadd.f32 %v2191, %v2207
      %v2210 = vtanh.pop %v2209
      %v2211 = vsub.f32 1.0, %v2198
      %2213 = vrot.lane.b32.xlu0 %v2210, 96
      %v2214 = vpop.permute.xlu0 %2213
      %v2216 = vmul.f32 %v2211, %v2214
      %v2217 = vmul.f32 %v2198, %v2112
      %v2218 = vadd.f32 %v2216, %v2217
    $region165: #{tpu_custom_call.1} parent=1 // loop_footer
      %s1790 = sadd.s32 1, %s1786
    $region166: #{tpu_custom_call.1} parent=1 // loop_footer_branch
      %1785 = sbr.rel target = $region162
    $region167: #{tpu_custom_call.1} parent=1 // loop_exit
      _
    %v2219 = vld [vmem:[#allocation4 + $0x38] sm:$0xff]
    %v2220 = vld [vmem:[#allocation5 + $0x38] sm:$0xff]
    %v2221 = vld [vmem:[#allocation27] sm:$0xff]
    %v2222 = vld [vmem:[#allocation27 + $0x8] sm:$0xff]
    %v2223 = vld [vmem:[#allocation27 + $0x10] sm:$0xff]
    %v2224 = vld [vmem:[#allocation27 + $0x18] sm:$0xff]
    %v2225 = vld [vmem:[#allocation28] sm:$0xff]
    %v2226 = vld [vmem:[#allocation28 + $0x8] sm:$0xff]
    %v2227 = vld [vmem:[#allocation28 + $0x10] sm:$0xff]
    %v2228 = vld [vmem:[#allocation28 + $0x18] sm:$0xff]
    %v2230 = vsel %vm332, %v2220, 0
    %2232 = vmatprep.subr.mxu0 0.0
    %2233 = vmatpush1.msra.mxu0 %v2225
    %2234 = vmatprep.subr.mxu0 0.0
    %2235 = vmatpush1.msra.mxu0 %v2226
    %2236 = vmatprep.subr.mxu0 0.0
    %2237 = vmatpush1.msra.mxu0 %v2227
    %2238 = vmatprep.subr.mxu0 0.0
    %2239 = vmatpush1.msra.mxu0 %v2228
    %2240 = vmatprep.subr.mxu0 0.0
    %2241 = vmatpush1.msra.mxu0 0.0
    %2242 = vmatprep.subr.mxu0 0.0
    %2243 = vmatpush1.msra.mxu0 0.0
    %2244 = vmatprep.subr.mxu0 0.0
    %2245 = vmatpush1.msra.mxu0 0.0
    %2246 = vmatprep.subr.mxu0 0.0
    %2247 = vmatpush1.msra.mxu0 0.0
    %2248 = vmatprep.subr.mxu0 0.0
    %2249 = vmatpush1.msra.mxu0 0.0
    %2250 = vmatprep.subr.mxu0 0.0
    %2251 = vmatpush1.msra.mxu0 0.0
    %2252 = vmatprep.subr.mxu0 0.0
    %2253 = vmatpush1.msra.mxu0 0.0
    %2254 = vmatprep.subr.mxu0 0.0
    %2255 = vmatpush1.msra.mxu0 0.0
    %2256 = vmatprep.subr.mxu0 0.0
    %2257 = vmatpush1.msra.mxu0 0.0
    %2258 = vmatprep.subr.mxu0 0.0
    %2259 = vmatpush1.msra.mxu0 0.0
    %2260 = vmatprep.subr.mxu0 0.0
    %2261 = vmatpush1.msra.mxu0 0.0
    %2262 = vmatprep.subr.mxu0 0.0
    %2263 = vmatpush1.msra.mxu0 0.0
    %2264 = vmatprep.subr.mxu0 0.0
    %2265 = vmatpush1.msra.mxu0 0.0
    %2266 = vmatprep.subr.mxu0 0.0
    %2267 = vmatpush1.msra.mxu0 0.0
    %2268 = vmatprep.subr.mxu0 0.0
    %2269 = vmatpush1.msra.mxu0 0.0
    %2270 = vmatprep.subr.mxu0 0.0
    %2271 = vmatpush1.msra.mxu0 0.0
    %2272 = vmatprep.subr.mxu0 0.0
    %2273 = vmatpush1.msra.mxu0 0.0
    %2274 = vmatprep.subr.mxu0 0.0
    %2275 = vmatpush1.msra.mxu0 0.0
    %2276 = vmatprep.subr.mxu0 0.0
    %2277 = vmatpush1.msra.mxu0 0.0
    %2278 = vmatprep.subr.mxu0 0.0
    %2279 = vmatpush1.msra.mxu0 0.0
    %2280 = vmatprep.subr.mxu0 0.0
    %2281 = vmatpush1.msra.mxu0 0.0
    %2282 = vmatprep.subr.mxu0 0.0
    %2283 = vmatpush1.msra.mxu0 0.0
    %2284 = vmatprep.subr.mxu0 0.0
    %2285 = vmatpush1.msra.mxu0 0.0
    %2286 = vmatprep.subr.mxu0 0.0
    %2287 = vmatpush1.msra.mxu0 0.0
    %2288 = vmatprep.subr.mxu0 0.0
    %2289 = vmatpush1.msra.mxu0 0.0
    %2290 = vmatprep.subr.mxu0 0.0
    %2291 = vmatpush1.msra.mxu0 0.0
    %2292 = vmatprep.subr.mxu0 0.0
    %2293 = vmatpush1.msra.mxu0 0.0
    %2294 = vmatprep.subr.mxu0 0.0
    %2295 = vmatpush1.msra.mxu0 0.0
    %2296 = vmatprep.mubr.f32.mxu0 0.0
    %2297 = vmatmul.mubr.f32.gmra.mrb[0].mxu0 %v2230
    %v2298 = vpop.f32.mrb[0].mxu0
    %v2299 = vadd.f32 0.0, %v2298
    %v2300 = vpop.f32.mrb[0].mxu0
    %2301 = vdwg.mxu0
    %v2303 = vsel %vm332, %v2219, 0
    %2305 = vmatprep.subr.mxu0 0.0
    %2306 = vmatpush1.msra.mxu0 %v2221
    %2307 = vmatprep.subr.mxu0 0.0
    %2308 = vmatpush1.msra.mxu0 %v2222
    %2309 = vmatprep.subr.mxu0 0.0
    %2310 = vmatpush1.msra.mxu0 %v2223
    %2311 = vmatprep.subr.mxu0 0.0
    %2312 = vmatpush1.msra.mxu0 %v2224
    %2313 = vmatprep.subr.mxu0 0.0
    %2314 = vmatpush1.msra.mxu0 0.0
    %2315 = vmatprep.subr.mxu0 0.0
    %2316 = vmatpush1.msra.mxu0 0.0
    %2317 = vmatprep.subr.mxu0 0.0
    %2318 = vmatpush1.msra.mxu0 0.0
    %2319 = vmatprep.subr.mxu0 0.0
    %2320 = vmatpush1.msra.mxu0 0.0
    %2321 = vmatprep.subr.mxu0 0.0
    %2322 = vmatpush1.msra.mxu0 0.0
    %2323 = vmatprep.subr.mxu0 0.0
    %2324 = vmatpush1.msra.mxu0 0.0
    %2325 = vmatprep.subr.mxu0 0.0
    %2326 = vmatpush1.msra.mxu0 0.0
    %2327 = vmatprep.subr.mxu0 0.0
    %2328 = vmatpush1.msra.mxu0 0.0
    %2329 = vmatprep.subr.mxu0 0.0
    %2330 = vmatpush1.msra.mxu0 0.0
    %2331 = vmatprep.subr.mxu0 0.0
    %2332 = vmatpush1.msra.mxu0 0.0
    %2333 = vmatprep.subr.mxu0 0.0
    %2334 = vmatpush1.msra.mxu0 0.0
    %2335 = vmatprep.subr.mxu0 0.0
    %2336 = vmatpush1.msra.mxu0 0.0
    %2337 = vmatprep.subr.mxu0 0.0
    %2338 = vmatpush1.msra.mxu0 0.0
    %2339 = vmatprep.subr.mxu0 0.0
    %2340 = vmatpush1.msra.mxu0 0.0
    %2341 = vmatprep.subr.mxu0 0.0
    %2342 = vmatpush1.msra.mxu0 0.0
    %2343 = vmatprep.subr.mxu0 0.0
    %2344 = vmatpush1.msra.mxu0 0.0
    %2345 = vmatprep.subr.mxu0 0.0
    %2346 = vmatpush1.msra.mxu0 0.0
    %2347 = vmatprep.subr.mxu0 0.0
    %2348 = vmatpush1.msra.mxu0 0.0
    %2349 = vmatprep.subr.mxu0 0.0
    %2350 = vmatpush1.msra.mxu0 0.0
    %2351 = vmatprep.subr.mxu0 0.0
    %2352 = vmatpush1.msra.mxu0 0.0
    %2353 = vmatprep.subr.mxu0 0.0
    %2354 = vmatpush1.msra.mxu0 0.0
    %2355 = vmatprep.subr.mxu0 0.0
    %2356 = vmatpush1.msra.mxu0 0.0
    %2357 = vmatprep.subr.mxu0 0.0
    %2358 = vmatpush1.msra.mxu0 0.0
    %2359 = vmatprep.subr.mxu0 0.0
    %2360 = vmatpush1.msra.mxu0 0.0
    %2361 = vmatprep.subr.mxu0 0.0
    %2362 = vmatpush1.msra.mxu0 0.0
    %2363 = vmatprep.subr.mxu0 0.0
    %2364 = vmatpush1.msra.mxu0 0.0
    %2365 = vmatprep.subr.mxu0 0.0
    %2366 = vmatpush1.msra.mxu0 0.0
    %2367 = vmatprep.subr.mxu0 0.0
    %2368 = vmatpush1.msra.mxu0 0.0
    %2369 = vmatprep.mubr.f32.mxu0 0.0
    %2370 = vmatmul.mubr.f32.gmra.mrb[0].mxu0 %v2303
    %v2371 = vpop.f32.mrb[0].mxu0
    %v2372 = vadd.f32 %v2299, %v2371
    %v2373 = vpop.f32.mrb[0].mxu0
    %2374 = vdwg.mxu0
    %v2375 = vld [vmem:[#allocation30] sm:$0x1]
    %v2377 = vlaneseq
    %v2378 = vshrl.u32 %v2377, 7
    %v2379 = vsub.s32 0, %v2378
    %v2380 = vrot.slane %v2375, %v2379
    %v2382 = vadd.f32 %v2372, %v2380
    %v2383 = vxor.u32 %v2382, 2147483648
    %v2384 = vmul.f32 %v2383, 1.442695
    %v2385 = vpow.pop %v2384
    %v2386 = vadd.f32 %v2385, 1.0
    %v2387 = vrcp.pop %v2386
    %v2388 = vmul.f32 1.0, %v2387
    %v2389 = vmul.f32 %v2388, %v586
    %2391 = vrot.lane.b32.xlu0 %v2389, 64
    %v2392 = vpop.permute.xlu0 %2391
    %v2394 = vadd.f32 %v2382, %v2392
    %v2395 = vtanh.pop %v2394
    %v2396 = vsub.f32 1.0, %v2388
    %2398 = vrot.lane.b32.xlu0 %v2395, 96
    %v2399 = vpop.permute.xlu0 %2398
    %v2401 = vmul.f32 %v2396, %v2399
    %v2402 = vld [vmem:[#allocation33] sm:$0xff]
    %v2403 = vld [vmem:[#allocation33 + $0x8] sm:$0xff]
    %v2404 = vld [vmem:[#allocation33 + $0x10] sm:$0xff]
    %v2405 = vld [vmem:[#allocation33 + $0x18] sm:$0xff]
    %v2406 = vld [vmem:[#allocation34] sm:$0xff]
    %v2407 = vld [vmem:[#allocation34 + $0x8] sm:$0xff]
    %v2408 = vld [vmem:[#allocation34 + $0x10] sm:$0xff]
    %v2409 = vld [vmem:[#allocation34 + $0x18] sm:$0xff]
    %2411 = vrot.lane.b32.xlu0 %v2401, 96
    %v2412 = vpop.permute.xlu0 %2411
    %v2413 = vsel %vm332, %v2412, 0
    %2415 = vmatprep.subr.mxu0 0.0
    %2416 = vmatpush1.msra.mxu0 %v2406
    %2417 = vmatprep.subr.mxu0 0.0
    %2418 = vmatpush1.msra.mxu0 %v2407
    %2419 = vmatprep.subr.mxu0 0.0
    %2420 = vmatpush1.msra.mxu0 %v2408
    %2421 = vmatprep.subr.mxu0 0.0
    %2422 = vmatpush1.msra.mxu0 %v2409
    %2423 = vmatprep.subr.mxu0 0.0
    %2424 = vmatpush1.msra.mxu0 0.0
    %2425 = vmatprep.subr.mxu0 0.0
    %2426 = vmatpush1.msra.mxu0 0.0
    %2427 = vmatprep.subr.mxu0 0.0
    %2428 = vmatpush1.msra.mxu0 0.0
    %2429 = vmatprep.subr.mxu0 0.0
    %2430 = vmatpush1.msra.mxu0 0.0
    %2431 = vmatprep.subr.mxu0 0.0
    %2432 = vmatpush1.msra.mxu0 0.0
    %2433 = vmatprep.subr.mxu0 0.0
    %2434 = vmatpush1.msra.mxu0 0.0
    %2435 = vmatprep.subr.mxu0 0.0
    %2436 = vmatpush1.msra.mxu0 0.0
    %2437 = vmatprep.subr.mxu0 0.0
    %2438 = vmatpush1.msra.mxu0 0.0
    %2439 = vmatprep.subr.mxu0 0.0
    %2440 = vmatpush1.msra.mxu0 0.0
    %2441 = vmatprep.subr.mxu0 0.0
    %2442 = vmatpush1.msra.mxu0 0.0
    %2443 = vmatprep.subr.mxu0 0.0
    %2444 = vmatpush1.msra.mxu0 0.0
    %2445 = vmatprep.subr.mxu0 0.0
    %2446 = vmatpush1.msra.mxu0 0.0
    %2447 = vmatprep.subr.mxu0 0.0
    %2448 = vmatpush1.msra.mxu0 0.0
    %2449 = vmatprep.subr.mxu0 0.0
    %2450 = vmatpush1.msra.mxu0 0.0
    %2451 = vmatprep.subr.mxu0 0.0
    %2452 = vmatpush1.msra.mxu0 0.0
    %2453 = vmatprep.subr.mxu0 0.0
    %2454 = vmatpush1.msra.mxu0 0.0
    %2455 = vmatprep.subr.mxu0 0.0
    %2456 = vmatpush1.msra.mxu0 0.0
    %2457 = vmatprep.subr.mxu0 0.0
    %2458 = vmatpush1.msra.mxu0 0.0
    %2459 = vmatprep.subr.mxu0 0.0
    %2460 = vmatpush1.msra.mxu0 0.0
    %2461 = vmatprep.subr.mxu0 0.0
    %2462 = vmatpush1.msra.mxu0 0.0
    %2463 = vmatprep.subr.mxu0 0.0
    %2464 = vmatpush1.msra.mxu0 0.0
    %2465 = vmatprep.subr.mxu0 0.0
    %2466 = vmatpush1.msra.mxu0 0.0
    %2467 = vmatprep.subr.mxu0 0.0
    %2468 = vmatpush1.msra.mxu0 0.0
    %2469 = vmatprep.subr.mxu0 0.0
    %2470 = vmatpush1.msra.mxu0 0.0
    %2471 = vmatprep.subr.mxu0 0.0
    %2472 = vmatpush1.msra.mxu0 0.0
    %2473 = vmatprep.subr.mxu0 0.0
    %2474 = vmatpush1.msra.mxu0 0.0
    %2475 = vmatprep.subr.mxu0 0.0
    %2476 = vmatpush1.msra.mxu0 0.0
    %2477 = vmatprep.subr.mxu0 0.0
    %2478 = vmatpush1.msra.mxu0 0.0
    %2479 = vmatprep.mubr.f32.mxu0 0.0
    %2480 = vmatmul.mubr.f32.gmra.mrb[0].mxu0 %v2413
    %v2481 = vpop.f32.mrb[0].mxu0
    %v2482 = vadd.f32 0.0, %v2481
    %v2483 = vpop.f32.mrb[0].mxu0
    %2484 = vdwg.mxu0
    %2486 = vrot.lane.b32.xlu0 %v1791, 96
    %v2487 = vpop.permute.xlu0 %2486
    %v2488 = vsel %vm332, %v2487, 0
    %2490 = vmatprep.subr.mxu0 0.0
    %2491 = vmatpush1.msra.mxu0 %v2402
    %2492 = vmatprep.subr.mxu0 0.0
    %2493 = vmatpush1.msra.mxu0 %v2403
    %2494 = vmatprep.subr.mxu0 0.0
    %2495 = vmatpush1.msra.mxu0 %v2404
    %2496 = vmatprep.subr.mxu0 0.0
    %2497 = vmatpush1.msra.mxu0 %v2405
    %2498 = vmatprep.subr.mxu0 0.0
    %2499 = vmatpush1.msra.mxu0 0.0
    %2500 = vmatprep.subr.mxu0 0.0
    %2501 = vmatpush1.msra.mxu0 0.0
    %2502 = vmatprep.subr.mxu0 0.0
    %2503 = vmatpush1.msra.mxu0 0.0
    %2504 = vmatprep.subr.mxu0 0.0
    %2505 = vmatpush1.msra.mxu0 0.0
    %2506 = vmatprep.subr.mxu0 0.0
    %2507 = vmatpush1.msra.mxu0 0.0
    %2508 = vmatprep.subr.mxu0 0.0
    %2509 = vmatpush1.msra.mxu0 0.0
    %2510 = vmatprep.subr.mxu0 0.0
    %2511 = vmatpush1.msra.mxu0 0.0
    %2512 = vmatprep.subr.mxu0 0.0
    %2513 = vmatpush1.msra.mxu0 0.0
    %2514 = vmatprep.subr.mxu0 0.0
    %2515 = vmatpush1.msra.mxu0 0.0
    %2516 = vmatprep.subr.mxu0 0.0
    %2517 = vmatpush1.msra.mxu0 0.0
    %2518 = vmatprep.subr.mxu0 0.0
    %2519 = vmatpush1.msra.mxu0 0.0
    %2520 = vmatprep.subr.mxu0 0.0
    %2521 = vmatpush1.msra.mxu0 0.0
    %2522 = vmatprep.subr.mxu0 0.0
    %2523 = vmatpush1.msra.mxu0 0.0
    %2524 = vmatprep.subr.mxu0 0.0
    %2525 = vmatpush1.msra.mxu0 0.0
    %2526 = vmatprep.subr.mxu0 0.0
    %2527 = vmatpush1.msra.mxu0 0.0
    %2528 = vmatprep.subr.mxu0 0.0
    %2529 = vmatpush1.msra.mxu0 0.0
    %2530 = vmatprep.subr.mxu0 0.0
    %2531 = vmatpush1.msra.mxu0 0.0
    %2532 = vmatprep.subr.mxu0 0.0
    %2533 = vmatpush1.msra.mxu0 0.0
    %2534 = vmatprep.subr.mxu0 0.0
    %2535 = vmatpush1.msra.mxu0 0.0
    %2536 = vmatprep.subr.mxu0 0.0
    %2537 = vmatpush1.msra.mxu0 0.0
    %2538 = vmatprep.subr.mxu0 0.0
    %2539 = vmatpush1.msra.mxu0 0.0
    %2540 = vmatprep.subr.mxu0 0.0
    %2541 = vmatpush1.msra.mxu0 0.0
    %2542 = vmatprep.subr.mxu0 0.0
    %2543 = vmatpush1.msra.mxu0 0.0
    %2544 = vmatprep.subr.mxu0 0.0
    %2545 = vmatpush1.msra.mxu0 0.0
    %2546 = vmatprep.subr.mxu0 0.0
    %2547 = vmatpush1.msra.mxu0 0.0
    %2548 = vmatprep.subr.mxu0 0.0
    %2549 = vmatpush1.msra.mxu0 0.0
    %2550 = vmatprep.subr.mxu0 0.0
    %2551 = vmatpush1.msra.mxu0 0.0
    %2552 = vmatprep.subr.mxu0 0.0
    %2553 = vmatpush1.msra.mxu0 0.0
    %2554 = vmatprep.mubr.f32.mxu0 0.0
    %2555 = vmatmul.mubr.f32.gmra.mrb[0].mxu0 %v2488
    %v2556 = vpop.f32.mrb[0].mxu0
    %v2557 = vadd.f32 %v2482, %v2556
    %v2558 = vpop.f32.mrb[0].mxu0
    %2559 = vdwg.mxu0
    %v2560 = vld [vmem:[#allocation36] sm:$0x1]
    %v2562 = vlaneseq
    %v2563 = vshrl.u32 %v2562, 7
    %v2564 = vsub.s32 0, %v2563
    %v2565 = vrot.slane %v2560, %v2564
    %v2567 = vadd.f32 %v2557, %v2565
    %2568 = vst.msk [vmem:[#allocation37] sm:$0xff] %vm332, %v2567
    // Predicated region
    $region168: #{tpu_custom_call.1} parent=1 // pred_check
      _
    $region169: #{tpu_custom_call.1} parent=1 // pred_check_branch
      %2570 = sbr.rel (0) target = $region171
    $region170: #{tpu_custom_call.1} parent=1 // pred_region
      %s2572 = ssub.s32 128, 128
      %2573 = vsyncadd [#allocation9], %s2572
      %s2575 = sshll.u32 [#allocation37], 4
      %s2576 = int_to_ptr.vmem [resolvable:$true] %s2575
      %2578 = dma.vmem_to_hbm [thread:$0]  %s2576, 128, %s19, [#allocation9]
    $region171: #{tpu_custom_call.1} parent=1 // pred_fallthru
      _
    // Predicated region
    $region172: #{tpu_custom_call.1} parent=1 // pred_check
      _
    $region173: #{tpu_custom_call.1} parent=1 // pred_check_branch
      %2580 = sbr.rel (0) target = $region175
    $region174: #{tpu_custom_call.1} parent=1 // pred_region
      %2581 = dma.done [#allocation9], 128
    $region175: #{tpu_custom_call.1} parent=1 // pred_fallthru
      _
    %2582 = vsyncpa [#allocation8], 1
    %2583 = vsyncpa [#allocation11], 1
    %2584 = vsyncpa [#allocation14], 1
    %2585 = vsyncpa [#allocation17], 1
    %2586 = vsyncpa [#allocation20], 1
    %2587 = vsyncpa [#allocation23], 1
    %2588 = vsyncpa [#allocation26], 1
    %2589 = vsyncpa [#allocation29], 1
    %2590 = vsyncpa [#allocation32], 1
    %2591 = vsyncpa [#allocation35], 1
    %2592 = vsyncpa [#allocation9], 1

</llo_original>
